<compile_context>
chip_gen: v7x
topology: tpu7x:2x2x1
jax: 0.10.0
libtpu: 0.0.40
codegen_flags: <defaults>
</compile_context>

<pallas_src>
import math

import jax
import jax.numpy as jnp
from jax.experimental import pallas as pl
from jax.experimental.pallas import tpu as pltpu

BN_EPS = 1e-5


# --------------------------------------------------------------------------
# Fused forward:  conv3x3 -> BN(batch stats) -> ReLU -> conv3x3 -> BN
# Layout: activations kept as (C, H*W)  (channel on sublanes, space on lanes).
# --------------------------------------------------------------------------
def residual_block_forward(x_nchw, params):
    N, Cin, H, W = x_nchw.shape
    HW = H * W
    Cout = params['w1'].shape[1]
    Cmax = max(Cin, Cout)
    PAD = 128                    # >= W + 1, keeps the interior store lane-aligned
    assert PAD >= W + 1
    Lp = 2 * PAD + HW            # flat-padded spatial length

    # NCHW is already (N, C, H*W) contiguous -> reshape is free (no transpose).
    x = x_nchw.reshape(N, Cin, HW).astype(jnp.bfloat16)

    # Horizontal edge masks (row-wrap) for dx = -1 / +1 taps; dx = 0 needs none.
    col = jnp.arange(HW, dtype=jnp.int32) % W
    masks = jnp.stack([col >= 1,                       # dx = -1 : w-1 >= 0
                       jnp.ones((HW,), bool),          # dx =  0 : unused
                       col <= W - 2])                  # dx = +1 : w+1 <= W-1
    masks = masks.astype(jnp.bfloat16).reshape(3, 1, HW)

    def kernel(x_ref, w1_ref, w2_ref, g1_ref, be1_ref, g2_ref, be2_ref, m_ref,
               o_ref, pf_ref, h_ref, s1_ref, s2_ref):
        # x_ref : (1, Cin, HW)  bf16      (per-sample block)
        # w*_ref: (9, Cout, C)  bf16      (tap-major folded conv weights)
        # g/be  : (Cout, 1)     f32       (BN affine params)
        # m_ref : (3, 1, HW)    bf16      (edge masks, indexed by kx)
        # o_ref : (1, Cout, HW) f32       (per-sample block == flat NCHW slab)
        # pf_ref: (Cmax, Lp)    bf16      shared flat-padded activation scratch
        # h_ref : (N, Cout, HW) f32       whole-batch intermediate (forced by BN)
        # s*_ref: (2, Cout, 1)  f32       [sum, sum-of-squares] accumulators
        phase = pl.program_id(0)
        n = pl.program_id(1)

        # Zero ONLY the halo lanes, once; interior writes never touch them.
        @pl.when((phase == 0) & (n == 0))
        def _zero_halos():
            pf_ref[:, :PAD] = jnp.zeros((Cmax, PAD), jnp.bfloat16)
            pf_ref[:, PAD + HW:] = jnp.zeros((Cmax, PAD), jnp.bfloat16)

        def conv3x3(w_ref, cin):
            # 9 accumulated (Cout,cin)@(cin,HW) matmuls over lane-shifted windows
            # of the flat-padded buffer (no concat, no reshape, no roll).
            acc = jnp.zeros((Cout, HW), jnp.float32)
            for ky in range(3):
                for kx in range(3):
                    start = PAD + (ky - 1) * W + (kx - 1)
                    win = pf_ref[:cin, start:start + HW]        # (cin, HW) bf16
                    if kx != 1:                                  # mask row wrap
                        win = win * m_ref[kx]
                    acc = acc + jnp.dot(w_ref[ky * 3 + kx], win,
                                        preferred_element_type=jnp.float32)
            return acc                                           # (Cout, HW) f32

        def accum(stat_ref, y):
            @pl.when(n == 0)
            def _init():
                stat_ref[...] = jnp.zeros_like(stat_ref)
            stat_ref[0] += jnp.sum(y, axis=1, keepdims=True)
            stat_ref[1] += jnp.sum(y * y, axis=1, keepdims=True)

        def bn_coeffs(stat_ref, g_ref, be_ref):
            # Fold BN into one scale/shift (PyTorch training mode: batch stats,
            # biased variance).  rsqrt lands on the EUP.
            inv_cnt = 1.0 / float(N * HW)
            mean = stat_ref[0] * inv_cnt
            var = stat_ref[1] * inv_cnt - mean * mean
            scale = g_ref[...] * jax.lax.rsqrt(var + BN_EPS)
            shift = be_ref[...] - mean * scale
            return scale, shift

        # ---- phase 0: conv1 per sample, accumulate BN1 stats ---------------
        @pl.when(phase == 0)
        def _conv1():
            pf_ref[:Cin, PAD:PAD + HW] = x_ref[0]
            y = conv3x3(w1_ref, Cin)
            h_ref[n] = y
            accum(s1_ref, y)

        # ---- phase 1: BN1 + ReLU + conv2 per sample, accumulate BN2 stats --
        @pl.when(phase == 1)
        def _conv2():
            scale, shift = bn_coeffs(s1_ref, g1_ref, be1_ref)
            act = jnp.maximum(h_ref[n] * scale + shift, 0.0)
            pf_ref[:Cout, PAD:PAD + HW] = act.astype(jnp.bfloat16)
            y = conv3x3(w2_ref, Cout)
            h_ref[n] = y
            accum(s2_ref, y)

        # ---- phase 2: BN2 and store the lane-dense NCHW output block -------
        @pl.when(phase == 2)
        def _finalize():
            scale, shift = bn_coeffs(s2_ref, g2_ref, be2_ref)
            o_ref[0] = (h_ref[n] * scale + shift).astype(o_ref.dtype)

    out = pl.pallas_call(
        kernel,
        out_shape=jax.ShapeDtypeStruct((N, Cout, HW), jnp.float32),
        grid=(3, N),                               # (phase, sample), phase-major
        in_specs=[
            pl.BlockSpec((1, Cin, HW), lambda p, n: (n, 0, 0)),     # x (streamed)
            pl.BlockSpec((9, Cout, Cin), lambda p, n: (0, 0, 0)),   # w1 (resident)
            pl.BlockSpec((9, Cout, Cout), lambda p, n: (0, 0, 0)),  # w2
            pl.BlockSpec((Cout, 1), lambda p, n: (0, 0)),           # gamma1
            pl.BlockSpec((Cout, 1), lambda p, n: (0, 0)),           # beta1
            pl.BlockSpec((Cout, 1), lambda p, n: (0, 0)),           # gamma2
            pl.BlockSpec((Cout, 1), lambda p, n: (0, 0)),           # beta2
            pl.BlockSpec((3, 1, HW), lambda p, n: (0, 0, 0)),       # edge masks
        ],
        out_specs=pl.BlockSpec((1, Cout, HW), lambda p, n: (n, 0, 0)),
        scratch_shapes=[
            pltpu.VMEM((Cmax, Lp), jnp.bfloat16),      # shared flat-padded act
            pltpu.VMEM((N, Cout, HW), jnp.float32),    # whole-batch conv output
            pltpu.VMEM((2, Cout, 1), jnp.float32),     # BN1 sum / sumsq
            pltpu.VMEM((2, Cout, 1), jnp.float32),     # BN2 sum / sumsq
        ],
        compiler_params=pltpu.CompilerParams(
            dimension_semantics=("arbitrary", "arbitrary")),
    )(x, params['w1'], params['w2'], params['g1'], params['be1'],
      params['g2'], params['be2'], masks)

    return out.reshape(N, Cout, H, W)                  # free contiguous reshape


# --------------------------------------------------------------------------
# Parameters.  Conv weights folded tap-major as (9, Cout, Cin) bf16, with
# w[ky*3+kx, co, ci] = w_oihw[co, ci, ky, kx].  Conv biases are omitted on
# purpose: bias + training-mode BN == BN alone.
# --------------------------------------------------------------------------
def init_params(key, cin, cout):
    k1, k2 = jax.random.split(key, 2)

    def conv_init(k, ci, co):
        bound = 1.0 / math.sqrt(ci * 9)
        w = jax.random.uniform(k, (9, co, ci), jnp.float32, -bound, bound)
        return w.astype(jnp.bfloat16)

    return {
        'w1': conv_init(k1, cin, cout),
        'g1': jnp.ones((cout, 1), jnp.float32),    # BN weight (default 1)
        'be1': jnp.zeros((cout, 1), jnp.float32),  # BN bias   (default 0)
        'w2': conv_init(k2, cout, cout),
        'g2': jnp.ones((cout, 1), jnp.float32),
        'be2': jnp.zeros((cout, 1), jnp.float32),
    }


# --------------------------------------------------------------------------
# Pure-JAX reference (same bf16-operand / f32-accumulate math) for checking.
# --------------------------------------------------------------------------
def reference_forward(x_nchw, p):
    x = jnp.transpose(x_nchw, (0, 2, 3, 1)).astype(jnp.float32)   # NHWC

    def conv(h, w_folded):
        cout, ci = w_folded.shape[1], w_folded.shape[2]
        w_hwio = jnp.transpose(w_folded.reshape(3, 3, cout, ci), (0, 1, 3, 2))
        return jax.lax.conv_general_dilated(
            h.astype(jnp.bfloat16), w_hwio, (1, 1), 'SAME',
            dimension_numbers=('NHWC', 'HWIO', 'NHWC'),
            preferred_element_type=jnp.float32)

    def bn(y, g, be):
        m = jnp.mean(y, axis=(0, 1, 2), keepdims=True)
        v = jnp.mean(jnp.square(y - m), axis=(0, 1, 2), keepdims=True)
        return ((y - m) * jax.lax.rsqrt(v + BN_EPS)
                * g.reshape(1, 1, 1, -1) + be.reshape(1, 1, 1, -1))

    h = jnp.maximum(bn(conv(x, p['w1']), p['g1'], p['be1']), 0.0)
    z = bn(conv(h, p['w2']), p['g2'], p['be2'])
    return jnp.transpose(z, (0, 3, 1, 2))


if __name__ == "__main__":
    key = jax.random.PRNGKey(0)
    pkey, xkey = jax.random.split(key)

    IN_N, OUT_N = 4, 32            # residualBlock(inN=4, outN=32)
    N, H, W = 2, 16, 16

    params = init_params(pkey, IN_N, OUT_N)
    x = jax.random.normal(xkey, (N, IN_N, H, W), jnp.float32)

    out = jax.jit(residual_block_forward)(x, params)
    out = jax.block_until_ready(out)

    assert out.shape == (N, OUT_N, H, W), out.shape
    assert bool(jnp.all(jnp.isfinite(out)))

    ref = reference_forward(x, params)
    max_err = float(jnp.max(jnp.abs(out - ref)))
    assert max_err < 1e-2, f"max abs err vs reference: {max_err}"

    print("KERNEL_OK")
</pallas_src>

<mosaic_0001>
module attributes {stable_mosaic.version = 11 : i64} {
  func.func @kernel(%arg0: i32, %arg1: i32, %arg2: memref<1x4x256xbf16, #tpu.memory_space<vmem>>, %arg3: memref<9x32x4xbf16, #tpu.memory_space<vmem>>, %arg4: memref<9x32x32xbf16, #tpu.memory_space<vmem>>, %arg5: memref<32x1xf32, #tpu.memory_space<vmem>>, %arg6: memref<32x1xf32, #tpu.memory_space<vmem>>, %arg7: memref<32x1xf32, #tpu.memory_space<vmem>>, %arg8: memref<32x1xf32, #tpu.memory_space<vmem>>, %arg9: memref<3x1x256xbf16, #tpu.memory_space<vmem>>, %arg10: memref<1x32x256xf32, #tpu.memory_space<vmem>>, %arg11: memref<32x512xbf16, #tpu.memory_space<vmem>>, %arg12: memref<2x32x256xf32, #tpu.memory_space<vmem>>, %arg13: memref<2x32x1xf32, #tpu.memory_space<vmem>>, %arg14: memref<2x32x1xf32, #tpu.memory_space<vmem>>) attributes {dimension_semantics = [#tpu.dimension_semantics<arbitrary>, #tpu.dimension_semantics<arbitrary>], iteration_bounds = array<i64: 3, 2>, scalar_prefetch = 0 : i64, scratch_operands = 4 : i64, tpu.core_type = #tpu.core_type<tc>, window_params = [{transform_indices = @transform_0, window_bounds = array<i64: 1, 4, 256>}, {pipeline_mode = #tpu.pipeline_mode<synchronous>, transform_indices = @transform_1, window_bounds = array<i64: 9, 32, 4>}, {pipeline_mode = #tpu.pipeline_mode<synchronous>, transform_indices = @transform_2, window_bounds = array<i64: 9, 32, 32>}, {pipeline_mode = #tpu.pipeline_mode<synchronous>, transform_indices = @transform_3, window_bounds = array<i64: 32, 1>}, {pipeline_mode = #tpu.pipeline_mode<synchronous>, transform_indices = @transform_4, window_bounds = array<i64: 32, 1>}, {pipeline_mode = #tpu.pipeline_mode<synchronous>, transform_indices = @transform_5, window_bounds = array<i64: 32, 1>}, {pipeline_mode = #tpu.pipeline_mode<synchronous>, transform_indices = @transform_6, window_bounds = array<i64: 32, 1>}, {pipeline_mode = #tpu.pipeline_mode<synchronous>, transform_indices = @transform_7, window_bounds = array<i64: 3, 1, 256>}, {transform_indices = @transform_8, window_bounds = array<i64: 1, 32, 256>}]} {
    %c0_i32 = arith.constant 0 : i32
    %0 = arith.cmpi eq, %arg0, %c0_i32 : i32
    %c0_i32_0 = arith.constant 0 : i32
    %1 = arith.cmpi eq, %arg1, %c0_i32_0 : i32
    %2 = arith.andi %0, %1 : i1
    %3 = arith.extui %2 : i1 to i32
    %c0_i32_1 = arith.constant 0 : i32
    %4 = arith.cmpi ne, %3, %c0_i32_1 : i32
    scf.if %4 {
      %cst = arith.constant 0.000000e+00 : bf16
      %14 = vector.broadcast %cst : bf16 to vector<32x128xbf16>
      %c0 = arith.constant 0 : index
      %c0_6 = arith.constant 0 : index
      %15 = vector.load %arg11[%c0, %c0_6] : memref<32x512xbf16, #tpu.memory_space<vmem>>, vector<32x128xbf16>
      tpu.vector_store %arg11[%c0, %c0_6], %14 {strides = array<i32>} : memref<32x512xbf16, #tpu.memory_space<vmem>>, vector<32x128xbf16>,
      %cst_7 = arith.constant 0.000000e+00 : bf16
      %16 = vector.broadcast %cst_7 : bf16 to vector<32x128xbf16>
      %c0_8 = arith.constant 0 : index
      %c384 = arith.constant 384 : index
      %17 = vector.load %arg11[%c0_8, %c384] : memref<32x512xbf16, #tpu.memory_space<vmem>>, vector<32x128xbf16>
      tpu.vector_store %arg11[%c0_8, %c384], %16 {strides = array<i32>} : memref<32x512xbf16, #tpu.memory_space<vmem>>, vector<32x128xbf16>,
    } else {
    }
    %c0_i32_2 = arith.constant 0 : i32
    %5 = arith.cmpi eq, %arg0, %c0_i32_2 : i32
    %6 = arith.extui %5 : i1 to i32
    %c0_i32_3 = arith.constant 0 : i32
    %7 = arith.cmpi ne, %6, %c0_i32_3 : i32
    scf.if %7 {
      %c0 = arith.constant 0 : index
      %c0_6 = arith.constant 0 : index
      %c0_7 = arith.constant 0 : index
      %14 = vector.load %arg2[%c0, %c0_6, %c0_7] : memref<1x4x256xbf16, #tpu.memory_space<vmem>>, vector<1x4x256xbf16>
      %15 = vector.shape_cast %14 : vector<1x4x256xbf16> to vector<4x256xbf16>
      %c0_8 = arith.constant 0 : index
      %c128 = arith.constant 128 : index
      %16 = vector.load %arg11[%c0_8, %c128] : memref<32x512xbf16, #tpu.memory_space<vmem>>, vector<4x256xbf16>
      tpu.vector_store %arg11[%c0_8, %c128], %15 {strides = array<i32>} : memref<32x512xbf16, #tpu.memory_space<vmem>>, vector<4x256xbf16>,
      %cst = arith.constant 0.000000e+00 : f32
      %17 = vector.broadcast %cst : f32 to vector<32x256xf32>
      %c0_9 = arith.constant 0 : index
      %c111 = arith.constant 111 : index
      %18 = vector.load %arg11[%c0_9, %c111] : memref<32x512xbf16, #tpu.memory_space<vmem>>, vector<4x256xbf16>
      %c0_10 = arith.constant 0 : index
      %c0_11 = arith.constant 0 : index
      %c0_12 = arith.constant 0 : index
      %19 = vector.load %arg9[%c0_10, %c0_11, %c0_12] : memref<3x1x256xbf16, #tpu.memory_space<vmem>>, vector<1x1x256xbf16>
      %20 = vector.shape_cast %19 : vector<1x1x256xbf16> to vector<1x256xbf16>
      %21 = vector.broadcast %20 : vector<1x256xbf16> to vector<4x256xbf16>
      %22 = arith.mulf %18, %21 : vector<4x256xbf16>
      %c0_13 = arith.constant 0 : index
      %c0_14 = arith.constant 0 : index
      %c0_15 = arith.constant 0 : index
      %23 = vector.load %arg3[%c0_13, %c0_14, %c0_15] : memref<9x32x4xbf16, #tpu.memory_space<vmem>>, vector<1x32x4xbf16>
      %24 = vector.shape_cast %23 : vector<1x32x4xbf16> to vector<32x4xbf16>
      %cst_16 = arith.constant dense<0.000000e+00> : vector<32x256xf32>
      %25 = tpu.matmul %24, %22, %cst_16 {dimension_numbers = #tpu.dot_dimension_numbers<[1], [0], [0], [1], [0, 0, 1, 1], [], []>} : vector<32x4xbf16>, vector<4x256xbf16>, vector<32x256xf32> -> vector<32x256xf32>
      %26 = arith.addf %17, %25 : vector<32x256xf32>
      %c0_17 = arith.constant 0 : index
      %c112 = arith.constant 112 : index
      %27 = vector.load %arg11[%c0_17, %c112] : memref<32x512xbf16, #tpu.memory_space<vmem>>, vector<4x256xbf16>
      %c1 = arith.constant 1 : index
      %c0_18 = arith.constant 0 : index
      %c0_19 = arith.constant 0 : index
      %28 = vector.load %arg3[%c1, %c0_18, %c0_19] : memref<9x32x4xbf16, #tpu.memory_space<vmem>>, vector<1x32x4xbf16>
      %29 = vector.shape_cast %28 : vector<1x32x4xbf16> to vector<32x4xbf16>
      %cst_20 = arith.constant dense<0.000000e+00> : vector<32x256xf32>
      %30 = tpu.matmul %29, %27, %cst_20 {dimension_numbers = #tpu.dot_dimension_numbers<[1], [0], [0], [1], [0, 0, 1, 1], [], []>} : vector<32x4xbf16>, vector<4x256xbf16>, vector<32x256xf32> -> vector<32x256xf32>
      %31 = arith.addf %26, %30 : vector<32x256xf32>
      %c0_21 = arith.constant 0 : index
      %c113 = arith.constant 113 : index
      %32 = vector.load %arg11[%c0_21, %c113] : memref<32x512xbf16, #tpu.memory_space<vmem>>, vector<4x256xbf16>
      %c2 = arith.constant 2 : index
      %c0_22 = arith.constant 0 : index
      %c0_23 = arith.constant 0 : index
      %33 = vector.load %arg9[%c2, %c0_22, %c0_23] : memref<3x1x256xbf16, #tpu.memory_space<vmem>>, vector<1x1x256xbf16>
      %34 = vector.shape_cast %33 : vector<1x1x256xbf16> to vector<1x256xbf16>
      %35 = vector.broadcast %34 : vector<1x256xbf16> to vector<4x256xbf16>
      %36 = arith.mulf %32, %35 : vector<4x256xbf16>
      %c2_24 = arith.constant 2 : index
      %c0_25 = arith.constant 0 : index
      %c0_26 = arith.constant 0 : index
      %37 = vector.load %arg3[%c2_24, %c0_25, %c0_26] : memref<9x32x4xbf16, #tpu.memory_space<vmem>>, vector<1x32x4xbf16>
      %38 = vector.shape_cast %37 : vector<1x32x4xbf16> to vector<32x4xbf16>
      %cst_27 = arith.constant dense<0.000000e+00> : vector<32x256xf32>
      %39 = tpu.matmul %38, %36, %cst_27 {dimension_numbers = #tpu.dot_dimension_numbers<[1], [0], [0], [1], [0, 0, 1, 1], [], []>} : vector<32x4xbf16>, vector<4x256xbf16>, vector<32x256xf32> -> vector<32x256xf32>
      %40 = arith.addf %31, %39 : vector<32x256xf32>
      %c0_28 = arith.constant 0 : index
      %c127 = arith.constant 127 : index
      %41 = vector.load %arg11[%c0_28, %c127] : memref<32x512xbf16, #tpu.memory_space<vmem>>, vector<4x256xbf16>
      %c0_29 = arith.constant 0 : index
      %c0_30 = arith.constant 0 : index
      %c0_31 = arith.constant 0 : index
      %42 = vector.load %arg9[%c0_29, %c0_30, %c0_31] : memref<3x1x256xbf16, #tpu.memory_space<vmem>>, vector<1x1x256xbf16>
      %43 = vector.shape_cast %42 : vector<1x1x256xbf16> to vector<1x256xbf16>
      %44 = vector.broadcast %43 : vector<1x256xbf16> to vector<4x256xbf16>
      %45 = arith.mulf %41, %44 : vector<4x256xbf16>
      %c3 = arith.constant 3 : index
      %c0_32 = arith.constant 0 : index
      %c0_33 = arith.constant 0 : index
      %46 = vector.load %arg3[%c3, %c0_32, %c0_33] : memref<9x32x4xbf16, #tpu.memory_space<vmem>>, vector<1x32x4xbf16>
      %47 = vector.shape_cast %46 : vector<1x32x4xbf16> to vector<32x4xbf16>
      %cst_34 = arith.constant dense<0.000000e+00> : vector<32x256xf32>
      %48 = tpu.matmul %47, %45, %cst_34 {dimension_numbers = #tpu.dot_dimension_numbers<[1], [0], [0], [1], [0, 0, 1, 1], [], []>} : vector<32x4xbf16>, vector<4x256xbf16>, vector<32x256xf32> -> vector<32x256xf32>
      %49 = arith.addf %40, %48 : vector<32x256xf32>
      %c0_35 = arith.constant 0 : index
      %c128_36 = arith.constant 128 : index
      %50 = vector.load %arg11[%c0_35, %c128_36] : memref<32x512xbf16, #tpu.memory_space<vmem>>, vector<4x256xbf16>
      %c4 = arith.constant 4 : index
      %c0_37 = arith.constant 0 : index
      %c0_38 = arith.constant 0 : index
      %51 = vector.load %arg3[%c4, %c0_37, %c0_38] : memref<9x32x4xbf16, #tpu.memory_space<vmem>>, vector<1x32x4xbf16>
      %52 = vector.shape_cast %51 : vector<1x32x4xbf16> to vector<32x4xbf16>
      %cst_39 = arith.constant dense<0.000000e+00> : vector<32x256xf32>
      %53 = tpu.matmul %52, %50, %cst_39 {dimension_numbers = #tpu.dot_dimension_numbers<[1], [0], [0], [1], [0, 0, 1, 1], [], []>} : vector<32x4xbf16>, vector<4x256xbf16>, vector<32x256xf32> -> vector<32x256xf32>
      %54 = arith.addf %49, %53 : vector<32x256xf32>
      %c0_40 = arith.constant 0 : index
      %c129 = arith.constant 129 : index
      %55 = vector.load %arg11[%c0_40, %c129] : memref<32x512xbf16, #tpu.memory_space<vmem>>, vector<4x256xbf16>
      %c2_41 = arith.constant 2 : index
      %c0_42 = arith.constant 0 : index
      %c0_43 = arith.constant 0 : index
      %56 = vector.load %arg9[%c2_41, %c0_42, %c0_43] : memref<3x1x256xbf16, #tpu.memory_space<vmem>>, vector<1x1x256xbf16>
      %57 = vector.shape_cast %56 : vector<1x1x256xbf16> to vector<1x256xbf16>
      %58 = vector.broadcast %57 : vector<1x256xbf16> to vector<4x256xbf16>
      %59 = arith.mulf %55, %58 : vector<4x256xbf16>
      %c5 = arith.constant 5 : index
      %c0_44 = arith.constant 0 : index
      %c0_45 = arith.constant 0 : index
      %60 = vector.load %arg3[%c5, %c0_44, %c0_45] : memref<9x32x4xbf16, #tpu.memory_space<vmem>>, vector<1x32x4xbf16>
      %61 = vector.shape_cast %60 : vector<1x32x4xbf16> to vector<32x4xbf16>
      %cst_46 = arith.constant dense<0.000000e+00> : vector<32x256xf32>
      %62 = tpu.matmul %61, %59, %cst_46 {dimension_numbers = #tpu.dot_dimension_numbers<[1], [0], [0], [1], [0, 0, 1, 1], [], []>} : vector<32x4xbf16>, vector<4x256xbf16>, vector<32x256xf32> -> vector<32x256xf32>
      %63 = arith.addf %54, %62 : vector<32x256xf32>
      %c0_47 = arith.constant 0 : index
      %c143 = arith.constant 143 : index
      %64 = vector.load %arg11[%c0_47, %c143] : memref<32x512xbf16, #tpu.memory_space<vmem>>, vector<4x256xbf16>
      %c0_48 = arith.constant 0 : index
      %c0_49 = arith.constant 0 : index
      %c0_50 = arith.constant 0 : index
      %65 = vector.load %arg9[%c0_48, %c0_49, %c0_50] : memref<3x1x256xbf16, #tpu.memory_space<vmem>>, vector<1x1x256xbf16>
      %66 = vector.shape_cast %65 : vector<1x1x256xbf16> to vector<1x256xbf16>
      %67 = vector.broadcast %66 : vector<1x256xbf16> to vector<4x256xbf16>
      %68 = arith.mulf %64, %67 : vector<4x256xbf16>
      %c6 = arith.constant 6 : index
      %c0_51 = arith.constant 0 : index
      %c0_52 = arith.constant 0 : index
      %69 = vector.load %arg3[%c6, %c0_51, %c0_52] : memref<9x32x4xbf16, #tpu.memory_space<vmem>>, vector<1x32x4xbf16>
      %70 = vector.shape_cast %69 : vector<1x32x4xbf16> to vector<32x4xbf16>
      %cst_53 = arith.constant dense<0.000000e+00> : vector<32x256xf32>
      %71 = tpu.matmul %70, %68, %cst_53 {dimension_numbers = #tpu.dot_dimension_numbers<[1], [0], [0], [1], [0, 0, 1, 1], [], []>} : vector<32x4xbf16>, vector<4x256xbf16>, vector<32x256xf32> -> vector<32x256xf32>
      %72 = arith.addf %63, %71 : vector<32x256xf32>
      %c0_54 = arith.constant 0 : index
      %c144 = arith.constant 144 : index
      %73 = vector.load %arg11[%c0_54, %c144] : memref<32x512xbf16, #tpu.memory_space<vmem>>, vector<4x256xbf16>
      %c7 = arith.constant 7 : index
      %c0_55 = arith.constant 0 : index
      %c0_56 = arith.constant 0 : index
      %74 = vector.load %arg3[%c7, %c0_55, %c0_56] : memref<9x32x4xbf16, #tpu.memory_space<vmem>>, vector<1x32x4xbf16>
      %75 = vector.shape_cast %74 : vector<1x32x4xbf16> to vector<32x4xbf16>
      %cst_57 = arith.constant dense<0.000000e+00> : vector<32x256xf32>
      %76 = tpu.matmul %75, %73, %cst_57 {dimension_numbers = #tpu.dot_dimension_numbers<[1], [0], [0], [1], [0, 0, 1, 1], [], []>} : vector<32x4xbf16>, vector<4x256xbf16>, vector<32x256xf32> -> vector<32x256xf32>
      %77 = arith.addf %72, %76 : vector<32x256xf32>
      %c0_58 = arith.constant 0 : index
      %c145 = arith.constant 145 : index
      %78 = vector.load %arg11[%c0_58, %c145] : memref<32x512xbf16, #tpu.memory_space<vmem>>, vector<4x256xbf16>
      %c2_59 = arith.constant 2 : index
      %c0_60 = arith.constant 0 : index
      %c0_61 = arith.constant 0 : index
      %79 = vector.load %arg9[%c2_59, %c0_60, %c0_61] : memref<3x1x256xbf16, #tpu.memory_space<vmem>>, vector<1x1x256xbf16>
      %80 = vector.shape_cast %79 : vector<1x1x256xbf16> to vector<1x256xbf16>
      %81 = vector.broadcast %80 : vector<1x256xbf16> to vector<4x256xbf16>
      %82 = arith.mulf %78, %81 : vector<4x256xbf16>
      %c8 = arith.constant 8 : index
      %c0_62 = arith.constant 0 : index
      %c0_63 = arith.constant 0 : index
      %83 = vector.load %arg3[%c8, %c0_62, %c0_63] : memref<9x32x4xbf16, #tpu.memory_space<vmem>>, vector<1x32x4xbf16>
      %84 = vector.shape_cast %83 : vector<1x32x4xbf16> to vector<32x4xbf16>
      %cst_64 = arith.constant dense<0.000000e+00> : vector<32x256xf32>
      %85 = tpu.matmul %84, %82, %cst_64 {dimension_numbers = #tpu.dot_dimension_numbers<[1], [0], [0], [1], [0, 0, 1, 1], [], []>} : vector<32x4xbf16>, vector<4x256xbf16>, vector<32x256xf32> -> vector<32x256xf32>
      %86 = arith.addf %77, %85 : vector<32x256xf32>
      %87 = arith.index_cast %arg1 : i32 to index
      %c0_65 = arith.constant 0 : index
      %c0_66 = arith.constant 0 : index
      %88 = vector.load %arg12[%87, %c0_65, %c0_66] : memref<2x32x256xf32, #tpu.memory_space<vmem>>, vector<1x32x256xf32>
      %89 = vector.shape_cast %88 : vector<1x32x256xf32> to vector<32x256xf32>
      %90 = vector.shape_cast %86 : vector<32x256xf32> to vector<1x32x256xf32>
      tpu.vector_store %arg12[%87, %c0_65, %c0_66], %90 {strides = array<i32>} : memref<2x32x256xf32, #tpu.memory_space<vmem>>, vector<1x32x256xf32>,
      %c0_i32_67 = arith.constant 0 : i32
      %91 = arith.cmpi eq, %arg1, %c0_i32_67 : i32
      %92 = arith.extui %91 : i1 to i32
      %c0_i32_68 = arith.constant 0 : i32
      %93 = arith.cmpi ne, %92, %c0_i32_68 : i32
      scf.if %93 {
        %cst_83 = arith.constant 0.000000e+00 : f32
        %111 = vector.broadcast %cst_83 : f32 to vector<2x32x1xf32>
        %c0_84 = arith.constant 0 : index
        %c0_85 = arith.constant 0 : index
        %c0_86 = arith.constant 0 : index
        %112 = vector.load %arg13[%c0_84, %c0_85, %c0_86] : memref<2x32x1xf32, #tpu.memory_space<vmem>>, vector<2x32x1xf32>
        tpu.vector_store %arg13[%c0_84, %c0_85, %c0_86], %111 {strides = array<i32>} : memref<2x32x1xf32, #tpu.memory_space<vmem>>, vector<2x32x1xf32>,
      } else {
      }
      %c0_69 = arith.constant 0 : index
      %c0_70 = arith.constant 0 : index
      %c0_71 = arith.constant 0 : index
      %94 = vector.load %arg13[%c0_69, %c0_70, %c0_71] : memref<2x32x1xf32, #tpu.memory_space<vmem>>, vector<1x32x1xf32>
      %95 = vector.shape_cast %94 : vector<1x32x1xf32> to vector<32x1xf32>
      %cst_72 = arith.constant dense<0.000000e+00> : vector<32xf32>
      %96 = vector.multi_reduction <add>, %86, %cst_72 [1] : vector<32x256xf32> to vector<32xf32>
      %97 = vector.shape_cast %96 : vector<32xf32> to vector<32x1xf32>
      %98 = arith.addf %95, %97 : vector<32x1xf32>
      %c0_73 = arith.constant 0 : index
      %c0_74 = arith.constant 0 : index
      %c0_75 = arith.constant 0 : index
      %99 = vector.load %arg13[%c0_73, %c0_74, %c0_75] : memref<2x32x1xf32, #tpu.memory_space<vmem>>, vector<1x32x1xf32>
      %100 = vector.shape_cast %99 : vector<1x32x1xf32> to vector<32x1xf32>
      %101 = vector.shape_cast %98 : vector<32x1xf32> to vector<1x32x1xf32>
      tpu.vector_store %arg13[%c0_73, %c0_74, %c0_75], %101 {strides = array<i32>} : memref<2x32x1xf32, #tpu.memory_space<vmem>>, vector<1x32x1xf32>,
      %c1_76 = arith.constant 1 : index
      %c0_77 = arith.constant 0 : index
      %c0_78 = arith.constant 0 : index
      %102 = vector.load %arg13[%c1_76, %c0_77, %c0_78] : memref<2x32x1xf32, #tpu.memory_space<vmem>>, vector<1x32x1xf32>
      %103 = vector.shape_cast %102 : vector<1x32x1xf32> to vector<32x1xf32>
      %104 = arith.mulf %86, %86 : vector<32x256xf32>
      %cst_79 = arith.constant dense<0.000000e+00> : vector<32xf32>
      %105 = vector.multi_reduction <add>, %104, %cst_79 [1] : vector<32x256xf32> to vector<32xf32>
      %106 = vector.shape_cast %105 : vector<32xf32> to vector<32x1xf32>
      %107 = arith.addf %103, %106 : vector<32x1xf32>
      %c1_80 = arith.constant 1 : index
      %c0_81 = arith.constant 0 : index
      %c0_82 = arith.constant 0 : index
      %108 = vector.load %arg13[%c1_80, %c0_81, %c0_82] : memref<2x32x1xf32, #tpu.memory_space<vmem>>, vector<1x32x1xf32>
      %109 = vector.shape_cast %108 : vector<1x32x1xf32> to vector<32x1xf32>
      %110 = vector.shape_cast %107 : vector<32x1xf32> to vector<1x32x1xf32>
      tpu.vector_store %arg13[%c1_80, %c0_81, %c0_82], %110 {strides = array<i32>} : memref<2x32x1xf32, #tpu.memory_space<vmem>>, vector<1x32x1xf32>,
    } else {
    }
    %c1_i32 = arith.constant 1 : i32
    %8 = arith.cmpi eq, %arg0, %c1_i32 : i32
    %9 = arith.extui %8 : i1 to i32
    %c0_i32_4 = arith.constant 0 : i32
    %10 = arith.cmpi ne, %9, %c0_i32_4 : i32
    scf.if %10 {
      %c0 = arith.constant 0 : index
      %c0_6 = arith.constant 0 : index
      %c0_7 = arith.constant 0 : index
      %14 = vector.load %arg13[%c0, %c0_6, %c0_7] : memref<2x32x1xf32, #tpu.memory_space<vmem>>, vector<1x32x1xf32>
      %15 = vector.shape_cast %14 : vector<1x32x1xf32> to vector<32x1xf32>
      %cst = arith.constant 0.001953125 : f32
      %16 = vector.broadcast %cst : f32 to vector<32x1xf32>
      %17 = arith.mulf %15, %16 : vector<32x1xf32>
      %c1 = arith.constant 1 : index
      %c0_8 = arith.constant 0 : index
      %c0_9 = arith.constant 0 : index
      %18 = vector.load %arg13[%c1, %c0_8, %c0_9] : memref<2x32x1xf32, #tpu.memory_space<vmem>>, vector<1x32x1xf32>
      %19 = vector.shape_cast %18 : vector<1x32x1xf32> to vector<32x1xf32>
      %cst_10 = arith.constant 0.001953125 : f32
      %20 = vector.broadcast %cst_10 : f32 to vector<32x1xf32>
      %21 = arith.mulf %19, %20 : vector<32x1xf32>
      %22 = arith.mulf %17, %17 : vector<32x1xf32>
      %23 = arith.subf %21, %22 : vector<32x1xf32>
      %c0_11 = arith.constant 0 : index
      %c0_12 = arith.constant 0 : index
      %24 = vector.load %arg5[%c0_11, %c0_12] : memref<32x1xf32, #tpu.memory_space<vmem>>, vector<32x1xf32>
      %cst_13 = arith.constant 9.99999974E-6 : f32
      %25 = vector.broadcast %cst_13 : f32 to vector<32x1xf32>
      %26 = arith.addf %23, %25 : vector<32x1xf32>
      %27 = math.rsqrt %26 : vector<32x1xf32>
      %28 = arith.mulf %24, %27 : vector<32x1xf32>
      %c0_14 = arith.constant 0 : index
      %c0_15 = arith.constant 0 : index
      %29 = vector.load %arg6[%c0_14, %c0_15] : memref<32x1xf32, #tpu.memory_space<vmem>>, vector<32x1xf32>
      %30 = arith.mulf %17, %28 : vector<32x1xf32>
      %31 = arith.subf %29, %30 : vector<32x1xf32>
      %32 = arith.index_cast %arg1 : i32 to index
      %c0_16 = arith.constant 0 : index
      %c0_17 = arith.constant 0 : index
      %33 = vector.load %arg12[%32, %c0_16, %c0_17] : memref<2x32x256xf32, #tpu.memory_space<vmem>>, vector<1x32x256xf32>
      %34 = vector.shape_cast %33 : vector<1x32x256xf32> to vector<32x256xf32>
      %35 = vector.broadcast %28 : vector<32x1xf32> to vector<32x256xf32>
      %36 = arith.mulf %34, %35 : vector<32x256xf32>
      %37 = vector.broadcast %31 : vector<32x1xf32> to vector<32x256xf32>
      %38 = arith.addf %36, %37 : vector<32x256xf32>
      %cst_18 = arith.constant 0.000000e+00 : f32
      %39 = vector.broadcast %cst_18 : f32 to vector<32x256xf32>
      %40 = arith.maximumf %38, %39 : vector<32x256xf32>
      %41 = arith.truncf %40 : vector<32x256xf32> to vector<32x256xbf16>
      %c0_19 = arith.constant 0 : index
      %c128 = arith.constant 128 : index
      %42 = vector.load %arg11[%c0_19, %c128] : memref<32x512xbf16, #tpu.memory_space<vmem>>, vector<32x256xbf16>
      tpu.vector_store %arg11[%c0_19, %c128], %41 {strides = array<i32>} : memref<32x512xbf16, #tpu.memory_space<vmem>>, vector<32x256xbf16>,
      %cst_20 = arith.constant 0.000000e+00 : f32
      %43 = vector.broadcast %cst_20 : f32 to vector<32x256xf32>
      %c0_21 = arith.constant 0 : index
      %c111 = arith.constant 111 : index
      %44 = vector.load %arg11[%c0_21, %c111] : memref<32x512xbf16, #tpu.memory_space<vmem>>, vector<32x256xbf16>
      %c0_22 = arith.constant 0 : index
      %c0_23 = arith.constant 0 : index
      %c0_24 = arith.constant 0 : index
      %45 = vector.load %arg9[%c0_22, %c0_23, %c0_24] : memref<3x1x256xbf16, #tpu.memory_space<vmem>>, vector<1x1x256xbf16>
      %46 = vector.shape_cast %45 : vector<1x1x256xbf16> to vector<1x256xbf16>
      %47 = vector.broadcast %46 : vector<1x256xbf16> to vector<32x256xbf16>
      %48 = arith.mulf %44, %47 : vector<32x256xbf16>
      %c0_25 = arith.constant 0 : index
      %c0_26 = arith.constant 0 : index
      %c0_27 = arith.constant 0 : index
      %49 = vector.load %arg4[%c0_25, %c0_26, %c0_27] : memref<9x32x32xbf16, #tpu.memory_space<vmem>>, vector<1x32x32xbf16>
      %50 = vector.shape_cast %49 : vector<1x32x32xbf16> to vector<32x32xbf16>
      %cst_28 = arith.constant dense<0.000000e+00> : vector<32x256xf32>
      %51 = tpu.matmul %50, %48, %cst_28 {dimension_numbers = #tpu.dot_dimension_numbers<[1], [0], [0], [1], [0, 0, 1, 1], [], []>} : vector<32x32xbf16>, vector<32x256xbf16>, vector<32x256xf32> -> vector<32x256xf32>
      %52 = arith.addf %43, %51 : vector<32x256xf32>
      %c0_29 = arith.constant 0 : index
      %c112 = arith.constant 112 : index
      %53 = vector.load %arg11[%c0_29, %c112] : memref<32x512xbf16, #tpu.memory_space<vmem>>, vector<32x256xbf16>
      %c1_30 = arith.constant 1 : index
      %c0_31 = arith.constant 0 : index
      %c0_32 = arith.constant 0 : index
      %54 = vector.load %arg4[%c1_30, %c0_31, %c0_32] : memref<9x32x32xbf16, #tpu.memory_space<vmem>>, vector<1x32x32xbf16>
      %55 = vector.shape_cast %54 : vector<1x32x32xbf16> to vector<32x32xbf16>
      %cst_33 = arith.constant dense<0.000000e+00> : vector<32x256xf32>
      %56 = tpu.matmul %55, %53, %cst_33 {dimension_numbers = #tpu.dot_dimension_numbers<[1], [0], [0], [1], [0, 0, 1, 1], [], []>} : vector<32x32xbf16>, vector<32x256xbf16>, vector<32x256xf32> -> vector<32x256xf32>
      %57 = arith.addf %52, %56 : vector<32x256xf32>
      %c0_34 = arith.constant 0 : index
      %c113 = arith.constant 113 : index
      %58 = vector.load %arg11[%c0_34, %c113] : memref<32x512xbf16, #tpu.memory_space<vmem>>, vector<32x256xbf16>
      %c2 = arith.constant 2 : index
      %c0_35 = arith.constant 0 : index
      %c0_36 = arith.constant 0 : index
      %59 = vector.load %arg9[%c2, %c0_35, %c0_36] : memref<3x1x256xbf16, #tpu.memory_space<vmem>>, vector<1x1x256xbf16>
      %60 = vector.shape_cast %59 : vector<1x1x256xbf16> to vector<1x256xbf16>
      %61 = vector.broadcast %60 : vector<1x256xbf16> to vector<32x256xbf16>
      %62 = arith.mulf %58, %61 : vector<32x256xbf16>
      %c2_37 = arith.constant 2 : index
      %c0_38 = arith.constant 0 : index
      %c0_39 = arith.constant 0 : index
      %63 = vector.load %arg4[%c2_37, %c0_38, %c0_39] : memref<9x32x32xbf16, #tpu.memory_space<vmem>>, vector<1x32x32xbf16>
      %64 = vector.shape_cast %63 : vector<1x32x32xbf16> to vector<32x32xbf16>
      %cst_40 = arith.constant dense<0.000000e+00> : vector<32x256xf32>
      %65 = tpu.matmul %64, %62, %cst_40 {dimension_numbers = #tpu.dot_dimension_numbers<[1], [0], [0], [1], [0, 0, 1, 1], [], []>} : vector<32x32xbf16>, vector<32x256xbf16>, vector<32x256xf32> -> vector<32x256xf32>
      %66 = arith.addf %57, %65 : vector<32x256xf32>
      %c0_41 = arith.constant 0 : index
      %c127 = arith.constant 127 : index
      %67 = vector.load %arg11[%c0_41, %c127] : memref<32x512xbf16, #tpu.memory_space<vmem>>, vector<32x256xbf16>
      %c0_42 = arith.constant 0 : index
      %c0_43 = arith.constant 0 : index
      %c0_44 = arith.constant 0 : index
      %68 = vector.load %arg9[%c0_42, %c0_43, %c0_44] : memref<3x1x256xbf16, #tpu.memory_space<vmem>>, vector<1x1x256xbf16>
      %69 = vector.shape_cast %68 : vector<1x1x256xbf16> to vector<1x256xbf16>
      %70 = vector.broadcast %69 : vector<1x256xbf16> to vector<32x256xbf16>
      %71 = arith.mulf %67, %70 : vector<32x256xbf16>
      %c3 = arith.constant 3 : index
      %c0_45 = arith.constant 0 : index
      %c0_46 = arith.constant 0 : index
      %72 = vector.load %arg4[%c3, %c0_45, %c0_46] : memref<9x32x32xbf16, #tpu.memory_space<vmem>>, vector<1x32x32xbf16>
      %73 = vector.shape_cast %72 : vector<1x32x32xbf16> to vector<32x32xbf16>
      %cst_47 = arith.constant dense<0.000000e+00> : vector<32x256xf32>
      %74 = tpu.matmul %73, %71, %cst_47 {dimension_numbers = #tpu.dot_dimension_numbers<[1], [0], [0], [1], [0, 0, 1, 1], [], []>} : vector<32x32xbf16>, vector<32x256xbf16>, vector<32x256xf32> -> vector<32x256xf32>
      %75 = arith.addf %66, %74 : vector<32x256xf32>
      %c0_48 = arith.constant 0 : index
      %c128_49 = arith.constant 128 : index
      %76 = vector.load %arg11[%c0_48, %c128_49] : memref<32x512xbf16, #tpu.memory_space<vmem>>, vector<32x256xbf16>
      %c4 = arith.constant 4 : index
      %c0_50 = arith.constant 0 : index
      %c0_51 = arith.constant 0 : index
      %77 = vector.load %arg4[%c4, %c0_50, %c0_51] : memref<9x32x32xbf16, #tpu.memory_space<vmem>>, vector<1x32x32xbf16>
      %78 = vector.shape_cast %77 : vector<1x32x32xbf16> to vector<32x32xbf16>
      %cst_52 = arith.constant dense<0.000000e+00> : vector<32x256xf32>
      %79 = tpu.matmul %78, %76, %cst_52 {dimension_numbers = #tpu.dot_dimension_numbers<[1], [0], [0], [1], [0, 0, 1, 1], [], []>} : vector<32x32xbf16>, vector<32x256xbf16>, vector<32x256xf32> -> vector<32x256xf32>
      %80 = arith.addf %75, %79 : vector<32x256xf32>
      %c0_53 = arith.constant 0 : index
      %c129 = arith.constant 129 : index
      %81 = vector.load %arg11[%c0_53, %c129] : memref<32x512xbf16, #tpu.memory_space<vmem>>, vector<32x256xbf16>
      %c2_54 = arith.constant 2 : index
      %c0_55 = arith.constant 0 : index
      %c0_56 = arith.constant 0 : index
      %82 = vector.load %arg9[%c2_54, %c0_55, %c0_56] : memref<3x1x256xbf16, #tpu.memory_space<vmem>>, vector<1x1x256xbf16>
      %83 = vector.shape_cast %82 : vector<1x1x256xbf16> to vector<1x256xbf16>
      %84 = vector.broadcast %83 : vector<1x256xbf16> to vector<32x256xbf16>
      %85 = arith.mulf %81, %84 : vector<32x256xbf16>
      %c5 = arith.constant 5 : index
      %c0_57 = arith.constant 0 : index
      %c0_58 = arith.constant 0 : index
      %86 = vector.load %arg4[%c5, %c0_57, %c0_58] : memref<9x32x32xbf16, #tpu.memory_space<vmem>>, vector<1x32x32xbf16>
      %87 = vector.shape_cast %86 : vector<1x32x32xbf16> to vector<32x32xbf16>
      %cst_59 = arith.constant dense<0.000000e+00> : vector<32x256xf32>
      %88 = tpu.matmul %87, %85, %cst_59 {dimension_numbers = #tpu.dot_dimension_numbers<[1], [0], [0], [1], [0, 0, 1, 1], [], []>} : vector<32x32xbf16>, vector<32x256xbf16>, vector<32x256xf32> -> vector<32x256xf32>
      %89 = arith.addf %80, %88 : vector<32x256xf32>
      %c0_60 = arith.constant 0 : index
      %c143 = arith.constant 143 : index
      %90 = vector.load %arg11[%c0_60, %c143] : memref<32x512xbf16, #tpu.memory_space<vmem>>, vector<32x256xbf16>
      %c0_61 = arith.constant 0 : index
      %c0_62 = arith.constant 0 : index
      %c0_63 = arith.constant 0 : index
      %91 = vector.load %arg9[%c0_61, %c0_62, %c0_63] : memref<3x1x256xbf16, #tpu.memory_space<vmem>>, vector<1x1x256xbf16>
      %92 = vector.shape_cast %91 : vector<1x1x256xbf16> to vector<1x256xbf16>
      %93 = vector.broadcast %92 : vector<1x256xbf16> to vector<32x256xbf16>
      %94 = arith.mulf %90, %93 : vector<32x256xbf16>
      %c6 = arith.constant 6 : index
      %c0_64 = arith.constant 0 : index
      %c0_65 = arith.constant 0 : index
      %95 = vector.load %arg4[%c6, %c0_64, %c0_65] : memref<9x32x32xbf16, #tpu.memory_space<vmem>>, vector<1x32x32xbf16>
      %96 = vector.shape_cast %95 : vector<1x32x32xbf16> to vector<32x32xbf16>
      %cst_66 = arith.constant dense<0.000000e+00> : vector<32x256xf32>
      %97 = tpu.matmul %96, %94, %cst_66 {dimension_numbers = #tpu.dot_dimension_numbers<[1], [0], [0], [1], [0, 0, 1, 1], [], []>} : vector<32x32xbf16>, vector<32x256xbf16>, vector<32x256xf32> -> vector<32x256xf32>
      %98 = arith.addf %89, %97 : vector<32x256xf32>
      %c0_67 = arith.constant 0 : index
      %c144 = arith.constant 144 : index
      %99 = vector.load %arg11[%c0_67, %c144] : memref<32x512xbf16, #tpu.memory_space<vmem>>, vector<32x256xbf16>
      %c7 = arith.constant 7 : index
      %c0_68 = arith.constant 0 : index
      %c0_69 = arith.constant 0 : index
      %100 = vector.load %arg4[%c7, %c0_68, %c0_69] : memref<9x32x32xbf16, #tpu.memory_space<vmem>>, vector<1x32x32xbf16>
      %101 = vector.shape_cast %100 : vector<1x32x32xbf16> to vector<32x32xbf16>
      %cst_70 = arith.constant dense<0.000000e+00> : vector<32x256xf32>
      %102 = tpu.matmul %101, %99, %cst_70 {dimension_numbers = #tpu.dot_dimension_numbers<[1], [0], [0], [1], [0, 0, 1, 1], [], []>} : vector<32x32xbf16>, vector<32x256xbf16>, vector<32x256xf32> -> vector<32x256xf32>
      %103 = arith.addf %98, %102 : vector<32x256xf32>
      %c0_71 = arith.constant 0 : index
      %c145 = arith.constant 145 : index
      %104 = vector.load %arg11[%c0_71, %c145] : memref<32x512xbf16, #tpu.memory_space<vmem>>, vector<32x256xbf16>
      %c2_72 = arith.constant 2 : index
      %c0_73 = arith.constant 0 : index
      %c0_74 = arith.constant 0 : index
      %105 = vector.load %arg9[%c2_72, %c0_73, %c0_74] : memref<3x1x256xbf16, #tpu.memory_space<vmem>>, vector<1x1x256xbf16>
      %106 = vector.shape_cast %105 : vector<1x1x256xbf16> to vector<1x256xbf16>
      %107 = vector.broadcast %106 : vector<1x256xbf16> to vector<32x256xbf16>
      %108 = arith.mulf %104, %107 : vector<32x256xbf16>
      %c8 = arith.constant 8 : index
      %c0_75 = arith.constant 0 : index
      %c0_76 = arith.constant 0 : index
      %109 = vector.load %arg4[%c8, %c0_75, %c0_76] : memref<9x32x32xbf16, #tpu.memory_space<vmem>>, vector<1x32x32xbf16>
      %110 = vector.shape_cast %109 : vector<1x32x32xbf16> to vector<32x32xbf16>
      %cst_77 = arith.constant dense<0.000000e+00> : vector<32x256xf32>
      %111 = tpu.matmul %110, %108, %cst_77 {dimension_numbers = #tpu.dot_dimension_numbers<[1], [0], [0], [1], [0, 0, 1, 1], [], []>} : vector<32x32xbf16>, vector<32x256xbf16>, vector<32x256xf32> -> vector<32x256xf32>
      %112 = arith.addf %103, %111 : vector<32x256xf32>
      %113 = arith.index_cast %arg1 : i32 to index
      %c0_78 = arith.constant 0 : index
      %c0_79 = arith.constant 0 : index
      %114 = vector.load %arg12[%113, %c0_78, %c0_79] : memref<2x32x256xf32, #tpu.memory_space<vmem>>, vector<1x32x256xf32>
      %115 = vector.shape_cast %114 : vector<1x32x256xf32> to vector<32x256xf32>
      %116 = vector.shape_cast %112 : vector<32x256xf32> to vector<1x32x256xf32>
      tpu.vector_store %arg12[%113, %c0_78, %c0_79], %116 {strides = array<i32>} : memref<2x32x256xf32, #tpu.memory_space<vmem>>, vector<1x32x256xf32>,
      %c0_i32_80 = arith.constant 0 : i32
      %117 = arith.cmpi eq, %arg1, %c0_i32_80 : i32
      %118 = arith.extui %117 : i1 to i32
      %c0_i32_81 = arith.constant 0 : i32
      %119 = arith.cmpi ne, %118, %c0_i32_81 : i32
      scf.if %119 {
        %cst_96 = arith.constant 0.000000e+00 : f32
        %137 = vector.broadcast %cst_96 : f32 to vector<2x32x1xf32>
        %c0_97 = arith.constant 0 : index
        %c0_98 = arith.constant 0 : index
        %c0_99 = arith.constant 0 : index
        %138 = vector.load %arg14[%c0_97, %c0_98, %c0_99] : memref<2x32x1xf32, #tpu.memory_space<vmem>>, vector<2x32x1xf32>
        tpu.vector_store %arg14[%c0_97, %c0_98, %c0_99], %137 {strides = array<i32>} : memref<2x32x1xf32, #tpu.memory_space<vmem>>, vector<2x32x1xf32>,
      } else {
      }
      %c0_82 = arith.constant 0 : index
      %c0_83 = arith.constant 0 : index
      %c0_84 = arith.constant 0 : index
      %120 = vector.load %arg14[%c0_82, %c0_83, %c0_84] : memref<2x32x1xf32, #tpu.memory_space<vmem>>, vector<1x32x1xf32>
      %121 = vector.shape_cast %120 : vector<1x32x1xf32> to vector<32x1xf32>
      %cst_85 = arith.constant dense<0.000000e+00> : vector<32xf32>
      %122 = vector.multi_reduction <add>, %112, %cst_85 [1] : vector<32x256xf32> to vector<32xf32>
      %123 = vector.shape_cast %122 : vector<32xf32> to vector<32x1xf32>
      %124 = arith.addf %121, %123 : vector<32x1xf32>
      %c0_86 = arith.constant 0 : index
      %c0_87 = arith.constant 0 : index
      %c0_88 = arith.constant 0 : index
      %125 = vector.load %arg14[%c0_86, %c0_87, %c0_88] : memref<2x32x1xf32, #tpu.memory_space<vmem>>, vector<1x32x1xf32>
      %126 = vector.shape_cast %125 : vector<1x32x1xf32> to vector<32x1xf32>
      %127 = vector.shape_cast %124 : vector<32x1xf32> to vector<1x32x1xf32>
      tpu.vector_store %arg14[%c0_86, %c0_87, %c0_88], %127 {strides = array<i32>} : memref<2x32x1xf32, #tpu.memory_space<vmem>>, vector<1x32x1xf32>,
      %c1_89 = arith.constant 1 : index
      %c0_90 = arith.constant 0 : index
      %c0_91 = arith.constant 0 : index
      %128 = vector.load %arg14[%c1_89, %c0_90, %c0_91] : memref<2x32x1xf32, #tpu.memory_space<vmem>>, vector<1x32x1xf32>
      %129 = vector.shape_cast %128 : vector<1x32x1xf32> to vector<32x1xf32>
      %130 = arith.mulf %112, %112 : vector<32x256xf32>
      %cst_92 = arith.constant dense<0.000000e+00> : vector<32xf32>
      %131 = vector.multi_reduction <add>, %130, %cst_92 [1] : vector<32x256xf32> to vector<32xf32>
      %132 = vector.shape_cast %131 : vector<32xf32> to vector<32x1xf32>
      %133 = arith.addf %129, %132 : vector<32x1xf32>
      %c1_93 = arith.constant 1 : index
      %c0_94 = arith.constant 0 : index
      %c0_95 = arith.constant 0 : index
      %134 = vector.load %arg14[%c1_93, %c0_94, %c0_95] : memref<2x32x1xf32, #tpu.memory_space<vmem>>, vector<1x32x1xf32>
      %135 = vector.shape_cast %134 : vector<1x32x1xf32> to vector<32x1xf32>
      %136 = vector.shape_cast %133 : vector<32x1xf32> to vector<1x32x1xf32>
      tpu.vector_store %arg14[%c1_93, %c0_94, %c0_95], %136 {strides = array<i32>} : memref<2x32x1xf32, #tpu.memory_space<vmem>>, vector<1x32x1xf32>,
    } else {
    }
    %c2_i32 = arith.constant 2 : i32
    %11 = arith.cmpi eq, %arg0, %c2_i32 : i32
    %12 = arith.extui %11 : i1 to i32
    %c0_i32_5 = arith.constant 0 : i32
    %13 = arith.cmpi ne, %12, %c0_i32_5 : i32
    scf.if %13 {
      %c0 = arith.constant 0 : index
      %c0_6 = arith.constant 0 : index
      %c0_7 = arith.constant 0 : index
      %14 = vector.load %arg14[%c0, %c0_6, %c0_7] : memref<2x32x1xf32, #tpu.memory_space<vmem>>, vector<1x32x1xf32>
      %15 = vector.shape_cast %14 : vector<1x32x1xf32> to vector<32x1xf32>
      %cst = arith.constant 0.001953125 : f32
      %16 = vector.broadcast %cst : f32 to vector<32x1xf32>
      %17 = arith.mulf %15, %16 : vector<32x1xf32>
      %c1 = arith.constant 1 : index
      %c0_8 = arith.constant 0 : index
      %c0_9 = arith.constant 0 : index
      %18 = vector.load %arg14[%c1, %c0_8, %c0_9] : memref<2x32x1xf32, #tpu.memory_space<vmem>>, vector<1x32x1xf32>
      %19 = vector.shape_cast %18 : vector<1x32x1xf32> to vector<32x1xf32>
      %cst_10 = arith.constant 0.001953125 : f32
      %20 = vector.broadcast %cst_10 : f32 to vector<32x1xf32>
      %21 = arith.mulf %19, %20 : vector<32x1xf32>
      %22 = arith.mulf %17, %17 : vector<32x1xf32>
      %23 = arith.subf %21, %22 : vector<32x1xf32>
      %c0_11 = arith.constant 0 : index
      %c0_12 = arith.constant 0 : index
      %24 = vector.load %arg7[%c0_11, %c0_12] : memref<32x1xf32, #tpu.memory_space<vmem>>, vector<32x1xf32>
      %cst_13 = arith.constant 9.99999974E-6 : f32
      %25 = vector.broadcast %cst_13 : f32 to vector<32x1xf32>
      %26 = arith.addf %23, %25 : vector<32x1xf32>
      %27 = math.rsqrt %26 : vector<32x1xf32>
      %28 = arith.mulf %24, %27 : vector<32x1xf32>
      %c0_14 = arith.constant 0 : index
      %c0_15 = arith.constant 0 : index
      %29 = vector.load %arg8[%c0_14, %c0_15] : memref<32x1xf32, #tpu.memory_space<vmem>>, vector<32x1xf32>
      %30 = arith.mulf %17, %28 : vector<32x1xf32>
      %31 = arith.subf %29, %30 : vector<32x1xf32>
      %32 = arith.index_cast %arg1 : i32 to index
      %c0_16 = arith.constant 0 : index
      %c0_17 = arith.constant 0 : index
      %33 = vector.load %arg12[%32, %c0_16, %c0_17] : memref<2x32x256xf32, #tpu.memory_space<vmem>>, vector<1x32x256xf32>
      %34 = vector.shape_cast %33 : vector<1x32x256xf32> to vector<32x256xf32>
      %35 = vector.broadcast %28 : vector<32x1xf32> to vector<32x256xf32>
      %36 = arith.mulf %34, %35 : vector<32x256xf32>
      %37 = vector.broadcast %31 : vector<32x1xf32> to vector<32x256xf32>
      %38 = arith.addf %36, %37 : vector<32x256xf32>
      %c0_18 = arith.constant 0 : index
      %c0_19 = arith.constant 0 : index
      %c0_20 = arith.constant 0 : index
      %39 = vector.load %arg10[%c0_18, %c0_19, %c0_20] : memref<1x32x256xf32, #tpu.memory_space<vmem>>, vector<1x32x256xf32>
      %40 = vector.shape_cast %39 : vector<1x32x256xf32> to vector<32x256xf32>
      %41 = vector.shape_cast %38 : vector<32x256xf32> to vector<1x32x256xf32>
      tpu.vector_store %arg10[%c0_18, %c0_19, %c0_20], %41 {strides = array<i32>} : memref<1x32x256xf32, #tpu.memory_space<vmem>>, vector<1x32x256xf32>,
    } else {
    }
    return
  }
  func.func @transform_0(%arg0: i32, %arg1: i32) -> (i32, i32, i32) {
    %c0_i32 = arith.constant 0 : i32
    %c0_i32_0 = arith.constant 0 : i32
    %c0_i32_1 = arith.constant 0 : i32
    return %arg1, %c0_i32, %c0_i32_0 : i32, i32, i32
  }
  func.func @transform_1(%arg0: i32, %arg1: i32) -> (i32, i32, i32) {
    %c0_i32 = arith.constant 0 : i32
    %c0_i32_0 = arith.constant 0 : i32
    %c0_i32_1 = arith.constant 0 : i32
    %c0_i32_2 = arith.constant 0 : i32
    return %c0_i32, %c0_i32_0, %c0_i32_1 : i32, i32, i32
  }
  func.func @transform_2(%arg0: i32, %arg1: i32) -> (i32, i32, i32) {
    %c0_i32 = arith.constant 0 : i32
    %c0_i32_0 = arith.constant 0 : i32
    %c0_i32_1 = arith.constant 0 : i32
    %c0_i32_2 = arith.constant 0 : i32
    return %c0_i32, %c0_i32_0, %c0_i32_1 : i32, i32, i32
  }
  func.func @transform_3(%arg0: i32, %arg1: i32) -> (i32, i32) {
    %c0_i32 = arith.constant 0 : i32
    %c0_i32_0 = arith.constant 0 : i32
    %c0_i32_1 = arith.constant 0 : i32
    return %c0_i32, %c0_i32_0 : i32, i32
  }
  func.func @transform_4(%arg0: i32, %arg1: i32) -> (i32, i32) {
    %c0_i32 = arith.constant 0 : i32
    %c0_i32_0 = arith.constant 0 : i32
    %c0_i32_1 = arith.constant 0 : i32
    return %c0_i32, %c0_i32_0 : i32, i32
  }
  func.func @transform_5(%arg0: i32, %arg1: i32) -> (i32, i32) {
    %c0_i32 = arith.constant 0 : i32
    %c0_i32_0 = arith.constant 0 : i32
    %c0_i32_1 = arith.constant 0 : i32
    return %c0_i32, %c0_i32_0 : i32, i32
  }
  func.func @transform_6(%arg0: i32, %arg1: i32) -> (i32, i32) {
    %c0_i32 = arith.constant 0 : i32
    %c0_i32_0 = arith.constant 0 : i32
    %c0_i32_1 = arith.constant 0 : i32
    return %c0_i32, %c0_i32_0 : i32, i32
  }
  func.func @transform_7(%arg0: i32, %arg1: i32) -> (i32, i32, i32) {
    %c0_i32 = arith.constant 0 : i32
    %c0_i32_0 = arith.constant 0 : i32
    %c0_i32_1 = arith.constant 0 : i32
    %c0_i32_2 = arith.constant 0 : i32
    return %c0_i32, %c0_i32_0, %c0_i32_1 : i32, i32, i32
  }
  func.func @transform_8(%arg0: i32, %arg1: i32) -> (i32, i32, i32) {
    %c0_i32 = arith.constant 0 : i32
    %c0_i32_0 = arith.constant 0 : i32
    %c0_i32_1 = arith.constant 0 : i32
    return %arg1, %c0_i32, %c0_i32_0 : i32, i32, i32
  }
}

</mosaic_0001>

<llo_original>
// kernel: residual_block_forward.1
$region0: #{residual_block_forward.1}
  #allocation0 [shape = 'u32[]', space=smem, size = 0x4, offset = 0x4, fixed_abs, tag = 'smem constant byte address 0x4 - core index']
  #allocation1 [shape = 'u32[144,128]{1,0:T(1,128)}', space=vmem, size = 0x12000, scoped, tag = 'internal scratch']
  #allocation2 [shape = 'bf16[32,512]{1,0:T(16,128)(2,1)}', space=vmem, size = 0x8000, scoped, tag = 'scratch operand']
  #allocation3 [shape = 'f32[2,32,256]{2,1,0:T(8,128)}', space=vmem, size = 0x10000, scoped, tag = 'scratch operand']
  #allocation4 [shape = 'f32[2,32,1]{2,1,0:T(8,128)}', space=vmem, size = 0x8000, scoped, tag = 'scratch operand']
  #allocation5 [shape = 'f32[2,32,1]{2,1,0:T(8,128)}', space=vmem, size = 0x8000, scoped, tag = 'scratch operand']
  %s0 = inlined_call_operand.vmem [shape: bf16[2,4,256], index: 0, kind: input, shape index: {}]
  %s1 = inlined_call_operand.vmem [shape: bf16[9,32,4], index: 1, kind: input, shape index: {}]
  %s2 = inlined_call_operand.vmem [shape: bf16[9,32,32], index: 2, kind: input, shape index: {}]
  %s3 = inlined_call_operand.vmem [shape: f32[32,1], index: 3, kind: input, shape index: {}]
  %s4 = inlined_call_operand.vmem [shape: f32[32,1], index: 4, kind: input, shape index: {}]
  %s5 = inlined_call_operand.vmem [shape: f32[32,1], index: 5, kind: input, shape index: {}]
  %s6 = inlined_call_operand.vmem [shape: f32[32,1], index: 6, kind: input, shape index: {}]
  %s7 = inlined_call_operand.vmem [shape: bf16[3,1,256], index: 7, kind: input, shape index: {}]
  %s8 = inlined_call_operand.vmem [shape: f32[2,32,256], index: 8, kind: output, shape index: {}]
  %s9 = sld [smem:[#allocation0]]
  $region89: #{residual_block_forward.1} parent=0
    _
  %s11 = ssub.s32 1, %s9
  %s12 = scalar_select 0, %s11, %s9
  loop: start=0, step=1, limit=8
  $region2: #{residual_block_forward.1} parent=0 // loop_pre_header
    _
  $region3: #{residual_block_forward.1} parent=0 // loop_header
    %s14 = sphi 0, %s18
    %p15 = scmp.ge.s32.totalorder %s14, 8
    %s21 = sphi 0, %s33
    %s22 = sphi 0, %s29
    %s23 = sphi 0, %s21
    %s24 = sphi 0, %s22
    %s25 = sphi 0, %s23
    %s26 = sphi 0, %s24
    %s36 = sphi 0, %s38
    %s39 = sphi 0, %s36
    %s40 = sphi 0, %s39
    %s56 = sphi 0, %s40
    %s60 = sphi 0, %s60
    %s62 = sphi 0, %s60
    %s63 = sphi 0, %s62
    %s77 = sphi 0, %s63
    %s81 = sphi 0, %s81
    %s83 = sphi 0, %s81
    %s84 = sphi 0, %s83
    %s98 = sphi 0, %s84
    %s102 = sphi 0, %s102
    %s104 = sphi 0, %s102
    %s105 = sphi 0, %s104
    %s119 = sphi 0, %s105
    %s123 = sphi 0, %s123
    %s125 = sphi 0, %s123
    %s126 = sphi 0, %s125
    %s140 = sphi 0, %s126
    %s144 = sphi 0, %s144
    %s146 = sphi 0, %s144
    %s147 = sphi 0, %s146
    %s161 = sphi 0, %s147
    %s165 = sphi 0, %s165
    %s167 = sphi 0, %s165
    %s168 = sphi 0, %s167
    %s182 = sphi 0, %s168
    %s186 = sphi 0, %s186
    %s188 = sphi 0, %s186
    %s189 = sphi 0, %s188
    %s203 = sphi 0, %s189
    %s209 = sphi 0, %s211
    %s212 = sphi 0, %s209
    %s213 = sphi 0, %s212
    %s229 = sphi 0, %s213
  $region4: #{residual_block_forward.1} parent=0 // loop_header_branch
    %17 = sbr.rel (%p15) target = $region8
  $region5: #{residual_block_forward.1} parent=0 // loop_body
    %s19 = ssub.s32 %s14, 1
    %s20 = ssub.s32 %s14, 2
    %s27 = sadd.s32 1, %s22
    %p28 = scmp.ge.s32.totalorder %s27, 2
    %s29 = scalar_select %p28, 0, %s27
    %s30 = sadd.s32 1, %s21
    %s31 = scalar_select %p28, %s30, %s21
    %p32 = scmp.ge.s32.totalorder %s31, 3
    %s33 = scalar_select %p32, 0, %s31
    %s34 = ssub.s32 %s22, %s29
    %p35 = scmp.eq.s32.totalorder %s34, 0
    %s37 = sadd.s32 %s36, 1
    %s38 = scalar_select %p35, %s36, %s37
    %p41 = pneg %p35
    %p42 = scmp.eq.s32.totalorder %s14, 5
    %p43 = por %p41, %p42
    %p44 = scmp.ne.s32.totalorder %s36, %s39
    %p45 = scmp.eq.s32.totalorder %s14, 0
    %p46 = por %p44, %p45
    %p47 = scmp.ne.s32.totalorder %s36, %s39
    %p48 = scmp.eq.s32.totalorder %s19, 5
    %p49 = por %p47, %p48
    %p50 = scmp.ne.s32.totalorder %s39, %s40
    %p51 = scmp.eq.s32.totalorder %s19, 0
    %p52 = por %p50, %p51
    %p53 = scmp.ne.s32.totalorder %s39, %s40
    %p54 = scmp.eq.s32.totalorder %s20, 5
    %p55 = por %p53, %p54
    %p57 = scmp.ne.s32.totalorder %s40, %s56
    %p58 = scmp.eq.s32.totalorder %s20, 0
    %p59 = por %p57, %p58
    %s61 = sadd.s32 %s60, 1
    %p64 = scmp.eq.s32.totalorder %s14, 5
    %p65 = scmp.ne.s32.totalorder %s60, %s62
    %p66 = scmp.eq.s32.totalorder %s14, 0
    %p67 = por %p65, %p66
    %p68 = scmp.ne.s32.totalorder %s60, %s62
    %p69 = scmp.eq.s32.totalorder %s19, 5
    %p70 = por %p68, %p69
    %p71 = scmp.ne.s32.totalorder %s62, %s63
    %p72 = scmp.eq.s32.totalorder %s19, 0
    %p73 = por %p71, %p72
    %p74 = scmp.ne.s32.totalorder %s62, %s63
    %p75 = scmp.eq.s32.totalorder %s20, 5
    %p76 = por %p74, %p75
    %p78 = scmp.ne.s32.totalorder %s63, %s77
    %p79 = scmp.eq.s32.totalorder %s20, 0
    %p80 = por %p78, %p79
    %s82 = sadd.s32 %s81, 1
    %p85 = scmp.eq.s32.totalorder %s14, 5
    %p86 = scmp.ne.s32.totalorder %s81, %s83
    %p87 = scmp.eq.s32.totalorder %s14, 0
    %p88 = por %p86, %p87
    %p89 = scmp.ne.s32.totalorder %s81, %s83
    %p90 = scmp.eq.s32.totalorder %s19, 5
    %p91 = por %p89, %p90
    %p92 = scmp.ne.s32.totalorder %s83, %s84
    %p93 = scmp.eq.s32.totalorder %s19, 0
    %p94 = por %p92, %p93
    %p95 = scmp.ne.s32.totalorder %s83, %s84
    %p96 = scmp.eq.s32.totalorder %s20, 5
    %p97 = por %p95, %p96
    %p99 = scmp.ne.s32.totalorder %s84, %s98
    %p100 = scmp.eq.s32.totalorder %s20, 0
    %p101 = por %p99, %p100
    %s103 = sadd.s32 %s102, 1
    %p106 = scmp.eq.s32.totalorder %s14, 5
    %p107 = scmp.ne.s32.totalorder %s102, %s104
    %p108 = scmp.eq.s32.totalorder %s14, 0
    %p109 = por %p107, %p108
    %p110 = scmp.ne.s32.totalorder %s102, %s104
    %p111 = scmp.eq.s32.totalorder %s19, 5
    %p112 = por %p110, %p111
    %p113 = scmp.ne.s32.totalorder %s104, %s105
    %p114 = scmp.eq.s32.totalorder %s19, 0
    %p115 = por %p113, %p114
    %p116 = scmp.ne.s32.totalorder %s104, %s105
    %p117 = scmp.eq.s32.totalorder %s20, 5
    %p118 = por %p116, %p117
    %p120 = scmp.ne.s32.totalorder %s105, %s119
    %p121 = scmp.eq.s32.totalorder %s20, 0
    %p122 = por %p120, %p121
    %s124 = sadd.s32 %s123, 1
    %p127 = scmp.eq.s32.totalorder %s14, 5
    %p128 = scmp.ne.s32.totalorder %s123, %s125
    %p129 = scmp.eq.s32.totalorder %s14, 0
    %p130 = por %p128, %p129
    %p131 = scmp.ne.s32.totalorder %s123, %s125
    %p132 = scmp.eq.s32.totalorder %s19, 5
    %p133 = por %p131, %p132
    %p134 = scmp.ne.s32.totalorder %s125, %s126
    %p135 = scmp.eq.s32.totalorder %s19, 0
    %p136 = por %p134, %p135
    %p137 = scmp.ne.s32.totalorder %s125, %s126
    %p138 = scmp.eq.s32.totalorder %s20, 5
    %p139 = por %p137, %p138
    %p141 = scmp.ne.s32.totalorder %s126, %s140
    %p142 = scmp.eq.s32.totalorder %s20, 0
    %p143 = por %p141, %p142
    %s145 = sadd.s32 %s144, 1
    %p148 = scmp.eq.s32.totalorder %s14, 5
    %p149 = scmp.ne.s32.totalorder %s144, %s146
    %p150 = scmp.eq.s32.totalorder %s14, 0
    %p151 = por %p149, %p150
    %p152 = scmp.ne.s32.totalorder %s144, %s146
    %p153 = scmp.eq.s32.totalorder %s19, 5
    %p154 = por %p152, %p153
    %p155 = scmp.ne.s32.totalorder %s146, %s147
    %p156 = scmp.eq.s32.totalorder %s19, 0
    %p157 = por %p155, %p156
    %p158 = scmp.ne.s32.totalorder %s146, %s147
    %p159 = scmp.eq.s32.totalorder %s20, 5
    %p160 = por %p158, %p159
    %p162 = scmp.ne.s32.totalorder %s147, %s161
    %p163 = scmp.eq.s32.totalorder %s20, 0
    %p164 = por %p162, %p163
    %s166 = sadd.s32 %s165, 1
    %p169 = scmp.eq.s32.totalorder %s14, 5
    %p170 = scmp.ne.s32.totalorder %s165, %s167
    %p171 = scmp.eq.s32.totalorder %s14, 0
    %p172 = por %p170, %p171
    %p173 = scmp.ne.s32.totalorder %s165, %s167
    %p174 = scmp.eq.s32.totalorder %s19, 5
    %p175 = por %p173, %p174
    %p176 = scmp.ne.s32.totalorder %s167, %s168
    %p177 = scmp.eq.s32.totalorder %s19, 0
    %p178 = por %p176, %p177
    %p179 = scmp.ne.s32.totalorder %s167, %s168
    %p180 = scmp.eq.s32.totalorder %s20, 5
    %p181 = por %p179, %p180
    %p183 = scmp.ne.s32.totalorder %s168, %s182
    %p184 = scmp.eq.s32.totalorder %s20, 0
    %p185 = por %p183, %p184
    %s187 = sadd.s32 %s186, 1
    %p190 = scmp.eq.s32.totalorder %s14, 5
    %p191 = scmp.ne.s32.totalorder %s186, %s188
    %p192 = scmp.eq.s32.totalorder %s14, 0
    %p193 = por %p191, %p192
    %p194 = scmp.ne.s32.totalorder %s186, %s188
    %p195 = scmp.eq.s32.totalorder %s19, 5
    %p196 = por %p194, %p195
    %p197 = scmp.ne.s32.totalorder %s188, %s189
    %p198 = scmp.eq.s32.totalorder %s19, 0
    %p199 = por %p197, %p198
    %p200 = scmp.ne.s32.totalorder %s188, %s189
    %p201 = scmp.eq.s32.totalorder %s20, 5
    %p202 = por %p200, %p201
    %p204 = scmp.ne.s32.totalorder %s189, %s203
    %p205 = scmp.eq.s32.totalorder %s20, 0
    %p206 = por %p204, %p205
    %s207 = ssub.s32 %s22, %s29
    %p208 = scmp.eq.s32.totalorder %s207, 0
    %s210 = sadd.s32 %s209, 1
    %s211 = scalar_select %p208, %s209, %s210
    %p214 = pneg %p208
    %p215 = scmp.eq.s32.totalorder %s14, 5
    %p216 = por %p214, %p215
    %p217 = scmp.ne.s32.totalorder %s209, %s212
    %p218 = scmp.eq.s32.totalorder %s14, 0
    %p219 = por %p217, %p218
    %p220 = scmp.ne.s32.totalorder %s209, %s212
    %p221 = scmp.eq.s32.totalorder %s19, 5
    %p222 = por %p220, %p221
    %p223 = scmp.ne.s32.totalorder %s212, %s213
    %p224 = scmp.eq.s32.totalorder %s19, 0
    %p225 = por %p223, %p224
    %p226 = scmp.ne.s32.totalorder %s212, %s213
    %p227 = scmp.eq.s32.totalorder %s20, 5
    %p228 = por %p226, %p227
    %p230 = scmp.ne.s32.totalorder %s213, %s229
    %p231 = scmp.eq.s32.totalorder %s20, 0
    %p232 = por %p230, %p231
    %p233 = scmp.le.s32.totalorder 1, %s14
    %p234 = scmp.lt.s32.totalorder %s14, 7
    %p235 = pnand %p233, %p234
    %p236 = pneg %p235
    // Predicated region
    $region9: #{residual_block_forward.1} parent=5 // pred_check
      _
    $region10: #{residual_block_forward.1} parent=5 // pred_check_branch
      %238 = sbr.rel (%p235) target = $region12
    $region11: #{residual_block_forward.1} parent=5 // pred_region
      %s239 = ssub.s32 %s14, 1
      // Predicated region
      $region13: #{residual_block_forward.1} parent=11 // pred_check
        %p240 = pneg %p73
      $region14: #{residual_block_forward.1} parent=11 // pred_check_branch
        %242 = sbr.rel (%p240) target = $region16
      $region15: #{residual_block_forward.1} parent=11 // pred_region
        _
      $region16: #{residual_block_forward.1} parent=11 // pred_fallthru
        _
      // Predicated region
      $region17: #{residual_block_forward.1} parent=11 // pred_check
        %p243 = pneg %p94
      $region18: #{residual_block_forward.1} parent=11 // pred_check_branch
        %245 = sbr.rel (%p243) target = $region20
      $region19: #{residual_block_forward.1} parent=11 // pred_region
        _
      $region20: #{residual_block_forward.1} parent=11 // pred_fallthru
        _
      // Predicated region
      $region21: #{residual_block_forward.1} parent=11 // pred_check
        %p246 = pneg %p115
      $region22: #{residual_block_forward.1} parent=11 // pred_check_branch
        %248 = sbr.rel (%p246) target = $region24
      $region23: #{residual_block_forward.1} parent=11 // pred_region
        _
      $region24: #{residual_block_forward.1} parent=11 // pred_fallthru
        _
      // Predicated region
      $region25: #{residual_block_forward.1} parent=11 // pred_check
        %p249 = pneg %p136
      $region26: #{residual_block_forward.1} parent=11 // pred_check_branch
        %251 = sbr.rel (%p249) target = $region28
      $region27: #{residual_block_forward.1} parent=11 // pred_region
        _
      $region28: #{residual_block_forward.1} parent=11 // pred_fallthru
        _
      // Predicated region
      $region29: #{residual_block_forward.1} parent=11 // pred_check
        %p252 = pneg %p157
      $region30: #{residual_block_forward.1} parent=11 // pred_check_branch
        %254 = sbr.rel (%p252) target = $region32
      $region31: #{residual_block_forward.1} parent=11 // pred_region
        _
      $region32: #{residual_block_forward.1} parent=11 // pred_fallthru
        _
      // Predicated region
      $region33: #{residual_block_forward.1} parent=11 // pred_check
        %p255 = pneg %p178
      $region34: #{residual_block_forward.1} parent=11 // pred_check_branch
        %257 = sbr.rel (%p255) target = $region36
      $region35: #{residual_block_forward.1} parent=11 // pred_region
        _
      $region36: #{residual_block_forward.1} parent=11 // pred_fallthru
        _
      // Predicated region
      $region37: #{residual_block_forward.1} parent=11 // pred_check
        %p258 = pneg %p199
      $region38: #{residual_block_forward.1} parent=11 // pred_check_branch
        %260 = sbr.rel (%p258) target = $region40
      $region39: #{residual_block_forward.1} parent=11 // pred_region
        _
      $region40: #{residual_block_forward.1} parent=11 // pred_fallthru
        _
    $region12: #{residual_block_forward.1} parent=5 // pred_fallthru
      _
    %p261 = scmp.lt.s32.totalorder %s14, 6
    // Predicated region
    $region41: #{residual_block_forward.1} parent=5 // pred_check
      %p262 = pneg %p261
    $region42: #{residual_block_forward.1} parent=5 // pred_check_branch
      %264 = sbr.rel (%p262) target = $region44
    $region43: #{residual_block_forward.1} parent=5 // pred_region
      // Predicated region
      $region45: #{residual_block_forward.1} parent=43 // pred_check
        %p265 = pneg %p46
      $region46: #{residual_block_forward.1} parent=43 // pred_check_branch
        %267 = sbr.rel (%p265) target = $region48
      $region47: #{residual_block_forward.1} parent=43 // pred_region
        %p268 = scmp.lt.s32.totalorder %s22, 1
        %s269 = scalar_select %p268, %s22, 1
        %s270 = smul.addr %s269, 2
        %s271 = smul.addr %s270, 2
        %s272 = scalar_lea.vmem %s0, %s271
      $region48: #{residual_block_forward.1} parent=43 // pred_fallthru
        _
    $region44: #{residual_block_forward.1} parent=5 // pred_fallthru
      _
    %p273 = scmp.le.s32.totalorder 1, %s14
    %p274 = scmp.lt.s32.totalorder %s14, 7
    %p275 = pnand %p273, %p274
    %p276 = pneg %p275
    // Predicated region
    $region49: #{residual_block_forward.1} parent=5 // pred_check
      _
    $region50: #{residual_block_forward.1} parent=5 // pred_check_branch
      %278 = sbr.rel (%p275) target = $region52
    $region51: #{residual_block_forward.1} parent=5 // pred_region
      %s279 = ssub.s32 %s14, 1
      %p280 = scmp.lt.s32.totalorder %s24, 1
      %s281 = scalar_select %p280, %s24, 1
      %s282 = smul.addr %s281, 2
      %s283 = smul.addr %s282, 2
      %s284 = scalar_lea.vmem %s0, %s283
      %p285 = pneg %p52
      %p286 = pneg %p49
      %p287 = pneg %p73
      %p288 = pneg %p70
      %p289 = pneg %p94
      %p290 = pneg %p91
      %p291 = pneg %p115
      %p292 = pneg %p112
      %p293 = pneg %p136
      %p294 = pneg %p133
      %p295 = pneg %p157
      %p296 = pneg %p154
      %p297 = pneg %p178
      %p298 = pneg %p175
      %p299 = pneg %p199
      %p300 = pneg %p196
      %p301 = pneg %p225
      %p302 = pneg %p222
      %p303 = scmp.lt.s32.totalorder %s24, 1
      %s304 = scalar_select %p303, %s24, 1
      %s305 = smul.addr %s304, 8
      %s306 = smul.addr %s305, 8
      %s307 = scalar_lea.vmem %s8, %s306
      %p308 = scmp.lt.s32.totalorder %s24, 1
      %s309 = scalar_select %p308, %s24, 1
      %s310 = smul.addr %s309, 2
      %s311 = smul.addr %s310, 2
      %s312 = scalar_lea.vmem %s0, %s311
      %p313 = scmp.lt.s32.totalorder %s24, 1
      %s314 = scalar_select %p313, %s24, 1
      %s315 = smul.addr %s314, 8
      %s316 = smul.addr %s315, 8
      %s317 = scalar_lea.vmem %s8, %s316
      %p319 = scmp.eq.s32.totalorder %s23, 0
      %p320 = scmp.eq.s32.totalorder %s24, 0
      %p321 = pnand %p319, %p320
      %p322 = pneg %p321
      // Predicated region
      $region53: #{residual_block_forward.1} parent=51 // pred_check
        _
      $region54: #{residual_block_forward.1} parent=51 // pred_check_branch
        %324 = sbr.rel (%p321) target = $region56
      $region55: #{residual_block_forward.1} parent=51 // pred_region
        %325 = vst [vmem:[#allocation2] sm:$0xff] 0
        %326 = vst [vmem:[#allocation2 + $0x20] sm:$0xff] 0
        %327 = vst [vmem:[#allocation2 + $0x18] sm:$0xff] 0
        %328 = vst [vmem:[#allocation2 + $0x38] sm:$0xff] 0
      $region56: #{residual_block_forward.1} parent=51 // pred_fallthru
        _
      // Predicated region
      $region57: #{residual_block_forward.1} parent=51 // pred_check
        %p329 = pneg %p319
      $region58: #{residual_block_forward.1} parent=51 // pred_check_branch
        %331 = sbr.rel (%p329) target = $region60
      $region59: #{residual_block_forward.1} parent=51 // pred_region
        %v332 = vld [vmem:[%s312] sm:$0xf]
        %v335 = vunpack.c.l.s4 1983009808
        %v336 = vunpack.c.0.s8 %v335
        %v337 = vlaneseq
        %v338 = vshrl.u32 %v337, 7
        %v339 = vsub.s32 %v336, %v338
        %v340 = vrot.slane %v332, %v339
        %v341 = vcombine.high %v340, %v340
        %344 = vst [vmem:[#allocation2 + $0x8] sm:$0x3] %v340
        %345 = vst [vmem:[#allocation2 + $0x10] sm:$0x3] %v341
        %v346 = vld [vmem:[#allocation2] sm:$0x3]
        %v347 = vld [vmem:[#allocation2 + $0x8] sm:$0x3]
        %v348 = vld [vmem:[#allocation2 + $0x10] sm:$0x3]
        %v349 = vld [vmem:[%s7] sm:$0x3]
        %v352 = vunpack.c.l.s4 1966171168
        %v353 = vunpack.c.0.s8 %v352
        %v354 = vlaneseq
        %v355 = vshrl.u32 %v354, 7
        %v356 = vsub.s32 %v353, %v355
        %v357 = vrot.slane %v349, %v356
        %v358 = vcombine.high %v357, %v357
        %v360 = vunpack.c.l.s4 1966171168
        %v361 = vunpack.c.0.s8 %v360
        %v362 = vlaneseq
        %v363 = vshrl.u32 %v362, 7
        %v364 = vsub.s32 %v361, %v363
        %v365 = vrot.slane %v357, %v364
        %v367 = vunpack.c.l.s4 1966171168
        %v368 = vunpack.c.0.s8 %v367
        %v369 = vlaneseq
        %v370 = vshrl.u32 %v369, 7
        %v371 = vsub.s32 %v368, %v370
        %v372 = vrot.slane %v358, %v371
        %v374 = vpack.i.b16 %v365, %v365
        %v376 = vlaneseq
        %v377 = vshrl.u32 %v376, 7
        %v378 = vsub.s32 0, %v377
        %v379 = vrot.slane %v374, %v378
        %v381 = vpack.i.b16 %v372, %v372
        %v383 = vlaneseq
        %v384 = vshrl.u32 %v383, 7
        %v385 = vsub.s32 0, %v384
        %v386 = vrot.slane %v381, %v385
        %389 = vrot.lane.b32.xlu0 %v379, 111
        %v390 = vpop.permute.xlu0 %389
        %391 = vrot.lane.b32.xlu0 %v386, 111
        %v392 = vpop.permute.xlu0 %391
        %vm393 = vcmask 908288
        %v394 = vsel %vm393, %v390, %v392
        %v398 = vmul.bf16 %v346, %v390
        %v399 = vmul.bf16 %v347, %v394
        %v400 = vmul.bf16 %v348, %v392
        %v401 = vld [vmem:[%s1] sm:$0xf]
        %v402 = vld [vmem:[%s1 + $0x4] sm:$0xf]
        %v403 = vld [vmem:[%s1 + $0x8] sm:$0xf]
        %v404 = vld [vmem:[%s1 + $0xc] sm:$0xf]
        %s405 = scalar_lea.vmem %s1, 16
        %v406 = vld [vmem:[%s405] sm:$0xf]
        %v407 = vld [vmem:[%s405 + $0x4] sm:$0xf]
        %v408 = vld [vmem:[%s405 + $0x8] sm:$0xf]
        %v409 = vld [vmem:[%s405 + $0xc] sm:$0xf]
        %v414 = vunpack.c.l.b16 %v406
        %v415 = vunpack.c.l.b16 %v407
        %v416 = vunpack.c.l.b16 %v408
        %v417 = vunpack.c.l.b16 %v409
        %v418 = vpack.c.b16 %v415, %v414
        %v419 = vpack.c.b16 %v417, %v416
        %423 = vrot.lane.b32.xlu0 %v346, 16
        %v424 = vpop.permute.xlu0 %423
        %425 = vrot.lane.b32.xlu0 %v347, 16
        %v426 = vpop.permute.xlu0 %425
        %427 = vrot.lane.b32.xlu0 %v348, 16
        %v428 = vpop.permute.xlu0 %427
        %vm429 = vcmask 130048
        %v430 = vsel %vm429, %v424, %v426
        %v431 = vsel %vm429, %v426, %v428
        %vm432 = vcmask 31744
        %v434 = vsel %vm432, %v418, 0
        %v437 = vsel %vm432, %v419, 0
        %vm439 = vcmask 1041408
        %v441 = vsel %vm439, %v430, 0
        %v444 = vsel %vm439, %v431, 0
        %446 = vmatprep.subr.bf16.mxu0 %v444
        %447 = vmatpush1.bf16.msra.mxu0 %v441
        %448 = vmatprep.subr.bf16.mxu0 0
        %449 = vmatpush1.bf16.msra.mxu0 0
        %450 = vmatprep.subr.bf16.mxu0 0
        %451 = vmatpush1.bf16.msra.mxu0 0
        %452 = vmatprep.subr.bf16.mxu0 0
        %453 = vmatpush1.bf16.msra.mxu0 0
        %454 = vmatprep.subr.bf16.mxu0 0
        %455 = vmatpush1.bf16.msra.mxu0 0
        %456 = vmatprep.subr.bf16.mxu0 0
        %457 = vmatpush1.bf16.msra.mxu0 0
        %458 = vmatprep.subr.bf16.mxu0 0
        %459 = vmatpush1.bf16.msra.mxu0 0
        %460 = vmatprep.subr.bf16.mxu0 0
        %461 = vmatpush1.bf16.msra.mxu0 0
        %462 = vmatprep.subr.bf16.mxu0 0
        %463 = vmatpush1.bf16.msra.mxu0 0
        %464 = vmatprep.subr.bf16.mxu0 0
        %465 = vmatpush1.bf16.msra.mxu0 0
        %466 = vmatprep.subr.bf16.mxu0 0
        %467 = vmatpush1.bf16.msra.mxu0 0
        %468 = vmatprep.subr.bf16.mxu0 0
        %469 = vmatpush1.bf16.msra.mxu0 0
        %470 = vmatprep.subr.bf16.mxu0 0
        %471 = vmatpush1.bf16.msra.mxu0 0
        %472 = vmatprep.subr.bf16.mxu0 0
        %473 = vmatpush1.bf16.msra.mxu0 0
        %474 = vmatprep.subr.bf16.mxu0 0
        %475 = vmatpush1.bf16.msra.mxu0 0
        %476 = vmatprep.subr.bf16.mxu0 0
        %477 = vmatpush1.bf16.msra.mxu0 0
        %478 = vmatprep.mubr.bf16.mxu0 0
        %479 = vmatmul.mubr.bf16.gmra.mrb[0].mxu0 %v434
        %v480 = vpop.f32.mrb[0].mxu0
        %v481 = vadd.f32 0.0, %v480
        %v482 = vpop.f32.mrb[0].mxu0
        %v483 = vadd.f32 0.0, %v482
        %v484 = vpop.f32.mrb[0].mxu0
        %v485 = vadd.f32 0.0, %v484
        %v486 = vpop.f32.mrb[0].mxu0
        %v487 = vadd.f32 0.0, %v486
        %488 = vmatprep.mubr.bf16.mxu0 0
        %489 = vmatmul.mubr.bf16.gmra.mrb[0].mxu0 %v437
        %v490 = vpop.f32.mrb[0].mxu0
        %v491 = vadd.f32 0.0, %v490
        %v492 = vpop.f32.mrb[0].mxu0
        %v493 = vadd.f32 0.0, %v492
        %v494 = vpop.f32.mrb[0].mxu0
        %v495 = vadd.f32 0.0, %v494
        %v496 = vpop.f32.mrb[0].mxu0
        %v497 = vadd.f32 0.0, %v496
        %498 = vdwg.mxu0
        %v503 = vunpack.c.l.b16 %v401
        %v504 = vunpack.c.l.b16 %v402
        %v505 = vunpack.c.l.b16 %v403
        %v506 = vunpack.c.l.b16 %v404
        %v507 = vpack.c.b16 %v504, %v503
        %v508 = vpack.c.b16 %v506, %v505
        %512 = vrot.lane.b32.xlu0 %v398, 17
        %v513 = vpop.permute.xlu0 %512
        %514 = vrot.lane.b32.xlu0 %v399, 17
        %v515 = vpop.permute.xlu0 %514
        %516 = vrot.lane.b32.xlu0 %v400, 17
        %v517 = vpop.permute.xlu0 %516
        %vm518 = vcmask 138240
        %v519 = vsel %vm518, %v513, %v515
        %v520 = vsel %vm518, %v515, %v517
        %v522 = vsel %vm432, %v507, 0
        %v525 = vsel %vm432, %v508, 0
        %v528 = vsel %vm439, %v519, 0
        %v531 = vsel %vm439, %v520, 0
        %533 = vmatprep.subr.bf16.mxu0 %v531
        %534 = vmatpush1.bf16.msra.mxu0 %v528
        %535 = vmatprep.subr.bf16.mxu0 0
        %536 = vmatpush1.bf16.msra.mxu0 0
        %537 = vmatprep.subr.bf16.mxu0 0
        %538 = vmatpush1.bf16.msra.mxu0 0
        %539 = vmatprep.subr.bf16.mxu0 0
        %540 = vmatpush1.bf16.msra.mxu0 0
        %541 = vmatprep.subr.bf16.mxu0 0
        %542 = vmatpush1.bf16.msra.mxu0 0
        %543 = vmatprep.subr.bf16.mxu0 0
        %544 = vmatpush1.bf16.msra.mxu0 0
        %545 = vmatprep.subr.bf16.mxu0 0
        %546 = vmatpush1.bf16.msra.mxu0 0
        %547 = vmatprep.subr.bf16.mxu0 0
        %548 = vmatpush1.bf16.msra.mxu0 0
        %549 = vmatprep.subr.bf16.mxu0 0
        %550 = vmatpush1.bf16.msra.mxu0 0
        %551 = vmatprep.subr.bf16.mxu0 0
        %552 = vmatpush1.bf16.msra.mxu0 0
        %553 = vmatprep.subr.bf16.mxu0 0
        %554 = vmatpush1.bf16.msra.mxu0 0
        %555 = vmatprep.subr.bf16.mxu0 0
        %556 = vmatpush1.bf16.msra.mxu0 0
        %557 = vmatprep.subr.bf16.mxu0 0
        %558 = vmatpush1.bf16.msra.mxu0 0
        %559 = vmatprep.subr.bf16.mxu0 0
        %560 = vmatpush1.bf16.msra.mxu0 0
        %561 = vmatprep.subr.bf16.mxu0 0
        %562 = vmatpush1.bf16.msra.mxu0 0
        %563 = vmatprep.subr.bf16.mxu0 0
        %564 = vmatpush1.bf16.msra.mxu0 0
        %565 = vmatprep.mubr.bf16.mxu0 0
        %566 = vmatmul.mubr.bf16.gmra.mrb[0].mxu0 %v522
        %v567 = vpop.f32.mrb[0].mxu0
        %v568 = vadd.f32 %v481, %v567
        %v569 = vpop.f32.mrb[0].mxu0
        %v570 = vadd.f32 %v483, %v569
        %v571 = vpop.f32.mrb[0].mxu0
        %v572 = vadd.f32 %v485, %v571
        %v573 = vpop.f32.mrb[0].mxu0
        %v574 = vadd.f32 %v487, %v573
        %575 = vmatprep.mubr.bf16.mxu0 0
        %576 = vmatmul.mubr.bf16.gmra.mrb[0].mxu0 %v525
        %v577 = vpop.f32.mrb[0].mxu0
        %v578 = vadd.f32 %v491, %v577
        %v579 = vpop.f32.mrb[0].mxu0
        %v580 = vadd.f32 %v493, %v579
        %v581 = vpop.f32.mrb[0].mxu0
        %v582 = vadd.f32 %v495, %v581
        %v583 = vpop.f32.mrb[0].mxu0
        %v584 = vadd.f32 %v497, %v583
        %585 = vdwg.mxu0
        %s586 = scalar_lea.vmem %s7, 4
        %v587 = vld [vmem:[%s586] sm:$0x3]
        %v590 = vunpack.c.l.s4 1966171168
        %v591 = vunpack.c.0.s8 %v590
        %v592 = vlaneseq
        %v593 = vshrl.u32 %v592, 7
        %v594 = vsub.s32 %v591, %v593
        %v595 = vrot.slane %v587, %v594
        %v596 = vcombine.high %v595, %v595
        %v598 = vunpack.c.l.s4 1966171168
        %v599 = vunpack.c.0.s8 %v598
        %v600 = vlaneseq
        %v601 = vshrl.u32 %v600, 7
        %v602 = vsub.s32 %v599, %v601
        %v603 = vrot.slane %v595, %v602
        %v605 = vunpack.c.l.s4 1966171168
        %v606 = vunpack.c.0.s8 %v605
        %v607 = vlaneseq
        %v608 = vshrl.u32 %v607, 7
        %v609 = vsub.s32 %v606, %v608
        %v610 = vrot.slane %v596, %v609
        %v612 = vpack.i.b16 %v603, %v603
        %v614 = vlaneseq
        %v615 = vshrl.u32 %v614, 7
        %v616 = vsub.s32 0, %v615
        %v617 = vrot.slane %v612, %v616
        %v619 = vpack.i.b16 %v610, %v610
        %v621 = vlaneseq
        %v622 = vshrl.u32 %v621, 7
        %v623 = vsub.s32 0, %v622
        %v624 = vrot.slane %v619, %v623
        %627 = vrot.lane.b32.xlu0 %v617, 113
        %v628 = vpop.permute.xlu0 %627
        %629 = vrot.lane.b32.xlu0 %v624, 113
        %v630 = vpop.permute.xlu0 %629
        %vm631 = vcmask 924672
        %v632 = vsel %vm631, %v628, %v630
        %v636 = vmul.bf16 %v346, %v628
        %v637 = vmul.bf16 %v347, %v632
        %v638 = vmul.bf16 %v348, %v630
        %s639 = scalar_lea.vmem %s1, 32
        %v640 = vld [vmem:[%s639] sm:$0xf]
        %v641 = vld [vmem:[%s639 + $0x4] sm:$0xf]
        %v642 = vld [vmem:[%s639 + $0x8] sm:$0xf]
        %v643 = vld [vmem:[%s639 + $0xc] sm:$0xf]
        %v648 = vunpack.c.l.b16 %v640
        %v649 = vunpack.c.l.b16 %v641
        %v650 = vunpack.c.l.b16 %v642
        %v651 = vunpack.c.l.b16 %v643
        %v652 = vpack.c.b16 %v649, %v648
        %v653 = vpack.c.b16 %v651, %v650
        %657 = vrot.lane.b32.xlu0 %v636, 15
        %v658 = vpop.permute.xlu0 %657
        %659 = vrot.lane.b32.xlu0 %v637, 15
        %v660 = vpop.permute.xlu0 %659
        %661 = vrot.lane.b32.xlu0 %v638, 15
        %v662 = vpop.permute.xlu0 %661
        %vm663 = vcmask 121856
        %v664 = vsel %vm663, %v658, %v660
        %v665 = vsel %vm663, %v660, %v662
        %v667 = vsel %vm432, %v652, 0
        %v670 = vsel %vm432, %v653, 0
        %v673 = vsel %vm439, %v664, 0
        %v676 = vsel %vm439, %v665, 0
        %678 = vmatprep.subr.bf16.mxu0 %v676
        %679 = vmatpush1.bf16.msra.mxu0 %v673
        %680 = vmatprep.subr.bf16.mxu0 0
        %681 = vmatpush1.bf16.msra.mxu0 0
        %682 = vmatprep.subr.bf16.mxu0 0
        %683 = vmatpush1.bf16.msra.mxu0 0
        %684 = vmatprep.subr.bf16.mxu0 0
        %685 = vmatpush1.bf16.msra.mxu0 0
        %686 = vmatprep.subr.bf16.mxu0 0
        %687 = vmatpush1.bf16.msra.mxu0 0
        %688 = vmatprep.subr.bf16.mxu0 0
        %689 = vmatpush1.bf16.msra.mxu0 0
        %690 = vmatprep.subr.bf16.mxu0 0
        %691 = vmatpush1.bf16.msra.mxu0 0
        %692 = vmatprep.subr.bf16.mxu0 0
        %693 = vmatpush1.bf16.msra.mxu0 0
        %694 = vmatprep.subr.bf16.mxu0 0
        %695 = vmatpush1.bf16.msra.mxu0 0
        %696 = vmatprep.subr.bf16.mxu0 0
        %697 = vmatpush1.bf16.msra.mxu0 0
        %698 = vmatprep.subr.bf16.mxu0 0
        %699 = vmatpush1.bf16.msra.mxu0 0
        %700 = vmatprep.subr.bf16.mxu0 0
        %701 = vmatpush1.bf16.msra.mxu0 0
        %702 = vmatprep.subr.bf16.mxu0 0
        %703 = vmatpush1.bf16.msra.mxu0 0
        %704 = vmatprep.subr.bf16.mxu0 0
        %705 = vmatpush1.bf16.msra.mxu0 0
        %706 = vmatprep.subr.bf16.mxu0 0
        %707 = vmatpush1.bf16.msra.mxu0 0
        %708 = vmatprep.subr.bf16.mxu0 0
        %709 = vmatpush1.bf16.msra.mxu0 0
        %710 = vmatprep.mubr.bf16.mxu0 0
        %711 = vmatmul.mubr.bf16.gmra.mrb[0].mxu0 %v667
        %v712 = vpop.f32.mrb[0].mxu0
        %v713 = vadd.f32 0.0, %v712
        %v714 = vpop.f32.mrb[0].mxu0
        %v715 = vadd.f32 0.0, %v714
        %v716 = vpop.f32.mrb[0].mxu0
        %v717 = vadd.f32 0.0, %v716
        %v718 = vpop.f32.mrb[0].mxu0
        %v719 = vadd.f32 0.0, %v718
        %720 = vmatprep.mubr.bf16.mxu0 0
        %721 = vmatmul.mubr.bf16.gmra.mrb[0].mxu0 %v670
        %v722 = vpop.f32.mrb[0].mxu0
        %v723 = vadd.f32 0.0, %v722
        %v724 = vpop.f32.mrb[0].mxu0
        %v725 = vadd.f32 0.0, %v724
        %v726 = vpop.f32.mrb[0].mxu0
        %v727 = vadd.f32 0.0, %v726
        %v728 = vpop.f32.mrb[0].mxu0
        %v729 = vadd.f32 0.0, %v728
        %730 = vdwg.mxu0
        %v731 = vadd.f32 %v568, %v713
        %v732 = vadd.f32 %v570, %v715
        %v733 = vadd.f32 %v572, %v717
        %v734 = vadd.f32 %v574, %v719
        %v735 = vadd.f32 %v578, %v723
        %v736 = vadd.f32 %v580, %v725
        %v737 = vadd.f32 %v582, %v727
        %v738 = vadd.f32 %v584, %v729
        %v739 = vld [vmem:[#allocation2] sm:$0x3]
        %v740 = vld [vmem:[#allocation2 + $0x8] sm:$0x3]
        %v741 = vld [vmem:[#allocation2 + $0x10] sm:$0x3]
        %742 = vrot.lane.b32.xlu0 %v379, 127
        %v743 = vpop.permute.xlu0 %742
        %744 = vrot.lane.b32.xlu0 %v386, 127
        %v745 = vpop.permute.xlu0 %744
        %vm746 = vcmask 1039360
        %v747 = vsel %vm746, %v743, %v745
        %v751 = vmul.bf16 %v739, %v743
        %v752 = vmul.bf16 %v740, %v747
        %v753 = vmul.bf16 %v741, %v745
        %s754 = scalar_lea.vmem %s1, 48
        %v755 = vld [vmem:[%s754] sm:$0xf]
        %v756 = vld [vmem:[%s754 + $0x4] sm:$0xf]
        %v757 = vld [vmem:[%s754 + $0x8] sm:$0xf]
        %v758 = vld [vmem:[%s754 + $0xc] sm:$0xf]
        %v763 = vunpack.c.l.b16 %v755
        %v764 = vunpack.c.l.b16 %v756
        %v765 = vunpack.c.l.b16 %v757
        %v766 = vunpack.c.l.b16 %v758
        %v767 = vpack.c.b16 %v764, %v763
        %v768 = vpack.c.b16 %v766, %v765
        %772 = vrot.lane.b32.xlu0 %v751, 1
        %v773 = vpop.permute.xlu0 %772
        %774 = vrot.lane.b32.xlu0 %v752, 1
        %v775 = vpop.permute.xlu0 %774
        %776 = vrot.lane.b32.xlu0 %v753, 1
        %v777 = vpop.permute.xlu0 %776
        %vm778 = vcmask 7168
        %v779 = vsel %vm778, %v773, %v775
        %v780 = vsel %vm778, %v775, %v777
        %v782 = vsel %vm432, %v767, 0
        %v785 = vsel %vm432, %v768, 0
        %v788 = vsel %vm439, %v779, 0
        %v791 = vsel %vm439, %v780, 0
        %793 = vmatprep.subr.bf16.mxu0 %v791
        %794 = vmatpush1.bf16.msra.mxu0 %v788
        %795 = vmatprep.subr.bf16.mxu0 0
        %796 = vmatpush1.bf16.msra.mxu0 0
        %797 = vmatprep.subr.bf16.mxu0 0
        %798 = vmatpush1.bf16.msra.mxu0 0
        %799 = vmatprep.subr.bf16.mxu0 0
        %800 = vmatpush1.bf16.msra.mxu0 0
        %801 = vmatprep.subr.bf16.mxu0 0
        %802 = vmatpush1.bf16.msra.mxu0 0
        %803 = vmatprep.subr.bf16.mxu0 0
        %804 = vmatpush1.bf16.msra.mxu0 0
        %805 = vmatprep.subr.bf16.mxu0 0
        %806 = vmatpush1.bf16.msra.mxu0 0
        %807 = vmatprep.subr.bf16.mxu0 0
        %808 = vmatpush1.bf16.msra.mxu0 0
        %809 = vmatprep.subr.bf16.mxu0 0
        %810 = vmatpush1.bf16.msra.mxu0 0
        %811 = vmatprep.subr.bf16.mxu0 0
        %812 = vmatpush1.bf16.msra.mxu0 0
        %813 = vmatprep.subr.bf16.mxu0 0
        %814 = vmatpush1.bf16.msra.mxu0 0
        %815 = vmatprep.subr.bf16.mxu0 0
        %816 = vmatpush1.bf16.msra.mxu0 0
        %817 = vmatprep.subr.bf16.mxu0 0
        %818 = vmatpush1.bf16.msra.mxu0 0
        %819 = vmatprep.subr.bf16.mxu0 0
        %820 = vmatpush1.bf16.msra.mxu0 0
        %821 = vmatprep.subr.bf16.mxu0 0
        %822 = vmatpush1.bf16.msra.mxu0 0
        %823 = vmatprep.subr.bf16.mxu0 0
        %824 = vmatpush1.bf16.msra.mxu0 0
        %825 = vmatprep.mubr.bf16.mxu0 0
        %826 = vmatmul.mubr.bf16.gmra.mrb[0].mxu0 %v782
        %v827 = vpop.f32.mrb[0].mxu0
        %v828 = vadd.f32 0.0, %v827
        %v829 = vpop.f32.mrb[0].mxu0
        %v830 = vadd.f32 0.0, %v829
        %v831 = vpop.f32.mrb[0].mxu0
        %v832 = vadd.f32 0.0, %v831
        %v833 = vpop.f32.mrb[0].mxu0
        %v834 = vadd.f32 0.0, %v833
        %835 = vmatprep.mubr.bf16.mxu0 0
        %836 = vmatmul.mubr.bf16.gmra.mrb[0].mxu0 %v785
        %v837 = vpop.f32.mrb[0].mxu0
        %v838 = vadd.f32 0.0, %v837
        %v839 = vpop.f32.mrb[0].mxu0
        %v840 = vadd.f32 0.0, %v839
        %v841 = vpop.f32.mrb[0].mxu0
        %v842 = vadd.f32 0.0, %v841
        %v843 = vpop.f32.mrb[0].mxu0
        %v844 = vadd.f32 0.0, %v843
        %845 = vdwg.mxu0
        %v846 = vadd.f32 %v731, %v828
        %v847 = vadd.f32 %v732, %v830
        %v848 = vadd.f32 %v733, %v832
        %v849 = vadd.f32 %v734, %v834
        %v850 = vadd.f32 %v735, %v838
        %v851 = vadd.f32 %v736, %v840
        %v852 = vadd.f32 %v737, %v842
        %v853 = vadd.f32 %v738, %v844
        %s854 = scalar_lea.vmem %s1, 64
        %v855 = vld [vmem:[%s854] sm:$0xf]
        %v856 = vld [vmem:[%s854 + $0x4] sm:$0xf]
        %v857 = vld [vmem:[%s854 + $0x8] sm:$0xf]
        %v858 = vld [vmem:[%s854 + $0xc] sm:$0xf]
        %v863 = vunpack.c.l.b16 %v855
        %v864 = vunpack.c.l.b16 %v856
        %v865 = vunpack.c.l.b16 %v857
        %v866 = vunpack.c.l.b16 %v858
        %v867 = vpack.c.b16 %v864, %v863
        %v868 = vpack.c.b16 %v866, %v865
        %v870 = vsel %vm432, %v867, 0
        %v873 = vsel %vm432, %v868, 0
        %v876 = vsel %vm439, %v740, 0
        %v879 = vsel %vm439, %v741, 0
        %881 = vmatprep.subr.bf16.mxu0 %v879
        %882 = vmatpush1.bf16.msra.mxu0 %v876
        %883 = vmatprep.subr.bf16.mxu0 0
        %884 = vmatpush1.bf16.msra.mxu0 0
        %885 = vmatprep.subr.bf16.mxu0 0
        %886 = vmatpush1.bf16.msra.mxu0 0
        %887 = vmatprep.subr.bf16.mxu0 0
        %888 = vmatpush1.bf16.msra.mxu0 0
        %889 = vmatprep.subr.bf16.mxu0 0
        %890 = vmatpush1.bf16.msra.mxu0 0
        %891 = vmatprep.subr.bf16.mxu0 0
        %892 = vmatpush1.bf16.msra.mxu0 0
        %893 = vmatprep.subr.bf16.mxu0 0
        %894 = vmatpush1.bf16.msra.mxu0 0
        %895 = vmatprep.subr.bf16.mxu0 0
        %896 = vmatpush1.bf16.msra.mxu0 0
        %897 = vmatprep.subr.bf16.mxu0 0
        %898 = vmatpush1.bf16.msra.mxu0 0
        %899 = vmatprep.subr.bf16.mxu0 0
        %900 = vmatpush1.bf16.msra.mxu0 0
        %901 = vmatprep.subr.bf16.mxu0 0
        %902 = vmatpush1.bf16.msra.mxu0 0
        %903 = vmatprep.subr.bf16.mxu0 0
        %904 = vmatpush1.bf16.msra.mxu0 0
        %905 = vmatprep.subr.bf16.mxu0 0
        %906 = vmatpush1.bf16.msra.mxu0 0
        %907 = vmatprep.subr.bf16.mxu0 0
        %908 = vmatpush1.bf16.msra.mxu0 0
        %909 = vmatprep.subr.bf16.mxu0 0
        %910 = vmatpush1.bf16.msra.mxu0 0
        %911 = vmatprep.subr.bf16.mxu0 0
        %912 = vmatpush1.bf16.msra.mxu0 0
        %913 = vmatprep.mubr.bf16.mxu0 0
        %914 = vmatmul.mubr.bf16.gmra.mrb[0].mxu0 %v870
        %v915 = vpop.f32.mrb[0].mxu0
        %v916 = vadd.f32 0.0, %v915
        %v917 = vpop.f32.mrb[0].mxu0
        %v918 = vadd.f32 0.0, %v917
        %v919 = vpop.f32.mrb[0].mxu0
        %v920 = vadd.f32 0.0, %v919
        %v921 = vpop.f32.mrb[0].mxu0
        %v922 = vadd.f32 0.0, %v921
        %923 = vmatprep.mubr.bf16.mxu0 0
        %924 = vmatmul.mubr.bf16.gmra.mrb[0].mxu0 %v873
        %v925 = vpop.f32.mrb[0].mxu0
        %v926 = vadd.f32 0.0, %v925
        %v927 = vpop.f32.mrb[0].mxu0
        %v928 = vadd.f32 0.0, %v927
        %v929 = vpop.f32.mrb[0].mxu0
        %v930 = vadd.f32 0.0, %v929
        %v931 = vpop.f32.mrb[0].mxu0
        %v932 = vadd.f32 0.0, %v931
        %933 = vdwg.mxu0
        %v934 = vadd.f32 %v846, %v916
        %v935 = vadd.f32 %v847, %v918
        %v936 = vadd.f32 %v848, %v920
        %v937 = vadd.f32 %v849, %v922
        %v938 = vadd.f32 %v850, %v926
        %v939 = vadd.f32 %v851, %v928
        %v940 = vadd.f32 %v852, %v930
        %v941 = vadd.f32 %v853, %v932
        %v942 = vld [vmem:[#allocation2 + $0x8] sm:$0x3]
        %v943 = vld [vmem:[#allocation2 + $0x10] sm:$0x3]
        %v944 = vld [vmem:[#allocation2 + $0x18] sm:$0x3]
        %945 = vrot.lane.b32.xlu0 %v617, 1
        %v946 = vpop.permute.xlu0 %945
        %947 = vrot.lane.b32.xlu0 %v624, 1
        %v948 = vpop.permute.xlu0 %947
        %v949 = vsel %vm778, %v946, %v948
        %v953 = vmul.bf16 %v942, %v946
        %v954 = vmul.bf16 %v943, %v949
        %v955 = vmul.bf16 %v944, %v948
        %s956 = scalar_lea.vmem %s1, 80
        %v957 = vld [vmem:[%s956] sm:$0xf]
        %v958 = vld [vmem:[%s956 + $0x4] sm:$0xf]
        %v959 = vld [vmem:[%s956 + $0x8] sm:$0xf]
        %v960 = vld [vmem:[%s956 + $0xc] sm:$0xf]
        %v965 = vunpack.c.l.b16 %v957
        %v966 = vunpack.c.l.b16 %v958
        %v967 = vunpack.c.l.b16 %v959
        %v968 = vunpack.c.l.b16 %v960
        %v969 = vpack.c.b16 %v966, %v965
        %v970 = vpack.c.b16 %v968, %v967
        %974 = vrot.lane.b32.xlu0 %v953, 127
        %v975 = vpop.permute.xlu0 %974
        %976 = vrot.lane.b32.xlu0 %v954, 127
        %v977 = vpop.permute.xlu0 %976
        %978 = vrot.lane.b32.xlu0 %v955, 127
        %v979 = vpop.permute.xlu0 %978
        %v980 = vsel %vm746, %v975, %v977
        %v981 = vsel %vm746, %v977, %v979
        %v983 = vsel %vm432, %v969, 0
        %v986 = vsel %vm432, %v970, 0
        %v989 = vsel %vm439, %v980, 0
        %v992 = vsel %vm439, %v981, 0
        %994 = vmatprep.subr.bf16.mxu0 %v992
        %995 = vmatpush1.bf16.msra.mxu0 %v989
        %996 = vmatprep.subr.bf16.mxu0 0
        %997 = vmatpush1.bf16.msra.mxu0 0
        %998 = vmatprep.subr.bf16.mxu0 0
        %999 = vmatpush1.bf16.msra.mxu0 0
        %1000 = vmatprep.subr.bf16.mxu0 0
        %1001 = vmatpush1.bf16.msra.mxu0 0
        %1002 = vmatprep.subr.bf16.mxu0 0
        %1003 = vmatpush1.bf16.msra.mxu0 0
        %1004 = vmatprep.subr.bf16.mxu0 0
        %1005 = vmatpush1.bf16.msra.mxu0 0
        %1006 = vmatprep.subr.bf16.mxu0 0
        %1007 = vmatpush1.bf16.msra.mxu0 0
        %1008 = vmatprep.subr.bf16.mxu0 0
        %1009 = vmatpush1.bf16.msra.mxu0 0
        %1010 = vmatprep.subr.bf16.mxu0 0
        %1011 = vmatpush1.bf16.msra.mxu0 0
        %1012 = vmatprep.subr.bf16.mxu0 0
        %1013 = vmatpush1.bf16.msra.mxu0 0
        %1014 = vmatprep.subr.bf16.mxu0 0
        %1015 = vmatpush1.bf16.msra.mxu0 0
        %1016 = vmatprep.subr.bf16.mxu0 0
        %1017 = vmatpush1.bf16.msra.mxu0 0
        %1018 = vmatprep.subr.bf16.mxu0 0
        %1019 = vmatpush1.bf16.msra.mxu0 0
        %1020 = vmatprep.subr.bf16.mxu0 0
        %1021 = vmatpush1.bf16.msra.mxu0 0
        %1022 = vmatprep.subr.bf16.mxu0 0
        %1023 = vmatpush1.bf16.msra.mxu0 0
        %1024 = vmatprep.subr.bf16.mxu0 0
        %1025 = vmatpush1.bf16.msra.mxu0 0
        %1026 = vmatprep.mubr.bf16.mxu0 0
        %1027 = vmatmul.mubr.bf16.gmra.mrb[0].mxu0 %v983
        %v1028 = vpop.f32.mrb[0].mxu0
        %v1029 = vadd.f32 0.0, %v1028
        %v1030 = vpop.f32.mrb[0].mxu0
        %v1031 = vadd.f32 0.0, %v1030
        %v1032 = vpop.f32.mrb[0].mxu0
        %v1033 = vadd.f32 0.0, %v1032
        %v1034 = vpop.f32.mrb[0].mxu0
        %v1035 = vadd.f32 0.0, %v1034
        %1036 = vmatprep.mubr.bf16.mxu0 0
        %1037 = vmatmul.mubr.bf16.gmra.mrb[0].mxu0 %v986
        %v1038 = vpop.f32.mrb[0].mxu0
        %v1039 = vadd.f32 0.0, %v1038
        %v1040 = vpop.f32.mrb[0].mxu0
        %v1041 = vadd.f32 0.0, %v1040
        %v1042 = vpop.f32.mrb[0].mxu0
        %v1043 = vadd.f32 0.0, %v1042
        %v1044 = vpop.f32.mrb[0].mxu0
        %v1045 = vadd.f32 0.0, %v1044
        %1046 = vdwg.mxu0
        %v1047 = vadd.f32 %v934, %v1029
        %v1048 = vadd.f32 %v935, %v1031
        %v1049 = vadd.f32 %v936, %v1033
        %v1050 = vadd.f32 %v937, %v1035
        %v1051 = vadd.f32 %v938, %v1039
        %v1052 = vadd.f32 %v939, %v1041
        %v1053 = vadd.f32 %v940, %v1043
        %v1054 = vadd.f32 %v941, %v1045
        %1055 = vrot.lane.b32.xlu0 %v379, 15
        %v1056 = vpop.permute.xlu0 %1055
        %1057 = vrot.lane.b32.xlu0 %v386, 15
        %v1058 = vpop.permute.xlu0 %1057
        %v1059 = vsel %vm663, %v1056, %v1058
        %v1063 = vmul.bf16 %v942, %v1056
        %v1064 = vmul.bf16 %v943, %v1059
        %v1065 = vmul.bf16 %v944, %v1058
        %s1066 = scalar_lea.vmem %s1, 96
        %v1067 = vld [vmem:[%s1066] sm:$0xf]
        %v1068 = vld [vmem:[%s1066 + $0x4] sm:$0xf]
        %v1069 = vld [vmem:[%s1066 + $0x8] sm:$0xf]
        %v1070 = vld [vmem:[%s1066 + $0xc] sm:$0xf]
        %v1075 = vunpack.c.l.b16 %v1067
        %v1076 = vunpack.c.l.b16 %v1068
        %v1077 = vunpack.c.l.b16 %v1069
        %v1078 = vunpack.c.l.b16 %v1070
        %v1079 = vpack.c.b16 %v1076, %v1075
        %v1080 = vpack.c.b16 %v1078, %v1077
        %1084 = vrot.lane.b32.xlu0 %v1063, 113
        %v1085 = vpop.permute.xlu0 %1084
        %1086 = vrot.lane.b32.xlu0 %v1064, 113
        %v1087 = vpop.permute.xlu0 %1086
        %1088 = vrot.lane.b32.xlu0 %v1065, 113
        %v1089 = vpop.permute.xlu0 %1088
        %v1090 = vsel %vm631, %v1085, %v1087
        %v1091 = vsel %vm631, %v1087, %v1089
        %v1093 = vsel %vm432, %v1079, 0
        %v1096 = vsel %vm432, %v1080, 0
        %v1099 = vsel %vm439, %v1090, 0
        %v1102 = vsel %vm439, %v1091, 0
        %1104 = vmatprep.subr.bf16.mxu0 %v1102
        %1105 = vmatpush1.bf16.msra.mxu0 %v1099
        %1106 = vmatprep.subr.bf16.mxu0 0
        %1107 = vmatpush1.bf16.msra.mxu0 0
        %1108 = vmatprep.subr.bf16.mxu0 0
        %1109 = vmatpush1.bf16.msra.mxu0 0
        %1110 = vmatprep.subr.bf16.mxu0 0
        %1111 = vmatpush1.bf16.msra.mxu0 0
        %1112 = vmatprep.subr.bf16.mxu0 0
        %1113 = vmatpush1.bf16.msra.mxu0 0
        %1114 = vmatprep.subr.bf16.mxu0 0
        %1115 = vmatpush1.bf16.msra.mxu0 0
        %1116 = vmatprep.subr.bf16.mxu0 0
        %1117 = vmatpush1.bf16.msra.mxu0 0
        %1118 = vmatprep.subr.bf16.mxu0 0
        %1119 = vmatpush1.bf16.msra.mxu0 0
        %1120 = vmatprep.subr.bf16.mxu0 0
        %1121 = vmatpush1.bf16.msra.mxu0 0
        %1122 = vmatprep.subr.bf16.mxu0 0
        %1123 = vmatpush1.bf16.msra.mxu0 0
        %1124 = vmatprep.subr.bf16.mxu0 0
        %1125 = vmatpush1.bf16.msra.mxu0 0
        %1126 = vmatprep.subr.bf16.mxu0 0
        %1127 = vmatpush1.bf16.msra.mxu0 0
        %1128 = vmatprep.subr.bf16.mxu0 0
        %1129 = vmatpush1.bf16.msra.mxu0 0
        %1130 = vmatprep.subr.bf16.mxu0 0
        %1131 = vmatpush1.bf16.msra.mxu0 0
        %1132 = vmatprep.subr.bf16.mxu0 0
        %1133 = vmatpush1.bf16.msra.mxu0 0
        %1134 = vmatprep.subr.bf16.mxu0 0
        %1135 = vmatpush1.bf16.msra.mxu0 0
        %1136 = vmatprep.mubr.bf16.mxu0 0
        %1137 = vmatmul.mubr.bf16.gmra.mrb[0].mxu0 %v1093
        %v1138 = vpop.f32.mrb[0].mxu0
        %v1139 = vadd.f32 0.0, %v1138
        %v1140 = vpop.f32.mrb[0].mxu0
        %v1141 = vadd.f32 0.0, %v1140
        %v1142 = vpop.f32.mrb[0].mxu0
        %v1143 = vadd.f32 0.0, %v1142
        %v1144 = vpop.f32.mrb[0].mxu0
        %v1145 = vadd.f32 0.0, %v1144
        %1146 = vmatprep.mubr.bf16.mxu0 0
        %1147 = vmatmul.mubr.bf16.gmra.mrb[0].mxu0 %v1096
        %v1148 = vpop.f32.mrb[0].mxu0
        %v1149 = vadd.f32 0.0, %v1148
        %v1150 = vpop.f32.mrb[0].mxu0
        %v1151 = vadd.f32 0.0, %v1150
        %v1152 = vpop.f32.mrb[0].mxu0
        %v1153 = vadd.f32 0.0, %v1152
        %v1154 = vpop.f32.mrb[0].mxu0
        %v1155 = vadd.f32 0.0, %v1154
        %1156 = vdwg.mxu0
        %v1157 = vadd.f32 %v1047, %v1139
        %v1158 = vadd.f32 %v1048, %v1141
        %v1159 = vadd.f32 %v1049, %v1143
        %v1160 = vadd.f32 %v1050, %v1145
        %v1161 = vadd.f32 %v1051, %v1149
        %v1162 = vadd.f32 %v1052, %v1151
        %v1163 = vadd.f32 %v1053, %v1153
        %v1164 = vadd.f32 %v1054, %v1155
        %s1165 = scalar_lea.vmem %s1, 112
        %v1166 = vld [vmem:[%s1165] sm:$0xf]
        %v1167 = vld [vmem:[%s1165 + $0x4] sm:$0xf]
        %v1168 = vld [vmem:[%s1165 + $0x8] sm:$0xf]
        %v1169 = vld [vmem:[%s1165 + $0xc] sm:$0xf]
        %v1174 = vunpack.c.l.b16 %v1166
        %v1175 = vunpack.c.l.b16 %v1167
        %v1176 = vunpack.c.l.b16 %v1168
        %v1177 = vunpack.c.l.b16 %v1169
        %v1178 = vpack.c.b16 %v1175, %v1174
        %v1179 = vpack.c.b16 %v1177, %v1176
        %1183 = vrot.lane.b32.xlu0 %v942, 112
        %v1184 = vpop.permute.xlu0 %1183
        %1185 = vrot.lane.b32.xlu0 %v943, 112
        %v1186 = vpop.permute.xlu0 %1185
        %1187 = vrot.lane.b32.xlu0 %v944, 112
        %v1188 = vpop.permute.xlu0 %1187
        %vm1189 = vcmask 916480
        %v1190 = vsel %vm1189, %v1184, %v1186
        %v1191 = vsel %vm1189, %v1186, %v1188
        %v1193 = vsel %vm432, %v1178, 0
        %v1196 = vsel %vm432, %v1179, 0
        %v1199 = vsel %vm439, %v1190, 0
        %v1202 = vsel %vm439, %v1191, 0
        %1204 = vmatprep.subr.bf16.mxu0 %v1202
        %1205 = vmatpush1.bf16.msra.mxu0 %v1199
        %1206 = vmatprep.subr.bf16.mxu0 0
        %1207 = vmatpush1.bf16.msra.mxu0 0
        %1208 = vmatprep.subr.bf16.mxu0 0
        %1209 = vmatpush1.bf16.msra.mxu0 0
        %1210 = vmatprep.subr.bf16.mxu0 0
        %1211 = vmatpush1.bf16.msra.mxu0 0
        %1212 = vmatprep.subr.bf16.mxu0 0
        %1213 = vmatpush1.bf16.msra.mxu0 0
        %1214 = vmatprep.subr.bf16.mxu0 0
        %1215 = vmatpush1.bf16.msra.mxu0 0
        %1216 = vmatprep.subr.bf16.mxu0 0
        %1217 = vmatpush1.bf16.msra.mxu0 0
        %1218 = vmatprep.subr.bf16.mxu0 0
        %1219 = vmatpush1.bf16.msra.mxu0 0
        %1220 = vmatprep.subr.bf16.mxu0 0
        %1221 = vmatpush1.bf16.msra.mxu0 0
        %1222 = vmatprep.subr.bf16.mxu0 0
        %1223 = vmatpush1.bf16.msra.mxu0 0
        %1224 = vmatprep.subr.bf16.mxu0 0
        %1225 = vmatpush1.bf16.msra.mxu0 0
        %1226 = vmatprep.subr.bf16.mxu0 0
        %1227 = vmatpush1.bf16.msra.mxu0 0
        %1228 = vmatprep.subr.bf16.mxu0 0
        %1229 = vmatpush1.bf16.msra.mxu0 0
        %1230 = vmatprep.subr.bf16.mxu0 0
        %1231 = vmatpush1.bf16.msra.mxu0 0
        %1232 = vmatprep.subr.bf16.mxu0 0
        %1233 = vmatpush1.bf16.msra.mxu0 0
        %1234 = vmatprep.subr.bf16.mxu0 0
        %1235 = vmatpush1.bf16.msra.mxu0 0
        %1236 = vmatprep.mubr.bf16.mxu0 0
        %1237 = vmatmul.mubr.bf16.gmra.mrb[0].mxu0 %v1193
        %v1238 = vpop.f32.mrb[0].mxu0
        %v1239 = vadd.f32 0.0, %v1238
        %v1240 = vpop.f32.mrb[0].mxu0
        %v1241 = vadd.f32 0.0, %v1240
        %v1242 = vpop.f32.mrb[0].mxu0
        %v1243 = vadd.f32 0.0, %v1242
        %v1244 = vpop.f32.mrb[0].mxu0
        %v1245 = vadd.f32 0.0, %v1244
        %1246 = vmatprep.mubr.bf16.mxu0 0
        %1247 = vmatmul.mubr.bf16.gmra.mrb[0].mxu0 %v1196
        %v1248 = vpop.f32.mrb[0].mxu0
        %v1249 = vadd.f32 0.0, %v1248
        %v1250 = vpop.f32.mrb[0].mxu0
        %v1251 = vadd.f32 0.0, %v1250
        %v1252 = vpop.f32.mrb[0].mxu0
        %v1253 = vadd.f32 0.0, %v1252
        %v1254 = vpop.f32.mrb[0].mxu0
        %v1255 = vadd.f32 0.0, %v1254
        %1256 = vdwg.mxu0
        %v1257 = vadd.f32 %v1157, %v1239
        %v1258 = vadd.f32 %v1158, %v1241
        %v1259 = vadd.f32 %v1159, %v1243
        %v1260 = vadd.f32 %v1160, %v1245
        %v1261 = vadd.f32 %v1161, %v1249
        %v1262 = vadd.f32 %v1162, %v1251
        %v1263 = vadd.f32 %v1163, %v1253
        %v1264 = vadd.f32 %v1164, %v1255
        %1265 = vrot.lane.b32.xlu0 %v617, 17
        %v1266 = vpop.permute.xlu0 %1265
        %1267 = vrot.lane.b32.xlu0 %v624, 17
        %v1268 = vpop.permute.xlu0 %1267
        %v1269 = vsel %vm518, %v1266, %v1268
        %v1273 = vmul.bf16 %v942, %v1266
        %v1274 = vmul.bf16 %v943, %v1269
        %v1275 = vmul.bf16 %v944, %v1268
        %s1276 = scalar_lea.vmem %s1, 128
        %v1277 = vld [vmem:[%s1276] sm:$0xf]
        %v1278 = vld [vmem:[%s1276 + $0x4] sm:$0xf]
        %v1279 = vld [vmem:[%s1276 + $0x8] sm:$0xf]
        %v1280 = vld [vmem:[%s1276 + $0xc] sm:$0xf]
        %v1285 = vunpack.c.l.b16 %v1277
        %v1286 = vunpack.c.l.b16 %v1278
        %v1287 = vunpack.c.l.b16 %v1279
        %v1288 = vunpack.c.l.b16 %v1280
        %v1289 = vpack.c.b16 %v1286, %v1285
        %v1290 = vpack.c.b16 %v1288, %v1287
        %1294 = vrot.lane.b32.xlu0 %v1273, 111
        %v1295 = vpop.permute.xlu0 %1294
        %1296 = vrot.lane.b32.xlu0 %v1274, 111
        %v1297 = vpop.permute.xlu0 %1296
        %1298 = vrot.lane.b32.xlu0 %v1275, 111
        %v1299 = vpop.permute.xlu0 %1298
        %v1300 = vsel %vm393, %v1295, %v1297
        %v1301 = vsel %vm393, %v1297, %v1299
        %v1303 = vsel %vm432, %v1289, 0
        %v1306 = vsel %vm432, %v1290, 0
        %v1309 = vsel %vm439, %v1300, 0
        %v1312 = vsel %vm439, %v1301, 0
        %1314 = vmatprep.subr.bf16.mxu0 %v1312
        %1315 = vmatpush1.bf16.msra.mxu0 %v1309
        %1316 = vmatprep.subr.bf16.mxu0 0
        %1317 = vmatpush1.bf16.msra.mxu0 0
        %1318 = vmatprep.subr.bf16.mxu0 0
        %1319 = vmatpush1.bf16.msra.mxu0 0
        %1320 = vmatprep.subr.bf16.mxu0 0
        %1321 = vmatpush1.bf16.msra.mxu0 0
        %1322 = vmatprep.subr.bf16.mxu0 0
        %1323 = vmatpush1.bf16.msra.mxu0 0
        %1324 = vmatprep.subr.bf16.mxu0 0
        %1325 = vmatpush1.bf16.msra.mxu0 0
        %1326 = vmatprep.subr.bf16.mxu0 0
        %1327 = vmatpush1.bf16.msra.mxu0 0
        %1328 = vmatprep.subr.bf16.mxu0 0
        %1329 = vmatpush1.bf16.msra.mxu0 0
        %1330 = vmatprep.subr.bf16.mxu0 0
        %1331 = vmatpush1.bf16.msra.mxu0 0
        %1332 = vmatprep.subr.bf16.mxu0 0
        %1333 = vmatpush1.bf16.msra.mxu0 0
        %1334 = vmatprep.subr.bf16.mxu0 0
        %1335 = vmatpush1.bf16.msra.mxu0 0
        %1336 = vmatprep.subr.bf16.mxu0 0
        %1337 = vmatpush1.bf16.msra.mxu0 0
        %1338 = vmatprep.subr.bf16.mxu0 0
        %1339 = vmatpush1.bf16.msra.mxu0 0
        %1340 = vmatprep.subr.bf16.mxu0 0
        %1341 = vmatpush1.bf16.msra.mxu0 0
        %1342 = vmatprep.subr.bf16.mxu0 0
        %1343 = vmatpush1.bf16.msra.mxu0 0
        %1344 = vmatprep.subr.bf16.mxu0 0
        %1345 = vmatpush1.bf16.msra.mxu0 0
        %1346 = vmatprep.mubr.bf16.mxu0 0
        %1347 = vmatmul.mubr.bf16.gmra.mrb[0].mxu0 %v1303
        %v1348 = vpop.f32.mrb[0].mxu0
        %v1349 = vadd.f32 0.0, %v1348
        %v1350 = vpop.f32.mrb[0].mxu0
        %v1351 = vadd.f32 0.0, %v1350
        %v1352 = vpop.f32.mrb[0].mxu0
        %v1353 = vadd.f32 0.0, %v1352
        %v1354 = vpop.f32.mrb[0].mxu0
        %v1355 = vadd.f32 0.0, %v1354
        %1356 = vmatprep.mubr.bf16.mxu0 0
        %1357 = vmatmul.mubr.bf16.gmra.mrb[0].mxu0 %v1306
        %v1358 = vpop.f32.mrb[0].mxu0
        %v1359 = vadd.f32 0.0, %v1358
        %v1360 = vpop.f32.mrb[0].mxu0
        %v1361 = vadd.f32 0.0, %v1360
        %v1362 = vpop.f32.mrb[0].mxu0
        %v1363 = vadd.f32 0.0, %v1362
        %v1364 = vpop.f32.mrb[0].mxu0
        %v1365 = vadd.f32 0.0, %v1364
        %1366 = vdwg.mxu0
        %v1367 = vadd.f32 %v1257, %v1349
        %v1368 = vadd.f32 %v1258, %v1351
        %v1369 = vadd.f32 %v1259, %v1353
        %v1370 = vadd.f32 %v1260, %v1355
        %v1371 = vadd.f32 %v1261, %v1359
        %v1372 = vadd.f32 %v1262, %v1361
        %v1373 = vadd.f32 %v1263, %v1363
        %v1374 = vadd.f32 %v1264, %v1365
        %s1375 = smul.u32 %s24, 8
        %s1376 = smul.addr %s1375, 8
        %s1377 = scalar_lea.vmem [#allocation3], %s1376
        %1378 = vst [vmem:[%s1377] sm:$0xff] %v1367
        %1379 = vst [vmem:[%s1377 + $0x8] sm:$0xff] %v1368
        %1380 = vst [vmem:[%s1377 + $0x10] sm:$0xff] %v1369
        %1381 = vst [vmem:[%s1377 + $0x18] sm:$0xff] %v1370
        %1382 = vst [vmem:[%s1377 + $0x20] sm:$0xff] %v1371
        %1383 = vst [vmem:[%s1377 + $0x28] sm:$0xff] %v1372
        %1384 = vst [vmem:[%s1377 + $0x30] sm:$0xff] %v1373
        %1385 = vst [vmem:[%s1377 + $0x38] sm:$0xff] %v1374
        // Predicated region
        $region61: #{residual_block_forward.1} parent=59 // pred_check
          %p1386 = pneg %p320
        $region62: #{residual_block_forward.1} parent=59 // pred_check_branch
          %1388 = sbr.rel (%p1386) target = $region64
        $region63: #{residual_block_forward.1} parent=59 // pred_region
          %vm1389 = vcmask 7168
          %1390 = vst.msk [vmem:[#allocation4] sm:$0xff] %vm1389, 0.0
          %1391 = vst.msk [vmem:[#allocation4 + $0x8] sm:$0xff] %vm1389, 0.0
          %1392 = vst.msk [vmem:[#allocation4 + $0x10] sm:$0xff] %vm1389, 0.0
          %1393 = vst.msk [vmem:[#allocation4 + $0x18] sm:$0xff] %vm1389, 0.0
          %1394 = vst.msk [vmem:[#allocation4 + $0x20] sm:$0xff] %vm1389, 0.0
          %1395 = vst.msk [vmem:[#allocation4 + $0x28] sm:$0xff] %vm1389, 0.0
          %1396 = vst.msk [vmem:[#allocation4 + $0x30] sm:$0xff] %vm1389, 0.0
          %1397 = vst.msk [vmem:[#allocation4 + $0x38] sm:$0xff] %vm1389, 0.0
        $region64: #{residual_block_forward.1} parent=59 // pred_fallthru
          _
        %v1398 = vld [vmem:[#allocation4] sm:$0xff]
        %v1399 = vld [vmem:[#allocation4 + $0x8] sm:$0xff]
        %v1400 = vld [vmem:[#allocation4 + $0x10] sm:$0xff]
        %v1401 = vld [vmem:[#allocation4 + $0x18] sm:$0xff]
        %v1402 = vadd.f32 %v1367, %v1368
        %1403 = vadd.xlane.f32.xlu0 %v1402
        %v1404 = vpop.xlane.xlu0 %1403
        %v1405 = vadd.f32 %v1369, %v1370
        %1406 = vadd.xlane.f32.xlu0 %v1405
        %v1407 = vpop.xlane.xlu0 %1406
        %v1408 = vadd.f32 %v1371, %v1372
        %1409 = vadd.xlane.f32.xlu0 %v1408
        %v1410 = vpop.xlane.xlu0 %1409
        %v1411 = vadd.f32 %v1373, %v1374
        %1412 = vadd.xlane.f32.xlu0 %v1411
        %v1413 = vpop.xlane.xlu0 %1412
        %v1414 = vadd.f32 %v1398, %v1404
        %v1415 = vadd.f32 %v1399, %v1407
        %v1416 = vadd.f32 %v1400, %v1410
        %v1417 = vadd.f32 %v1401, %v1413
        %vm1418 = vcmask 7168
        %1419 = vst.msk [vmem:[#allocation4] sm:$0xff] %vm1418, %v1414
        %1420 = vst.msk [vmem:[#allocation4 + $0x8] sm:$0xff] %vm1418, %v1415
        %1421 = vst.msk [vmem:[#allocation4 + $0x10] sm:$0xff] %vm1418, %v1416
        %1422 = vst.msk [vmem:[#allocation4 + $0x18] sm:$0xff] %vm1418, %v1417
        %s1423 = scalar_lea.vmem [#allocation4], 32
        %v1424 = vld [vmem:[%s1423] sm:$0xff]
        %v1425 = vld [vmem:[%s1423 + $0x8] sm:$0xff]
        %v1426 = vld [vmem:[%s1423 + $0x10] sm:$0xff]
        %v1427 = vld [vmem:[%s1423 + $0x18] sm:$0xff]
        %v1428 = vmul.f32 %v1367, %v1367
        %v1429 = vmul.f32 %v1368, %v1368
        %v1430 = vmul.f32 %v1369, %v1369
        %v1431 = vmul.f32 %v1370, %v1370
        %v1432 = vmul.f32 %v1371, %v1371
        %v1433 = vmul.f32 %v1372, %v1372
        %v1434 = vmul.f32 %v1373, %v1373
        %v1435 = vmul.f32 %v1374, %v1374
        %v1436 = vadd.f32 %v1428, %v1429
        %1437 = vadd.xlane.f32.xlu0 %v1436
        %v1438 = vpop.xlane.xlu0 %1437
        %v1439 = vadd.f32 %v1430, %v1431
        %1440 = vadd.xlane.f32.xlu0 %v1439
        %v1441 = vpop.xlane.xlu0 %1440
        %v1442 = vadd.f32 %v1432, %v1433
        %1443 = vadd.xlane.f32.xlu0 %v1442
        %v1444 = vpop.xlane.xlu0 %1443
        %v1445 = vadd.f32 %v1434, %v1435
        %1446 = vadd.xlane.f32.xlu0 %v1445
        %v1447 = vpop.xlane.xlu0 %1446
        %v1448 = vadd.f32 %v1424, %v1438
        %v1449 = vadd.f32 %v1425, %v1441
        %v1450 = vadd.f32 %v1426, %v1444
        %v1451 = vadd.f32 %v1427, %v1447
        %1452 = vst.msk [vmem:[%s1423] sm:$0xff] %vm1418, %v1448
        %1453 = vst.msk [vmem:[%s1423 + $0x8] sm:$0xff] %vm1418, %v1449
        %1454 = vst.msk [vmem:[%s1423 + $0x10] sm:$0xff] %vm1418, %v1450
        %1455 = vst.msk [vmem:[%s1423 + $0x18] sm:$0xff] %vm1418, %v1451
      $region60: #{residual_block_forward.1} parent=51 // pred_fallthru
        _
      %p1456 = scmp.eq.s32.totalorder %s23, 1
      // Predicated region
      $region65: #{residual_block_forward.1} parent=51 // pred_check
        %p1457 = pneg %p1456
      $region66: #{residual_block_forward.1} parent=51 // pred_check_branch
        %1459 = sbr.rel (%p1457) target = $region68
      $region67: #{residual_block_forward.1} parent=51 // pred_region
        %v1460 = vld [vmem:[#allocation4] sm:$0xff]
        %v1461 = vld [vmem:[#allocation4 + $0x8] sm:$0xff]
        %v1462 = vld [vmem:[#allocation4 + $0x10] sm:$0xff]
        %v1463 = vld [vmem:[#allocation4 + $0x18] sm:$0xff]
        %v1464 = vmul.f32 %v1460, 0.001953125
        %v1465 = vmul.f32 %v1461, 0.001953125
        %v1466 = vmul.f32 %v1462, 0.001953125
        %v1467 = vmul.f32 %v1463, 0.001953125
        %s1468 = scalar_lea.vmem [#allocation4], 32
        %v1469 = vld [vmem:[%s1468] sm:$0xff]
        %v1470 = vld [vmem:[%s1468 + $0x8] sm:$0xff]
        %v1471 = vld [vmem:[%s1468 + $0x10] sm:$0xff]
        %v1472 = vld [vmem:[%s1468 + $0x18] sm:$0xff]
        %v1473 = vmul.f32 %v1469, 0.001953125
        %v1474 = vmul.f32 %v1470, 0.001953125
        %v1475 = vmul.f32 %v1471, 0.001953125
        %v1476 = vmul.f32 %v1472, 0.001953125
        %v1477 = vmul.f32 %v1464, %v1464
        %v1478 = vmul.f32 %v1465, %v1465
        %v1479 = vmul.f32 %v1466, %v1466
        %v1480 = vmul.f32 %v1467, %v1467
        %v1481 = vsub.f32 %v1473, %v1477
        %v1482 = vsub.f32 %v1474, %v1478
        %v1483 = vsub.f32 %v1475, %v1479
        %v1484 = vsub.f32 %v1476, %v1480
        %v1485 = vld [vmem:[%s3] sm:$0xff]
        %v1486 = vld [vmem:[%s3 + $0x8] sm:$0xff]
        %v1487 = vld [vmem:[%s3 + $0x10] sm:$0xff]
        %v1488 = vld [vmem:[%s3 + $0x18] sm:$0xff]
        %v1489 = vadd.f32 %v1481, 1e-05
        %v1490 = vadd.f32 %v1482, 1e-05
        %v1491 = vadd.f32 %v1483, 1e-05
        %v1492 = vadd.f32 %v1484, 1e-05
        %v1493 = vrsqrt.pop %v1489
        %v1494 = vrsqrt.pop %v1490
        %v1495 = vrsqrt.pop %v1491
        %v1496 = vrsqrt.pop %v1492
        %v1497 = vmul.f32 %v1485, %v1493
        %v1498 = vmul.f32 %v1486, %v1494
        %v1499 = vmul.f32 %v1487, %v1495
        %v1500 = vmul.f32 %v1488, %v1496
        %v1501 = vld [vmem:[%s4] sm:$0xff]
        %v1502 = vld [vmem:[%s4 + $0x8] sm:$0xff]
        %v1503 = vld [vmem:[%s4 + $0x10] sm:$0xff]
        %v1504 = vld [vmem:[%s4 + $0x18] sm:$0xff]
        %v1505 = vmul.f32 %v1464, %v1497
        %v1506 = vmul.f32 %v1465, %v1498
        %v1507 = vmul.f32 %v1466, %v1499
        %v1508 = vmul.f32 %v1467, %v1500
        %v1509 = vsub.f32 %v1501, %v1505
        %v1510 = vsub.f32 %v1502, %v1506
        %v1511 = vsub.f32 %v1503, %v1507
        %v1512 = vsub.f32 %v1504, %v1508
        %s1513 = smul.u32 %s24, 8
        %s1514 = smul.addr %s1513, 8
        %s1515 = scalar_lea.vmem [#allocation3], %s1514
        %v1516 = vld [vmem:[%s1515] sm:$0xff]
        %v1517 = vld [vmem:[%s1515 + $0x8] sm:$0xff]
        %v1518 = vld [vmem:[%s1515 + $0x10] sm:$0xff]
        %v1519 = vld [vmem:[%s1515 + $0x18] sm:$0xff]
        %v1520 = vld [vmem:[%s1515 + $0x20] sm:$0xff]
        %v1521 = vld [vmem:[%s1515 + $0x28] sm:$0xff]
        %v1522 = vld [vmem:[%s1515 + $0x30] sm:$0xff]
        %v1523 = vld [vmem:[%s1515 + $0x38] sm:$0xff]
        %1525 = vset.pattern.permute.xlu0 0
        %1526 = vperm.xlu0 %1525, %v1497
        %v1527 = vpop.permute.xlu0 %1526
        %1530 = vset.pattern.permute.xlu0 0
        %1531 = vperm.xlu0 %1530, %v1498
        %v1532 = vpop.permute.xlu0 %1531
        %1535 = vset.pattern.permute.xlu0 0
        %1536 = vperm.xlu0 %1535, %v1499
        %v1537 = vpop.permute.xlu0 %1536
        %1540 = vset.pattern.permute.xlu0 0
        %1541 = vperm.xlu0 %1540, %v1500
        %v1542 = vpop.permute.xlu0 %1541
        %v1544 = vmul.f32 %v1516, %v1527
        %v1545 = vmul.f32 %v1517, %v1527
        %v1546 = vmul.f32 %v1518, %v1532
        %v1547 = vmul.f32 %v1519, %v1532
        %v1548 = vmul.f32 %v1520, %v1537
        %v1549 = vmul.f32 %v1521, %v1537
        %v1550 = vmul.f32 %v1522, %v1542
        %v1551 = vmul.f32 %v1523, %v1542
        %1553 = vset.pattern.permute.xlu0 0
        %1554 = vperm.xlu0 %1553, %v1509
        %v1555 = vpop.permute.xlu0 %1554
        %1558 = vset.pattern.permute.xlu0 0
        %1559 = vperm.xlu0 %1558, %v1510
        %v1560 = vpop.permute.xlu0 %1559
        %1563 = vset.pattern.permute.xlu0 0
        %1564 = vperm.xlu0 %1563, %v1511
        %v1565 = vpop.permute.xlu0 %1564
        %1568 = vset.pattern.permute.xlu0 0
        %1569 = vperm.xlu0 %1568, %v1512
        %v1570 = vpop.permute.xlu0 %1569
        %v1572 = vadd.f32 %v1544, %v1555
        %v1573 = vadd.f32 %v1545, %v1555
        %v1574 = vadd.f32 %v1546, %v1560
        %v1575 = vadd.f32 %v1547, %v1560
        %v1576 = vadd.f32 %v1548, %v1565
        %v1577 = vadd.f32 %v1549, %v1565
        %v1578 = vadd.f32 %v1550, %v1570
        %v1579 = vadd.f32 %v1551, %v1570
        %v1580 = vmax.f32 %v1572, 0.0
        %v1581 = vmax.f32 %v1573, 0.0
        %v1582 = vmax.f32 %v1574, 0.0
        %v1583 = vmax.f32 %v1575, 0.0
        %v1584 = vmax.f32 %v1576, 0.0
        %v1585 = vmax.f32 %v1577, 0.0
        %v1586 = vmax.f32 %v1578, 0.0
        %v1587 = vmax.f32 %v1579, 0.0
        %v1588 = vpack.c.bf16 %v1582, %v1580
        %v1589 = vpack.c.bf16 %v1583, %v1581
        %v1590 = vpack.c.bf16 %v1586, %v1584
        %v1591 = vpack.c.bf16 %v1587, %v1585
        %1592 = vst [vmem:[#allocation2 + $0x8] sm:$0xff] %v1588
        %1593 = vst [vmem:[#allocation2 + $0x10] sm:$0xff] %v1589
        %1594 = vst [vmem:[#allocation2 + $0x28] sm:$0xff] %v1590
        %1595 = vst [vmem:[#allocation2 + $0x30] sm:$0xff] %v1591
        %v1596 = vld [vmem:[#allocation2] sm:$0xff]
        %v1597 = vld [vmem:[#allocation2 + $0x8] sm:$0xff]
        %v1598 = vld [vmem:[#allocation2 + $0x10] sm:$0xff]
        %v1599 = vld [vmem:[#allocation2 + $0x20] sm:$0xff]
        %v1600 = vld [vmem:[#allocation2 + $0x28] sm:$0xff]
        %v1601 = vld [vmem:[#allocation2 + $0x30] sm:$0xff]
        %v1602 = vld [vmem:[%s7] sm:$0x3]
        %v1605 = vunpack.c.l.s4 1966171168
        %v1606 = vunpack.c.0.s8 %v1605
        %v1607 = vlaneseq
        %v1608 = vshrl.u32 %v1607, 7
        %v1609 = vsub.s32 %v1606, %v1608
        %v1610 = vrot.slane %v1602, %v1609
        %v1611 = vcombine.high %v1610, %v1610
        %v1613 = vunpack.c.l.s4 1966171168
        %v1614 = vunpack.c.0.s8 %v1613
        %v1615 = vlaneseq
        %v1616 = vshrl.u32 %v1615, 7
        %v1617 = vsub.s32 %v1614, %v1616
        %v1618 = vrot.slane %v1610, %v1617
        %v1620 = vunpack.c.l.s4 1966171168
        %v1621 = vunpack.c.0.s8 %v1620
        %v1622 = vlaneseq
        %v1623 = vshrl.u32 %v1622, 7
        %v1624 = vsub.s32 %v1621, %v1623
        %v1625 = vrot.slane %v1611, %v1624
        %v1627 = vpack.i.b16 %v1618, %v1618
        %v1629 = vlaneseq
        %v1630 = vshrl.u32 %v1629, 7
        %v1631 = vsub.s32 0, %v1630
        %v1632 = vrot.slane %v1627, %v1631
        %v1634 = vpack.i.b16 %v1625, %v1625
        %v1636 = vlaneseq
        %v1637 = vshrl.u32 %v1636, 7
        %v1638 = vsub.s32 0, %v1637
        %v1639 = vrot.slane %v1634, %v1638
        %1642 = vrot.lane.b32.xlu0 %v1632, 111
        %v1643 = vpop.permute.xlu0 %1642
        %1644 = vrot.lane.b32.xlu0 %v1639, 111
        %v1645 = vpop.permute.xlu0 %1644
        %vm1646 = vcmask 908288
        %v1647 = vsel %vm1646, %v1643, %v1645
        %v1651 = vmul.bf16 %v1596, %v1643
        %v1652 = vmul.bf16 %v1597, %v1647
        %v1653 = vmul.bf16 %v1598, %v1645
        %v1654 = vmul.bf16 %v1599, %v1643
        %v1655 = vmul.bf16 %v1600, %v1647
        %v1656 = vmul.bf16 %v1601, %v1645
        %v1657 = vld [vmem:[%s2] sm:$0xf]
        %v1658 = vld [vmem:[%s2 + $0x4] sm:$0xf]
        %v1659 = vld [vmem:[%s2 + $0x8] sm:$0xf]
        %v1660 = vld [vmem:[%s2 + $0xc] sm:$0xf]
        %s1661 = scalar_lea.vmem %s2, 16
        %v1662 = vld [vmem:[%s1661] sm:$0xf]
        %v1663 = vld [vmem:[%s1661 + $0x4] sm:$0xf]
        %v1664 = vld [vmem:[%s1661 + $0x8] sm:$0xf]
        %v1665 = vld [vmem:[%s1661 + $0xc] sm:$0xf]
        %v1670 = vunpack.c.l.b16 %v1662
        %v1671 = vunpack.c.l.b16 %v1663
        %v1672 = vunpack.c.l.b16 %v1664
        %v1673 = vunpack.c.l.b16 %v1665
        %v1674 = vpack.c.b16 %v1671, %v1670
        %v1675 = vpack.c.b16 %v1673, %v1672
        %1682 = vrot.lane.b32.xlu0 %v1596, 16
        %v1683 = vpop.permute.xlu0 %1682
        %1684 = vrot.lane.b32.xlu0 %v1597, 16
        %v1685 = vpop.permute.xlu0 %1684
        %1686 = vrot.lane.b32.xlu0 %v1598, 16
        %v1687 = vpop.permute.xlu0 %1686
        %1688 = vrot.lane.b32.xlu0 %v1599, 16
        %v1689 = vpop.permute.xlu0 %1688
        %1690 = vrot.lane.b32.xlu0 %v1600, 16
        %v1691 = vpop.permute.xlu0 %1690
        %1692 = vrot.lane.b32.xlu0 %v1601, 16
        %v1693 = vpop.permute.xlu0 %1692
        %vm1694 = vcmask 130048
        %v1695 = vsel %vm1694, %v1683, %v1685
        %v1696 = vsel %vm1694, %v1685, %v1687
        %v1697 = vsel %vm1694, %v1689, %v1691
        %v1698 = vsel %vm1694, %v1691, %v1693
        %vm1703 = vcmask 261120
        %v1705 = vsel %vm1703, %v1674, 0
        %v1708 = vsel %vm1703, %v1675, 0
        %1710 = vmatprep.subr.bf16.mxu0 %v1696
        %1711 = vmatpush1.bf16.msra.mxu0 %v1695
        %1712 = vmatprep.subr.bf16.mxu0 %v1698
        %1713 = vmatpush1.bf16.msra.mxu0 %v1697
        %1714 = vmatprep.subr.bf16.mxu0 0
        %1715 = vmatpush1.bf16.msra.mxu0 0
        %1716 = vmatprep.subr.bf16.mxu0 0
        %1717 = vmatpush1.bf16.msra.mxu0 0
        %1718 = vmatprep.subr.bf16.mxu0 0
        %1719 = vmatpush1.bf16.msra.mxu0 0
        %1720 = vmatprep.subr.bf16.mxu0 0
        %1721 = vmatpush1.bf16.msra.mxu0 0
        %1722 = vmatprep.subr.bf16.mxu0 0
        %1723 = vmatpush1.bf16.msra.mxu0 0
        %1724 = vmatprep.subr.bf16.mxu0 0
        %1725 = vmatpush1.bf16.msra.mxu0 0
        %1726 = vmatprep.subr.bf16.mxu0 0
        %1727 = vmatpush1.bf16.msra.mxu0 0
        %1728 = vmatprep.subr.bf16.mxu0 0
        %1729 = vmatpush1.bf16.msra.mxu0 0
        %1730 = vmatprep.subr.bf16.mxu0 0
        %1731 = vmatpush1.bf16.msra.mxu0 0
        %1732 = vmatprep.subr.bf16.mxu0 0
        %1733 = vmatpush1.bf16.msra.mxu0 0
        %1734 = vmatprep.subr.bf16.mxu0 0
        %1735 = vmatpush1.bf16.msra.mxu0 0
        %1736 = vmatprep.subr.bf16.mxu0 0
        %1737 = vmatpush1.bf16.msra.mxu0 0
        %1738 = vmatprep.subr.bf16.mxu0 0
        %1739 = vmatpush1.bf16.msra.mxu0 0
        %1740 = vmatprep.subr.bf16.mxu0 0
        %1741 = vmatpush1.bf16.msra.mxu0 0
        %1742 = vmatprep.mubr.bf16.mxu0 0
        %1743 = vmatmul.mubr.bf16.gmra.mrb[0].mxu0 %v1705
        %v1744 = vpop.f32.mrb[0].mxu0
        %v1745 = vadd.f32 0.0, %v1744
        %v1746 = vpop.f32.mrb[0].mxu0
        %v1747 = vadd.f32 0.0, %v1746
        %v1748 = vpop.f32.mrb[0].mxu0
        %v1749 = vadd.f32 0.0, %v1748
        %v1750 = vpop.f32.mrb[0].mxu0
        %v1751 = vadd.f32 0.0, %v1750
        %1752 = vmatprep.mubr.bf16.mxu0 0
        %1753 = vmatmul.mubr.bf16.gmra.mrb[0].mxu0 %v1708
        %v1754 = vpop.f32.mrb[0].mxu0
        %v1755 = vadd.f32 0.0, %v1754
        %v1756 = vpop.f32.mrb[0].mxu0
        %v1757 = vadd.f32 0.0, %v1756
        %v1758 = vpop.f32.mrb[0].mxu0
        %v1759 = vadd.f32 0.0, %v1758
        %v1760 = vpop.f32.mrb[0].mxu0
        %v1761 = vadd.f32 0.0, %v1760
        %1762 = vdwg.mxu0
        %v1767 = vunpack.c.l.b16 %v1657
        %v1768 = vunpack.c.l.b16 %v1658
        %v1769 = vunpack.c.l.b16 %v1659
        %v1770 = vunpack.c.l.b16 %v1660
        %v1771 = vpack.c.b16 %v1768, %v1767
        %v1772 = vpack.c.b16 %v1770, %v1769
        %1779 = vrot.lane.b32.xlu0 %v1651, 17
        %v1780 = vpop.permute.xlu0 %1779
        %1781 = vrot.lane.b32.xlu0 %v1652, 17
        %v1782 = vpop.permute.xlu0 %1781
        %1783 = vrot.lane.b32.xlu0 %v1653, 17
        %v1784 = vpop.permute.xlu0 %1783
        %1785 = vrot.lane.b32.xlu0 %v1654, 17
        %v1786 = vpop.permute.xlu0 %1785
        %1787 = vrot.lane.b32.xlu0 %v1655, 17
        %v1788 = vpop.permute.xlu0 %1787
        %1789 = vrot.lane.b32.xlu0 %v1656, 17
        %v1790 = vpop.permute.xlu0 %1789
        %vm1791 = vcmask 138240
        %v1792 = vsel %vm1791, %v1780, %v1782
        %v1793 = vsel %vm1791, %v1782, %v1784
        %v1794 = vsel %vm1791, %v1786, %v1788
        %v1795 = vsel %vm1791, %v1788, %v1790
        %v1801 = vsel %vm1703, %v1771, 0
        %v1804 = vsel %vm1703, %v1772, 0
        %1806 = vmatprep.subr.bf16.mxu0 %v1793
        %1807 = vmatpush1.bf16.msra.mxu0 %v1792
        %1808 = vmatprep.subr.bf16.mxu0 %v1795
        %1809 = vmatpush1.bf16.msra.mxu0 %v1794
        %1810 = vmatprep.subr.bf16.mxu0 0
        %1811 = vmatpush1.bf16.msra.mxu0 0
        %1812 = vmatprep.subr.bf16.mxu0 0
        %1813 = vmatpush1.bf16.msra.mxu0 0
        %1814 = vmatprep.subr.bf16.mxu0 0
        %1815 = vmatpush1.bf16.msra.mxu0 0
        %1816 = vmatprep.subr.bf16.mxu0 0
        %1817 = vmatpush1.bf16.msra.mxu0 0
        %1818 = vmatprep.subr.bf16.mxu0 0
        %1819 = vmatpush1.bf16.msra.mxu0 0
        %1820 = vmatprep.subr.bf16.mxu0 0
        %1821 = vmatpush1.bf16.msra.mxu0 0
        %1822 = vmatprep.subr.bf16.mxu0 0
        %1823 = vmatpush1.bf16.msra.mxu0 0
        %1824 = vmatprep.subr.bf16.mxu0 0
        %1825 = vmatpush1.bf16.msra.mxu0 0
        %1826 = vmatprep.subr.bf16.mxu0 0
        %1827 = vmatpush1.bf16.msra.mxu0 0
        %1828 = vmatprep.subr.bf16.mxu0 0
        %1829 = vmatpush1.bf16.msra.mxu0 0
        %1830 = vmatprep.subr.bf16.mxu0 0
        %1831 = vmatpush1.bf16.msra.mxu0 0
        %1832 = vmatprep.subr.bf16.mxu0 0
        %1833 = vmatpush1.bf16.msra.mxu0 0
        %1834 = vmatprep.subr.bf16.mxu0 0
        %1835 = vmatpush1.bf16.msra.mxu0 0
        %1836 = vmatprep.subr.bf16.mxu0 0
        %1837 = vmatpush1.bf16.msra.mxu0 0
        %1838 = vmatprep.mubr.bf16.mxu0 0
        %1839 = vmatmul.mubr.bf16.gmra.mrb[0].mxu0 %v1801
        %v1840 = vpop.f32.mrb[0].mxu0
        %v1841 = vadd.f32 %v1745, %v1840
        %v1842 = vpop.f32.mrb[0].mxu0
        %v1843 = vadd.f32 %v1747, %v1842
        %v1844 = vpop.f32.mrb[0].mxu0
        %v1845 = vadd.f32 %v1749, %v1844
        %v1846 = vpop.f32.mrb[0].mxu0
        %v1847 = vadd.f32 %v1751, %v1846
        %1848 = vmatprep.mubr.bf16.mxu0 0
        %1849 = vmatmul.mubr.bf16.gmra.mrb[0].mxu0 %v1804
        %v1850 = vpop.f32.mrb[0].mxu0
        %v1851 = vadd.f32 %v1755, %v1850
        %v1852 = vpop.f32.mrb[0].mxu0
        %v1853 = vadd.f32 %v1757, %v1852
        %v1854 = vpop.f32.mrb[0].mxu0
        %v1855 = vadd.f32 %v1759, %v1854
        %v1856 = vpop.f32.mrb[0].mxu0
        %v1857 = vadd.f32 %v1761, %v1856
        %1858 = vdwg.mxu0
        %s1859 = scalar_lea.vmem %s7, 4
        %v1860 = vld [vmem:[%s1859] sm:$0x3]
        %v1863 = vunpack.c.l.s4 1966171168
        %v1864 = vunpack.c.0.s8 %v1863
        %v1865 = vlaneseq
        %v1866 = vshrl.u32 %v1865, 7
        %v1867 = vsub.s32 %v1864, %v1866
        %v1868 = vrot.slane %v1860, %v1867
        %v1869 = vcombine.high %v1868, %v1868
        %v1871 = vunpack.c.l.s4 1966171168
        %v1872 = vunpack.c.0.s8 %v1871
        %v1873 = vlaneseq
        %v1874 = vshrl.u32 %v1873, 7
        %v1875 = vsub.s32 %v1872, %v1874
        %v1876 = vrot.slane %v1868, %v1875
        %v1878 = vunpack.c.l.s4 1966171168
        %v1879 = vunpack.c.0.s8 %v1878
        %v1880 = vlaneseq
        %v1881 = vshrl.u32 %v1880, 7
        %v1882 = vsub.s32 %v1879, %v1881
        %v1883 = vrot.slane %v1869, %v1882
        %v1885 = vpack.i.b16 %v1876, %v1876
        %v1887 = vlaneseq
        %v1888 = vshrl.u32 %v1887, 7
        %v1889 = vsub.s32 0, %v1888
        %v1890 = vrot.slane %v1885, %v1889
        %v1892 = vpack.i.b16 %v1883, %v1883
        %v1894 = vlaneseq
        %v1895 = vshrl.u32 %v1894, 7
        %v1896 = vsub.s32 0, %v1895
        %v1897 = vrot.slane %v1892, %v1896
        %1900 = vrot.lane.b32.xlu0 %v1890, 113
        %v1901 = vpop.permute.xlu0 %1900
        %1902 = vrot.lane.b32.xlu0 %v1897, 113
        %v1903 = vpop.permute.xlu0 %1902
        %vm1904 = vcmask 924672
        %v1905 = vsel %vm1904, %v1901, %v1903
        %v1909 = vmul.bf16 %v1596, %v1901
        %v1910 = vmul.bf16 %v1597, %v1905
        %v1911 = vmul.bf16 %v1598, %v1903
        %v1912 = vmul.bf16 %v1599, %v1901
        %v1913 = vmul.bf16 %v1600, %v1905
        %v1914 = vmul.bf16 %v1601, %v1903
        %s1915 = scalar_lea.vmem %s2, 32
        %v1916 = vld [vmem:[%s1915] sm:$0xf]
        %v1917 = vld [vmem:[%s1915 + $0x4] sm:$0xf]
        %v1918 = vld [vmem:[%s1915 + $0x8] sm:$0xf]
        %v1919 = vld [vmem:[%s1915 + $0xc] sm:$0xf]
        %v1924 = vunpack.c.l.b16 %v1916
        %v1925 = vunpack.c.l.b16 %v1917
        %v1926 = vunpack.c.l.b16 %v1918
        %v1927 = vunpack.c.l.b16 %v1919
        %v1928 = vpack.c.b16 %v1925, %v1924
        %v1929 = vpack.c.b16 %v1927, %v1926
        %1936 = vrot.lane.b32.xlu0 %v1909, 15
        %v1937 = vpop.permute.xlu0 %1936
        %1938 = vrot.lane.b32.xlu0 %v1910, 15
        %v1939 = vpop.permute.xlu0 %1938
        %1940 = vrot.lane.b32.xlu0 %v1911, 15
        %v1941 = vpop.permute.xlu0 %1940
        %1942 = vrot.lane.b32.xlu0 %v1912, 15
        %v1943 = vpop.permute.xlu0 %1942
        %1944 = vrot.lane.b32.xlu0 %v1913, 15
        %v1945 = vpop.permute.xlu0 %1944
        %1946 = vrot.lane.b32.xlu0 %v1914, 15
        %v1947 = vpop.permute.xlu0 %1946
        %vm1948 = vcmask 121856
        %v1949 = vsel %vm1948, %v1937, %v1939
        %v1950 = vsel %vm1948, %v1939, %v1941
        %v1951 = vsel %vm1948, %v1943, %v1945
        %v1952 = vsel %vm1948, %v1945, %v1947
        %v1958 = vsel %vm1703, %v1928, 0
        %v1961 = vsel %vm1703, %v1929, 0
        %1963 = vmatprep.subr.bf16.mxu0 %v1950
        %1964 = vmatpush1.bf16.msra.mxu0 %v1949
        %1965 = vmatprep.subr.bf16.mxu0 %v1952
        %1966 = vmatpush1.bf16.msra.mxu0 %v1951
        %1967 = vmatprep.subr.bf16.mxu0 0
        %1968 = vmatpush1.bf16.msra.mxu0 0
        %1969 = vmatprep.subr.bf16.mxu0 0
        %1970 = vmatpush1.bf16.msra.mxu0 0
        %1971 = vmatprep.subr.bf16.mxu0 0
        %1972 = vmatpush1.bf16.msra.mxu0 0
        %1973 = vmatprep.subr.bf16.mxu0 0
        %1974 = vmatpush1.bf16.msra.mxu0 0
        %1975 = vmatprep.subr.bf16.mxu0 0
        %1976 = vmatpush1.bf16.msra.mxu0 0
        %1977 = vmatprep.subr.bf16.mxu0 0
        %1978 = vmatpush1.bf16.msra.mxu0 0
        %1979 = vmatprep.subr.bf16.mxu0 0
        %1980 = vmatpush1.bf16.msra.mxu0 0
        %1981 = vmatprep.subr.bf16.mxu0 0
        %1982 = vmatpush1.bf16.msra.mxu0 0
        %1983 = vmatprep.subr.bf16.mxu0 0
        %1984 = vmatpush1.bf16.msra.mxu0 0
        %1985 = vmatprep.subr.bf16.mxu0 0
        %1986 = vmatpush1.bf16.msra.mxu0 0
        %1987 = vmatprep.subr.bf16.mxu0 0
        %1988 = vmatpush1.bf16.msra.mxu0 0
        %1989 = vmatprep.subr.bf16.mxu0 0
        %1990 = vmatpush1.bf16.msra.mxu0 0
        %1991 = vmatprep.subr.bf16.mxu0 0
        %1992 = vmatpush1.bf16.msra.mxu0 0
        %1993 = vmatprep.subr.bf16.mxu0 0
        %1994 = vmatpush1.bf16.msra.mxu0 0
        %1995 = vmatprep.mubr.bf16.mxu0 0
        %1996 = vmatmul.mubr.bf16.gmra.mrb[0].mxu0 %v1958
        %v1997 = vpop.f32.mrb[0].mxu0
        %v1998 = vadd.f32 0.0, %v1997
        %v1999 = vpop.f32.mrb[0].mxu0
        %v2000 = vadd.f32 0.0, %v1999
        %v2001 = vpop.f32.mrb[0].mxu0
        %v2002 = vadd.f32 0.0, %v2001
        %v2003 = vpop.f32.mrb[0].mxu0
        %v2004 = vadd.f32 0.0, %v2003
        %2005 = vmatprep.mubr.bf16.mxu0 0
        %2006 = vmatmul.mubr.bf16.gmra.mrb[0].mxu0 %v1961
        %v2007 = vpop.f32.mrb[0].mxu0
        %v2008 = vadd.f32 0.0, %v2007
        %v2009 = vpop.f32.mrb[0].mxu0
        %v2010 = vadd.f32 0.0, %v2009
        %v2011 = vpop.f32.mrb[0].mxu0
        %v2012 = vadd.f32 0.0, %v2011
        %v2013 = vpop.f32.mrb[0].mxu0
        %v2014 = vadd.f32 0.0, %v2013
        %2015 = vdwg.mxu0
        %v2016 = vadd.f32 %v1841, %v1998
        %v2017 = vadd.f32 %v1843, %v2000
        %v2018 = vadd.f32 %v1845, %v2002
        %v2019 = vadd.f32 %v1847, %v2004
        %v2020 = vadd.f32 %v1851, %v2008
        %v2021 = vadd.f32 %v1853, %v2010
        %v2022 = vadd.f32 %v1855, %v2012
        %v2023 = vadd.f32 %v1857, %v2014
        %v2024 = vld [vmem:[#allocation2] sm:$0xff]
        %v2025 = vld [vmem:[#allocation2 + $0x8] sm:$0xff]
        %v2026 = vld [vmem:[#allocation2 + $0x10] sm:$0xff]
        %v2027 = vld [vmem:[#allocation2 + $0x20] sm:$0xff]
        %v2028 = vld [vmem:[#allocation2 + $0x28] sm:$0xff]
        %v2029 = vld [vmem:[#allocation2 + $0x30] sm:$0xff]
        %2030 = vrot.lane.b32.xlu0 %v1632, 127
        %v2031 = vpop.permute.xlu0 %2030
        %2032 = vrot.lane.b32.xlu0 %v1639, 127
        %v2033 = vpop.permute.xlu0 %2032
        %vm2034 = vcmask 1039360
        %v2035 = vsel %vm2034, %v2031, %v2033
        %v2039 = vmul.bf16 %v2024, %v2031
        %v2040 = vmul.bf16 %v2025, %v2035
        %v2041 = vmul.bf16 %v2026, %v2033
        %v2042 = vmul.bf16 %v2027, %v2031
        %v2043 = vmul.bf16 %v2028, %v2035
        %v2044 = vmul.bf16 %v2029, %v2033
        %s2045 = scalar_lea.vmem %s2, 48
        %v2046 = vld [vmem:[%s2045] sm:$0xf]
        %v2047 = vld [vmem:[%s2045 + $0x4] sm:$0xf]
        %v2048 = vld [vmem:[%s2045 + $0x8] sm:$0xf]
        %v2049 = vld [vmem:[%s2045 + $0xc] sm:$0xf]
        %v2054 = vunpack.c.l.b16 %v2046
        %v2055 = vunpack.c.l.b16 %v2047
        %v2056 = vunpack.c.l.b16 %v2048
        %v2057 = vunpack.c.l.b16 %v2049
        %v2058 = vpack.c.b16 %v2055, %v2054
        %v2059 = vpack.c.b16 %v2057, %v2056
        %2066 = vrot.lane.b32.xlu0 %v2039, 1
        %v2067 = vpop.permute.xlu0 %2066
        %2068 = vrot.lane.b32.xlu0 %v2040, 1
        %v2069 = vpop.permute.xlu0 %2068
        %2070 = vrot.lane.b32.xlu0 %v2041, 1
        %v2071 = vpop.permute.xlu0 %2070
        %2072 = vrot.lane.b32.xlu0 %v2042, 1
        %v2073 = vpop.permute.xlu0 %2072
        %2074 = vrot.lane.b32.xlu0 %v2043, 1
        %v2075 = vpop.permute.xlu0 %2074
        %2076 = vrot.lane.b32.xlu0 %v2044, 1
        %v2077 = vpop.permute.xlu0 %2076
        %vm2078 = vcmask 7168
        %v2079 = vsel %vm2078, %v2067, %v2069
        %v2080 = vsel %vm2078, %v2069, %v2071
        %v2081 = vsel %vm2078, %v2073, %v2075
        %v2082 = vsel %vm2078, %v2075, %v2077
        %v2088 = vsel %vm1703, %v2058, 0
        %v2091 = vsel %vm1703, %v2059, 0
        %2093 = vmatprep.subr.bf16.mxu0 %v2080
        %2094 = vmatpush1.bf16.msra.mxu0 %v2079
        %2095 = vmatprep.subr.bf16.mxu0 %v2082
        %2096 = vmatpush1.bf16.msra.mxu0 %v2081
        %2097 = vmatprep.subr.bf16.mxu0 0
        %2098 = vmatpush1.bf16.msra.mxu0 0
        %2099 = vmatprep.subr.bf16.mxu0 0
        %2100 = vmatpush1.bf16.msra.mxu0 0
        %2101 = vmatprep.subr.bf16.mxu0 0
        %2102 = vmatpush1.bf16.msra.mxu0 0
        %2103 = vmatprep.subr.bf16.mxu0 0
        %2104 = vmatpush1.bf16.msra.mxu0 0
        %2105 = vmatprep.subr.bf16.mxu0 0
        %2106 = vmatpush1.bf16.msra.mxu0 0
        %2107 = vmatprep.subr.bf16.mxu0 0
        %2108 = vmatpush1.bf16.msra.mxu0 0
        %2109 = vmatprep.subr.bf16.mxu0 0
        %2110 = vmatpush1.bf16.msra.mxu0 0
        %2111 = vmatprep.subr.bf16.mxu0 0
        %2112 = vmatpush1.bf16.msra.mxu0 0
        %2113 = vmatprep.subr.bf16.mxu0 0
        %2114 = vmatpush1.bf16.msra.mxu0 0
        %2115 = vmatprep.subr.bf16.mxu0 0
        %2116 = vmatpush1.bf16.msra.mxu0 0
        %2117 = vmatprep.subr.bf16.mxu0 0
        %2118 = vmatpush1.bf16.msra.mxu0 0
        %2119 = vmatprep.subr.bf16.mxu0 0
        %2120 = vmatpush1.bf16.msra.mxu0 0
        %2121 = vmatprep.subr.bf16.mxu0 0
        %2122 = vmatpush1.bf16.msra.mxu0 0
        %2123 = vmatprep.subr.bf16.mxu0 0
        %2124 = vmatpush1.bf16.msra.mxu0 0
        %2125 = vmatprep.mubr.bf16.mxu0 0
        %2126 = vmatmul.mubr.bf16.gmra.mrb[0].mxu0 %v2088
        %v2127 = vpop.f32.mrb[0].mxu0
        %v2128 = vadd.f32 0.0, %v2127
        %v2129 = vpop.f32.mrb[0].mxu0
        %v2130 = vadd.f32 0.0, %v2129
        %v2131 = vpop.f32.mrb[0].mxu0
        %v2132 = vadd.f32 0.0, %v2131
        %v2133 = vpop.f32.mrb[0].mxu0
        %v2134 = vadd.f32 0.0, %v2133
        %2135 = vmatprep.mubr.bf16.mxu0 0
        %2136 = vmatmul.mubr.bf16.gmra.mrb[0].mxu0 %v2091
        %v2137 = vpop.f32.mrb[0].mxu0
        %v2138 = vadd.f32 0.0, %v2137
        %v2139 = vpop.f32.mrb[0].mxu0
        %v2140 = vadd.f32 0.0, %v2139
        %v2141 = vpop.f32.mrb[0].mxu0
        %v2142 = vadd.f32 0.0, %v2141
        %v2143 = vpop.f32.mrb[0].mxu0
        %v2144 = vadd.f32 0.0, %v2143
        %2145 = vdwg.mxu0
        %v2146 = vadd.f32 %v2016, %v2128
        %v2147 = vadd.f32 %v2017, %v2130
        %v2148 = vadd.f32 %v2018, %v2132
        %v2149 = vadd.f32 %v2019, %v2134
        %v2150 = vadd.f32 %v2020, %v2138
        %v2151 = vadd.f32 %v2021, %v2140
        %v2152 = vadd.f32 %v2022, %v2142
        %v2153 = vadd.f32 %v2023, %v2144
        %s2154 = scalar_lea.vmem %s2, 64
        %v2155 = vld [vmem:[%s2154] sm:$0xf]
        %v2156 = vld [vmem:[%s2154 + $0x4] sm:$0xf]
        %v2157 = vld [vmem:[%s2154 + $0x8] sm:$0xf]
        %v2158 = vld [vmem:[%s2154 + $0xc] sm:$0xf]
        %v2163 = vunpack.c.l.b16 %v2155
        %v2164 = vunpack.c.l.b16 %v2156
        %v2165 = vunpack.c.l.b16 %v2157
        %v2166 = vunpack.c.l.b16 %v2158
        %v2167 = vpack.c.b16 %v2164, %v2163
        %v2168 = vpack.c.b16 %v2166, %v2165
        %v2170 = vsel %vm1703, %v2167, 0
        %v2173 = vsel %vm1703, %v2168, 0
        %2175 = vmatprep.subr.bf16.mxu0 %v2026
        %2176 = vmatpush1.bf16.msra.mxu0 %v2025
        %2177 = vmatprep.subr.bf16.mxu0 %v2029
        %2178 = vmatpush1.bf16.msra.mxu0 %v2028
        %2179 = vmatprep.subr.bf16.mxu0 0
        %2180 = vmatpush1.bf16.msra.mxu0 0
        %2181 = vmatprep.subr.bf16.mxu0 0
        %2182 = vmatpush1.bf16.msra.mxu0 0
        %2183 = vmatprep.subr.bf16.mxu0 0
        %2184 = vmatpush1.bf16.msra.mxu0 0
        %2185 = vmatprep.subr.bf16.mxu0 0
        %2186 = vmatpush1.bf16.msra.mxu0 0
        %2187 = vmatprep.subr.bf16.mxu0 0
        %2188 = vmatpush1.bf16.msra.mxu0 0
        %2189 = vmatprep.subr.bf16.mxu0 0
        %2190 = vmatpush1.bf16.msra.mxu0 0
        %2191 = vmatprep.subr.bf16.mxu0 0
        %2192 = vmatpush1.bf16.msra.mxu0 0
        %2193 = vmatprep.subr.bf16.mxu0 0
        %2194 = vmatpush1.bf16.msra.mxu0 0
        %2195 = vmatprep.subr.bf16.mxu0 0
        %2196 = vmatpush1.bf16.msra.mxu0 0
        %2197 = vmatprep.subr.bf16.mxu0 0
        %2198 = vmatpush1.bf16.msra.mxu0 0
        %2199 = vmatprep.subr.bf16.mxu0 0
        %2200 = vmatpush1.bf16.msra.mxu0 0
        %2201 = vmatprep.subr.bf16.mxu0 0
        %2202 = vmatpush1.bf16.msra.mxu0 0
        %2203 = vmatprep.subr.bf16.mxu0 0
        %2204 = vmatpush1.bf16.msra.mxu0 0
        %2205 = vmatprep.subr.bf16.mxu0 0
        %2206 = vmatpush1.bf16.msra.mxu0 0
        %2207 = vmatprep.mubr.bf16.mxu0 0
        %2208 = vmatmul.mubr.bf16.gmra.mrb[0].mxu0 %v2170
        %v2209 = vpop.f32.mrb[0].mxu0
        %v2210 = vadd.f32 0.0, %v2209
        %v2211 = vpop.f32.mrb[0].mxu0
        %v2212 = vadd.f32 0.0, %v2211
        %v2213 = vpop.f32.mrb[0].mxu0
        %v2214 = vadd.f32 0.0, %v2213
        %v2215 = vpop.f32.mrb[0].mxu0
        %v2216 = vadd.f32 0.0, %v2215
        %2217 = vmatprep.mubr.bf16.mxu0 0
        %2218 = vmatmul.mubr.bf16.gmra.mrb[0].mxu0 %v2173
        %v2219 = vpop.f32.mrb[0].mxu0
        %v2220 = vadd.f32 0.0, %v2219
        %v2221 = vpop.f32.mrb[0].mxu0
        %v2222 = vadd.f32 0.0, %v2221
        %v2223 = vpop.f32.mrb[0].mxu0
        %v2224 = vadd.f32 0.0, %v2223
        %v2225 = vpop.f32.mrb[0].mxu0
        %v2226 = vadd.f32 0.0, %v2225
        %2227 = vdwg.mxu0
        %v2228 = vadd.f32 %v2146, %v2210
        %v2229 = vadd.f32 %v2147, %v2212
        %v2230 = vadd.f32 %v2148, %v2214
        %v2231 = vadd.f32 %v2149, %v2216
        %v2232 = vadd.f32 %v2150, %v2220
        %v2233 = vadd.f32 %v2151, %v2222
        %v2234 = vadd.f32 %v2152, %v2224
        %v2235 = vadd.f32 %v2153, %v2226
        %v2236 = vld [vmem:[#allocation2 + $0x8] sm:$0xff]
        %v2237 = vld [vmem:[#allocation2 + $0x10] sm:$0xff]
        %v2238 = vld [vmem:[#allocation2 + $0x18] sm:$0xff]
        %v2239 = vld [vmem:[#allocation2 + $0x28] sm:$0xff]
        %v2240 = vld [vmem:[#allocation2 + $0x30] sm:$0xff]
        %v2241 = vld [vmem:[#allocation2 + $0x38] sm:$0xff]
        %2242 = vrot.lane.b32.xlu0 %v1890, 1
        %v2243 = vpop.permute.xlu0 %2242
        %2244 = vrot.lane.b32.xlu0 %v1897, 1
        %v2245 = vpop.permute.xlu0 %2244
        %v2246 = vsel %vm2078, %v2243, %v2245
        %v2250 = vmul.bf16 %v2236, %v2243
        %v2251 = vmul.bf16 %v2237, %v2246
        %v2252 = vmul.bf16 %v2238, %v2245
        %v2253 = vmul.bf16 %v2239, %v2243
        %v2254 = vmul.bf16 %v2240, %v2246
        %v2255 = vmul.bf16 %v2241, %v2245
        %s2256 = scalar_lea.vmem %s2, 80
        %v2257 = vld [vmem:[%s2256] sm:$0xf]
        %v2258 = vld [vmem:[%s2256 + $0x4] sm:$0xf]
        %v2259 = vld [vmem:[%s2256 + $0x8] sm:$0xf]
        %v2260 = vld [vmem:[%s2256 + $0xc] sm:$0xf]
        %v2265 = vunpack.c.l.b16 %v2257
        %v2266 = vunpack.c.l.b16 %v2258
        %v2267 = vunpack.c.l.b16 %v2259
        %v2268 = vunpack.c.l.b16 %v2260
        %v2269 = vpack.c.b16 %v2266, %v2265
        %v2270 = vpack.c.b16 %v2268, %v2267
        %2277 = vrot.lane.b32.xlu0 %v2250, 127
        %v2278 = vpop.permute.xlu0 %2277
        %2279 = vrot.lane.b32.xlu0 %v2251, 127
        %v2280 = vpop.permute.xlu0 %2279
        %2281 = vrot.lane.b32.xlu0 %v2252, 127
        %v2282 = vpop.permute.xlu0 %2281
        %2283 = vrot.lane.b32.xlu0 %v2253, 127
        %v2284 = vpop.permute.xlu0 %2283
        %2285 = vrot.lane.b32.xlu0 %v2254, 127
        %v2286 = vpop.permute.xlu0 %2285
        %2287 = vrot.lane.b32.xlu0 %v2255, 127
        %v2288 = vpop.permute.xlu0 %2287
        %v2289 = vsel %vm2034, %v2278, %v2280
        %v2290 = vsel %vm2034, %v2280, %v2282
        %v2291 = vsel %vm2034, %v2284, %v2286
        %v2292 = vsel %vm2034, %v2286, %v2288
        %v2298 = vsel %vm1703, %v2269, 0
        %v2301 = vsel %vm1703, %v2270, 0
        %2303 = vmatprep.subr.bf16.mxu0 %v2290
        %2304 = vmatpush1.bf16.msra.mxu0 %v2289
        %2305 = vmatprep.subr.bf16.mxu0 %v2292
        %2306 = vmatpush1.bf16.msra.mxu0 %v2291
        %2307 = vmatprep.subr.bf16.mxu0 0
        %2308 = vmatpush1.bf16.msra.mxu0 0
        %2309 = vmatprep.subr.bf16.mxu0 0
        %2310 = vmatpush1.bf16.msra.mxu0 0
        %2311 = vmatprep.subr.bf16.mxu0 0
        %2312 = vmatpush1.bf16.msra.mxu0 0
        %2313 = vmatprep.subr.bf16.mxu0 0
        %2314 = vmatpush1.bf16.msra.mxu0 0
        %2315 = vmatprep.subr.bf16.mxu0 0
        %2316 = vmatpush1.bf16.msra.mxu0 0
        %2317 = vmatprep.subr.bf16.mxu0 0
        %2318 = vmatpush1.bf16.msra.mxu0 0
        %2319 = vmatprep.subr.bf16.mxu0 0
        %2320 = vmatpush1.bf16.msra.mxu0 0
        %2321 = vmatprep.subr.bf16.mxu0 0
        %2322 = vmatpush1.bf16.msra.mxu0 0
        %2323 = vmatprep.subr.bf16.mxu0 0
        %2324 = vmatpush1.bf16.msra.mxu0 0
        %2325 = vmatprep.subr.bf16.mxu0 0
        %2326 = vmatpush1.bf16.msra.mxu0 0
        %2327 = vmatprep.subr.bf16.mxu0 0
        %2328 = vmatpush1.bf16.msra.mxu0 0
        %2329 = vmatprep.subr.bf16.mxu0 0
        %2330 = vmatpush1.bf16.msra.mxu0 0
        %2331 = vmatprep.subr.bf16.mxu0 0
        %2332 = vmatpush1.bf16.msra.mxu0 0
        %2333 = vmatprep.subr.bf16.mxu0 0
        %2334 = vmatpush1.bf16.msra.mxu0 0
        %2335 = vmatprep.mubr.bf16.mxu0 0
        %2336 = vmatmul.mubr.bf16.gmra.mrb[0].mxu0 %v2298
        %v2337 = vpop.f32.mrb[0].mxu0
        %v2338 = vadd.f32 0.0, %v2337
        %v2339 = vpop.f32.mrb[0].mxu0
        %v2340 = vadd.f32 0.0, %v2339
        %v2341 = vpop.f32.mrb[0].mxu0
        %v2342 = vadd.f32 0.0, %v2341
        %v2343 = vpop.f32.mrb[0].mxu0
        %v2344 = vadd.f32 0.0, %v2343
        %2345 = vmatprep.mubr.bf16.mxu0 0
        %2346 = vmatmul.mubr.bf16.gmra.mrb[0].mxu0 %v2301
        %v2347 = vpop.f32.mrb[0].mxu0
        %v2348 = vadd.f32 0.0, %v2347
        %v2349 = vpop.f32.mrb[0].mxu0
        %v2350 = vadd.f32 0.0, %v2349
        %v2351 = vpop.f32.mrb[0].mxu0
        %v2352 = vadd.f32 0.0, %v2351
        %v2353 = vpop.f32.mrb[0].mxu0
        %v2354 = vadd.f32 0.0, %v2353
        %2355 = vdwg.mxu0
        %v2356 = vadd.f32 %v2228, %v2338
        %v2357 = vadd.f32 %v2229, %v2340
        %v2358 = vadd.f32 %v2230, %v2342
        %v2359 = vadd.f32 %v2231, %v2344
        %v2360 = vadd.f32 %v2232, %v2348
        %v2361 = vadd.f32 %v2233, %v2350
        %v2362 = vadd.f32 %v2234, %v2352
        %v2363 = vadd.f32 %v2235, %v2354
        %2364 = vrot.lane.b32.xlu0 %v1632, 15
        %v2365 = vpop.permute.xlu0 %2364
        %2366 = vrot.lane.b32.xlu0 %v1639, 15
        %v2367 = vpop.permute.xlu0 %2366
        %v2368 = vsel %vm1948, %v2365, %v2367
        %v2372 = vmul.bf16 %v2236, %v2365
        %v2373 = vmul.bf16 %v2237, %v2368
        %v2374 = vmul.bf16 %v2238, %v2367
        %v2375 = vmul.bf16 %v2239, %v2365
        %v2376 = vmul.bf16 %v2240, %v2368
        %v2377 = vmul.bf16 %v2241, %v2367
        %s2378 = scalar_lea.vmem %s2, 96
        %v2379 = vld [vmem:[%s2378] sm:$0xf]
        %v2380 = vld [vmem:[%s2378 + $0x4] sm:$0xf]
        %v2381 = vld [vmem:[%s2378 + $0x8] sm:$0xf]
        %v2382 = vld [vmem:[%s2378 + $0xc] sm:$0xf]
        %v2387 = vunpack.c.l.b16 %v2379
        %v2388 = vunpack.c.l.b16 %v2380
        %v2389 = vunpack.c.l.b16 %v2381
        %v2390 = vunpack.c.l.b16 %v2382
        %v2391 = vpack.c.b16 %v2388, %v2387
        %v2392 = vpack.c.b16 %v2390, %v2389
        %2399 = vrot.lane.b32.xlu0 %v2372, 113
        %v2400 = vpop.permute.xlu0 %2399
        %2401 = vrot.lane.b32.xlu0 %v2373, 113
        %v2402 = vpop.permute.xlu0 %2401
        %2403 = vrot.lane.b32.xlu0 %v2374, 113
        %v2404 = vpop.permute.xlu0 %2403
        %2405 = vrot.lane.b32.xlu0 %v2375, 113
        %v2406 = vpop.permute.xlu0 %2405
        %2407 = vrot.lane.b32.xlu0 %v2376, 113
        %v2408 = vpop.permute.xlu0 %2407
        %2409 = vrot.lane.b32.xlu0 %v2377, 113
        %v2410 = vpop.permute.xlu0 %2409
        %v2411 = vsel %vm1904, %v2400, %v2402
        %v2412 = vsel %vm1904, %v2402, %v2404
        %v2413 = vsel %vm1904, %v2406, %v2408
        %v2414 = vsel %vm1904, %v2408, %v2410
        %v2420 = vsel %vm1703, %v2391, 0
        %v2423 = vsel %vm1703, %v2392, 0
        %2425 = vmatprep.subr.bf16.mxu0 %v2412
        %2426 = vmatpush1.bf16.msra.mxu0 %v2411
        %2427 = vmatprep.subr.bf16.mxu0 %v2414
        %2428 = vmatpush1.bf16.msra.mxu0 %v2413
        %2429 = vmatprep.subr.bf16.mxu0 0
        %2430 = vmatpush1.bf16.msra.mxu0 0
        %2431 = vmatprep.subr.bf16.mxu0 0
        %2432 = vmatpush1.bf16.msra.mxu0 0
        %2433 = vmatprep.subr.bf16.mxu0 0
        %2434 = vmatpush1.bf16.msra.mxu0 0
        %2435 = vmatprep.subr.bf16.mxu0 0
        %2436 = vmatpush1.bf16.msra.mxu0 0
        %2437 = vmatprep.subr.bf16.mxu0 0
        %2438 = vmatpush1.bf16.msra.mxu0 0
        %2439 = vmatprep.subr.bf16.mxu0 0
        %2440 = vmatpush1.bf16.msra.mxu0 0
        %2441 = vmatprep.subr.bf16.mxu0 0
        %2442 = vmatpush1.bf16.msra.mxu0 0
        %2443 = vmatprep.subr.bf16.mxu0 0
        %2444 = vmatpush1.bf16.msra.mxu0 0
        %2445 = vmatprep.subr.bf16.mxu0 0
        %2446 = vmatpush1.bf16.msra.mxu0 0
        %2447 = vmatprep.subr.bf16.mxu0 0
        %2448 = vmatpush1.bf16.msra.mxu0 0
        %2449 = vmatprep.subr.bf16.mxu0 0
        %2450 = vmatpush1.bf16.msra.mxu0 0
        %2451 = vmatprep.subr.bf16.mxu0 0
        %2452 = vmatpush1.bf16.msra.mxu0 0
        %2453 = vmatprep.subr.bf16.mxu0 0
        %2454 = vmatpush1.bf16.msra.mxu0 0
        %2455 = vmatprep.subr.bf16.mxu0 0
        %2456 = vmatpush1.bf16.msra.mxu0 0
        %2457 = vmatprep.mubr.bf16.mxu0 0
        %2458 = vmatmul.mubr.bf16.gmra.mrb[0].mxu0 %v2420
        %v2459 = vpop.f32.mrb[0].mxu0
        %v2460 = vadd.f32 0.0, %v2459
        %v2461 = vpop.f32.mrb[0].mxu0
        %v2462 = vadd.f32 0.0, %v2461
        %v2463 = vpop.f32.mrb[0].mxu0
        %v2464 = vadd.f32 0.0, %v2463
        %v2465 = vpop.f32.mrb[0].mxu0
        %v2466 = vadd.f32 0.0, %v2465
        %2467 = vmatprep.mubr.bf16.mxu0 0
        %2468 = vmatmul.mubr.bf16.gmra.mrb[0].mxu0 %v2423
        %v2469 = vpop.f32.mrb[0].mxu0
        %v2470 = vadd.f32 0.0, %v2469
        %v2471 = vpop.f32.mrb[0].mxu0
        %v2472 = vadd.f32 0.0, %v2471
        %v2473 = vpop.f32.mrb[0].mxu0
        %v2474 = vadd.f32 0.0, %v2473
        %v2475 = vpop.f32.mrb[0].mxu0
        %v2476 = vadd.f32 0.0, %v2475
        %2477 = vdwg.mxu0
        %v2478 = vadd.f32 %v2356, %v2460
        %v2479 = vadd.f32 %v2357, %v2462
        %v2480 = vadd.f32 %v2358, %v2464
        %v2481 = vadd.f32 %v2359, %v2466
        %v2482 = vadd.f32 %v2360, %v2470
        %v2483 = vadd.f32 %v2361, %v2472
        %v2484 = vadd.f32 %v2362, %v2474
        %v2485 = vadd.f32 %v2363, %v2476
        %s2486 = scalar_lea.vmem %s2, 112
        %v2487 = vld [vmem:[%s2486] sm:$0xf]
        %v2488 = vld [vmem:[%s2486 + $0x4] sm:$0xf]
        %v2489 = vld [vmem:[%s2486 + $0x8] sm:$0xf]
        %v2490 = vld [vmem:[%s2486 + $0xc] sm:$0xf]
        %v2495 = vunpack.c.l.b16 %v2487
        %v2496 = vunpack.c.l.b16 %v2488
        %v2497 = vunpack.c.l.b16 %v2489
        %v2498 = vunpack.c.l.b16 %v2490
        %v2499 = vpack.c.b16 %v2496, %v2495
        %v2500 = vpack.c.b16 %v2498, %v2497
        %2507 = vrot.lane.b32.xlu0 %v2236, 112
        %v2508 = vpop.permute.xlu0 %2507
        %2509 = vrot.lane.b32.xlu0 %v2237, 112
        %v2510 = vpop.permute.xlu0 %2509
        %2511 = vrot.lane.b32.xlu0 %v2238, 112
        %v2512 = vpop.permute.xlu0 %2511
        %2513 = vrot.lane.b32.xlu0 %v2239, 112
        %v2514 = vpop.permute.xlu0 %2513
        %2515 = vrot.lane.b32.xlu0 %v2240, 112
        %v2516 = vpop.permute.xlu0 %2515
        %2517 = vrot.lane.b32.xlu0 %v2241, 112
        %v2518 = vpop.permute.xlu0 %2517
        %vm2519 = vcmask 916480
        %v2520 = vsel %vm2519, %v2508, %v2510
        %v2521 = vsel %vm2519, %v2510, %v2512
        %v2522 = vsel %vm2519, %v2514, %v2516
        %v2523 = vsel %vm2519, %v2516, %v2518
        %v2529 = vsel %vm1703, %v2499, 0
        %v2532 = vsel %vm1703, %v2500, 0
        %2534 = vmatprep.subr.bf16.mxu0 %v2521
        %2535 = vmatpush1.bf16.msra.mxu0 %v2520
        %2536 = vmatprep.subr.bf16.mxu0 %v2523
        %2537 = vmatpush1.bf16.msra.mxu0 %v2522
        %2538 = vmatprep.subr.bf16.mxu0 0
        %2539 = vmatpush1.bf16.msra.mxu0 0
        %2540 = vmatprep.subr.bf16.mxu0 0
        %2541 = vmatpush1.bf16.msra.mxu0 0
        %2542 = vmatprep.subr.bf16.mxu0 0
        %2543 = vmatpush1.bf16.msra.mxu0 0
        %2544 = vmatprep.subr.bf16.mxu0 0
        %2545 = vmatpush1.bf16.msra.mxu0 0
        %2546 = vmatprep.subr.bf16.mxu0 0
        %2547 = vmatpush1.bf16.msra.mxu0 0
        %2548 = vmatprep.subr.bf16.mxu0 0
        %2549 = vmatpush1.bf16.msra.mxu0 0
        %2550 = vmatprep.subr.bf16.mxu0 0
        %2551 = vmatpush1.bf16.msra.mxu0 0
        %2552 = vmatprep.subr.bf16.mxu0 0
        %2553 = vmatpush1.bf16.msra.mxu0 0
        %2554 = vmatprep.subr.bf16.mxu0 0
        %2555 = vmatpush1.bf16.msra.mxu0 0
        %2556 = vmatprep.subr.bf16.mxu0 0
        %2557 = vmatpush1.bf16.msra.mxu0 0
        %2558 = vmatprep.subr.bf16.mxu0 0
        %2559 = vmatpush1.bf16.msra.mxu0 0
        %2560 = vmatprep.subr.bf16.mxu0 0
        %2561 = vmatpush1.bf16.msra.mxu0 0
        %2562 = vmatprep.subr.bf16.mxu0 0
        %2563 = vmatpush1.bf16.msra.mxu0 0
        %2564 = vmatprep.subr.bf16.mxu0 0
        %2565 = vmatpush1.bf16.msra.mxu0 0
        %2566 = vmatprep.mubr.bf16.mxu0 0
        %2567 = vmatmul.mubr.bf16.gmra.mrb[0].mxu0 %v2529
        %v2568 = vpop.f32.mrb[0].mxu0
        %v2569 = vadd.f32 0.0, %v2568
        %v2570 = vpop.f32.mrb[0].mxu0
        %v2571 = vadd.f32 0.0, %v2570
        %v2572 = vpop.f32.mrb[0].mxu0
        %v2573 = vadd.f32 0.0, %v2572
        %v2574 = vpop.f32.mrb[0].mxu0
        %v2575 = vadd.f32 0.0, %v2574
        %2576 = vmatprep.mubr.bf16.mxu0 0
        %2577 = vmatmul.mubr.bf16.gmra.mrb[0].mxu0 %v2532
        %v2578 = vpop.f32.mrb[0].mxu0
        %v2579 = vadd.f32 0.0, %v2578
        %v2580 = vpop.f32.mrb[0].mxu0
        %v2581 = vadd.f32 0.0, %v2580
        %v2582 = vpop.f32.mrb[0].mxu0
        %v2583 = vadd.f32 0.0, %v2582
        %v2584 = vpop.f32.mrb[0].mxu0
        %v2585 = vadd.f32 0.0, %v2584
        %2586 = vdwg.mxu0
        %v2587 = vadd.f32 %v2478, %v2569
        %v2588 = vadd.f32 %v2479, %v2571
        %v2589 = vadd.f32 %v2480, %v2573
        %v2590 = vadd.f32 %v2481, %v2575
        %v2591 = vadd.f32 %v2482, %v2579
        %v2592 = vadd.f32 %v2483, %v2581
        %v2593 = vadd.f32 %v2484, %v2583
        %v2594 = vadd.f32 %v2485, %v2585
        %2595 = vrot.lane.b32.xlu0 %v1890, 17
        %v2596 = vpop.permute.xlu0 %2595
        %2597 = vrot.lane.b32.xlu0 %v1897, 17
        %v2598 = vpop.permute.xlu0 %2597
        %v2599 = vsel %vm1791, %v2596, %v2598
        %v2603 = vmul.bf16 %v2236, %v2596
        %v2604 = vmul.bf16 %v2237, %v2599
        %v2605 = vmul.bf16 %v2238, %v2598
        %v2606 = vmul.bf16 %v2239, %v2596
        %v2607 = vmul.bf16 %v2240, %v2599
        %v2608 = vmul.bf16 %v2241, %v2598
        %s2609 = scalar_lea.vmem %s2, 128
        %v2610 = vld [vmem:[%s2609] sm:$0xf]
        %v2611 = vld [vmem:[%s2609 + $0x4] sm:$0xf]
        %v2612 = vld [vmem:[%s2609 + $0x8] sm:$0xf]
        %v2613 = vld [vmem:[%s2609 + $0xc] sm:$0xf]
        %v2618 = vunpack.c.l.b16 %v2610
        %v2619 = vunpack.c.l.b16 %v2611
        %v2620 = vunpack.c.l.b16 %v2612
        %v2621 = vunpack.c.l.b16 %v2613
        %v2622 = vpack.c.b16 %v2619, %v2618
        %v2623 = vpack.c.b16 %v2621, %v2620
        %2630 = vrot.lane.b32.xlu0 %v2603, 111
        %v2631 = vpop.permute.xlu0 %2630
        %2632 = vrot.lane.b32.xlu0 %v2604, 111
        %v2633 = vpop.permute.xlu0 %2632
        %2634 = vrot.lane.b32.xlu0 %v2605, 111
        %v2635 = vpop.permute.xlu0 %2634
        %2636 = vrot.lane.b32.xlu0 %v2606, 111
        %v2637 = vpop.permute.xlu0 %2636
        %2638 = vrot.lane.b32.xlu0 %v2607, 111
        %v2639 = vpop.permute.xlu0 %2638
        %2640 = vrot.lane.b32.xlu0 %v2608, 111
        %v2641 = vpop.permute.xlu0 %2640
        %v2642 = vsel %vm1646, %v2631, %v2633
        %v2643 = vsel %vm1646, %v2633, %v2635
        %v2644 = vsel %vm1646, %v2637, %v2639
        %v2645 = vsel %vm1646, %v2639, %v2641
        %v2651 = vsel %vm1703, %v2622, 0
        %v2654 = vsel %vm1703, %v2623, 0
        %2656 = vmatprep.subr.bf16.mxu0 %v2643
        %2657 = vmatpush1.bf16.msra.mxu0 %v2642
        %2658 = vmatprep.subr.bf16.mxu0 %v2645
        %2659 = vmatpush1.bf16.msra.mxu0 %v2644
        %2660 = vmatprep.subr.bf16.mxu0 0
        %2661 = vmatpush1.bf16.msra.mxu0 0
        %2662 = vmatprep.subr.bf16.mxu0 0
        %2663 = vmatpush1.bf16.msra.mxu0 0
        %2664 = vmatprep.subr.bf16.mxu0 0
        %2665 = vmatpush1.bf16.msra.mxu0 0
        %2666 = vmatprep.subr.bf16.mxu0 0
        %2667 = vmatpush1.bf16.msra.mxu0 0
        %2668 = vmatprep.subr.bf16.mxu0 0
        %2669 = vmatpush1.bf16.msra.mxu0 0
        %2670 = vmatprep.subr.bf16.mxu0 0
        %2671 = vmatpush1.bf16.msra.mxu0 0
        %2672 = vmatprep.subr.bf16.mxu0 0
        %2673 = vmatpush1.bf16.msra.mxu0 0
        %2674 = vmatprep.subr.bf16.mxu0 0
        %2675 = vmatpush1.bf16.msra.mxu0 0
        %2676 = vmatprep.subr.bf16.mxu0 0
        %2677 = vmatpush1.bf16.msra.mxu0 0
        %2678 = vmatprep.subr.bf16.mxu0 0
        %2679 = vmatpush1.bf16.msra.mxu0 0
        %2680 = vmatprep.subr.bf16.mxu0 0
        %2681 = vmatpush1.bf16.msra.mxu0 0
        %2682 = vmatprep.subr.bf16.mxu0 0
        %2683 = vmatpush1.bf16.msra.mxu0 0
        %2684 = vmatprep.subr.bf16.mxu0 0
        %2685 = vmatpush1.bf16.msra.mxu0 0
        %2686 = vmatprep.subr.bf16.mxu0 0
        %2687 = vmatpush1.bf16.msra.mxu0 0
        %2688 = vmatprep.mubr.bf16.mxu0 0
        %2689 = vmatmul.mubr.bf16.gmra.mrb[0].mxu0 %v2651
        %v2690 = vpop.f32.mrb[0].mxu0
        %v2691 = vadd.f32 0.0, %v2690
        %v2692 = vpop.f32.mrb[0].mxu0
        %v2693 = vadd.f32 0.0, %v2692
        %v2694 = vpop.f32.mrb[0].mxu0
        %v2695 = vadd.f32 0.0, %v2694
        %v2696 = vpop.f32.mrb[0].mxu0
        %v2697 = vadd.f32 0.0, %v2696
        %2698 = vmatprep.mubr.bf16.mxu0 0
        %2699 = vmatmul.mubr.bf16.gmra.mrb[0].mxu0 %v2654
        %v2700 = vpop.f32.mrb[0].mxu0
        %v2701 = vadd.f32 0.0, %v2700
        %v2702 = vpop.f32.mrb[0].mxu0
        %v2703 = vadd.f32 0.0, %v2702
        %v2704 = vpop.f32.mrb[0].mxu0
        %v2705 = vadd.f32 0.0, %v2704
        %v2706 = vpop.f32.mrb[0].mxu0
        %v2707 = vadd.f32 0.0, %v2706
        %2708 = vdwg.mxu0
        %v2709 = vadd.f32 %v2587, %v2691
        %v2710 = vadd.f32 %v2588, %v2693
        %v2711 = vadd.f32 %v2589, %v2695
        %v2712 = vadd.f32 %v2590, %v2697
        %v2713 = vadd.f32 %v2591, %v2701
        %v2714 = vadd.f32 %v2592, %v2703
        %v2715 = vadd.f32 %v2593, %v2705
        %v2716 = vadd.f32 %v2594, %v2707
        %2717 = vst [vmem:[%s1515] sm:$0xff] %v2709
        %2718 = vst [vmem:[%s1515 + $0x8] sm:$0xff] %v2710
        %2719 = vst [vmem:[%s1515 + $0x10] sm:$0xff] %v2711
        %2720 = vst [vmem:[%s1515 + $0x18] sm:$0xff] %v2712
        %2721 = vst [vmem:[%s1515 + $0x20] sm:$0xff] %v2713
        %2722 = vst [vmem:[%s1515 + $0x28] sm:$0xff] %v2714
        %2723 = vst [vmem:[%s1515 + $0x30] sm:$0xff] %v2715
        %2724 = vst [vmem:[%s1515 + $0x38] sm:$0xff] %v2716
        // Predicated region
        $region69: #{residual_block_forward.1} parent=67 // pred_check
          %p2725 = pneg %p320
        $region70: #{residual_block_forward.1} parent=67 // pred_check_branch
          %2727 = sbr.rel (%p2725) target = $region72
        $region71: #{residual_block_forward.1} parent=67 // pred_region
          %vm2728 = vcmask 7168
          %2729 = vst.msk [vmem:[#allocation5] sm:$0xff] %vm2728, 0.0
          %2730 = vst.msk [vmem:[#allocation5 + $0x8] sm:$0xff] %vm2728, 0.0
          %2731 = vst.msk [vmem:[#allocation5 + $0x10] sm:$0xff] %vm2728, 0.0
          %2732 = vst.msk [vmem:[#allocation5 + $0x18] sm:$0xff] %vm2728, 0.0
          %2733 = vst.msk [vmem:[#allocation5 + $0x20] sm:$0xff] %vm2728, 0.0
          %2734 = vst.msk [vmem:[#allocation5 + $0x28] sm:$0xff] %vm2728, 0.0
          %2735 = vst.msk [vmem:[#allocation5 + $0x30] sm:$0xff] %vm2728, 0.0
          %2736 = vst.msk [vmem:[#allocation5 + $0x38] sm:$0xff] %vm2728, 0.0
        $region72: #{residual_block_forward.1} parent=67 // pred_fallthru
          _
        %v2737 = vld [vmem:[#allocation5] sm:$0xff]
        %v2738 = vld [vmem:[#allocation5 + $0x8] sm:$0xff]
        %v2739 = vld [vmem:[#allocation5 + $0x10] sm:$0xff]
        %v2740 = vld [vmem:[#allocation5 + $0x18] sm:$0xff]
        %v2741 = vadd.f32 %v2709, %v2710
        %2742 = vadd.xlane.f32.xlu0 %v2741
        %v2743 = vpop.xlane.xlu0 %2742
        %v2744 = vadd.f32 %v2711, %v2712
        %2745 = vadd.xlane.f32.xlu0 %v2744
        %v2746 = vpop.xlane.xlu0 %2745
        %v2747 = vadd.f32 %v2713, %v2714
        %2748 = vadd.xlane.f32.xlu0 %v2747
        %v2749 = vpop.xlane.xlu0 %2748
        %v2750 = vadd.f32 %v2715, %v2716
        %2751 = vadd.xlane.f32.xlu0 %v2750
        %v2752 = vpop.xlane.xlu0 %2751
        %v2753 = vadd.f32 %v2737, %v2743
        %v2754 = vadd.f32 %v2738, %v2746
        %v2755 = vadd.f32 %v2739, %v2749
        %v2756 = vadd.f32 %v2740, %v2752
        %vm2757 = vcmask 7168
        %2758 = vst.msk [vmem:[#allocation5] sm:$0xff] %vm2757, %v2753
        %2759 = vst.msk [vmem:[#allocation5 + $0x8] sm:$0xff] %vm2757, %v2754
        %2760 = vst.msk [vmem:[#allocation5 + $0x10] sm:$0xff] %vm2757, %v2755
        %2761 = vst.msk [vmem:[#allocation5 + $0x18] sm:$0xff] %vm2757, %v2756
        %s2762 = scalar_lea.vmem [#allocation5], 32
        %v2763 = vld [vmem:[%s2762] sm:$0xff]
        %v2764 = vld [vmem:[%s2762 + $0x8] sm:$0xff]
        %v2765 = vld [vmem:[%s2762 + $0x10] sm:$0xff]
        %v2766 = vld [vmem:[%s2762 + $0x18] sm:$0xff]
        %v2767 = vmul.f32 %v2709, %v2709
        %v2768 = vmul.f32 %v2710, %v2710
        %v2769 = vmul.f32 %v2711, %v2711
        %v2770 = vmul.f32 %v2712, %v2712
        %v2771 = vmul.f32 %v2713, %v2713
        %v2772 = vmul.f32 %v2714, %v2714
        %v2773 = vmul.f32 %v2715, %v2715
        %v2774 = vmul.f32 %v2716, %v2716
        %v2775 = vadd.f32 %v2767, %v2768
        %2776 = vadd.xlane.f32.xlu0 %v2775
        %v2777 = vpop.xlane.xlu0 %2776
        %v2778 = vadd.f32 %v2769, %v2770
        %2779 = vadd.xlane.f32.xlu0 %v2778
        %v2780 = vpop.xlane.xlu0 %2779
        %v2781 = vadd.f32 %v2771, %v2772
        %2782 = vadd.xlane.f32.xlu0 %v2781
        %v2783 = vpop.xlane.xlu0 %2782
        %v2784 = vadd.f32 %v2773, %v2774
        %2785 = vadd.xlane.f32.xlu0 %v2784
        %v2786 = vpop.xlane.xlu0 %2785
        %v2787 = vadd.f32 %v2763, %v2777
        %v2788 = vadd.f32 %v2764, %v2780
        %v2789 = vadd.f32 %v2765, %v2783
        %v2790 = vadd.f32 %v2766, %v2786
        %2791 = vst.msk [vmem:[%s2762] sm:$0xff] %vm2757, %v2787
        %2792 = vst.msk [vmem:[%s2762 + $0x8] sm:$0xff] %vm2757, %v2788
        %2793 = vst.msk [vmem:[%s2762 + $0x10] sm:$0xff] %vm2757, %v2789
        %2794 = vst.msk [vmem:[%s2762 + $0x18] sm:$0xff] %vm2757, %v2790
      $region68: #{residual_block_forward.1} parent=51 // pred_fallthru
        _
      %p2795 = scmp.eq.s32.totalorder %s23, 2
      // Predicated region
      $region73: #{residual_block_forward.1} parent=51 // pred_check
        %p2796 = pneg %p2795
      $region74: #{residual_block_forward.1} parent=51 // pred_check_branch
        %2798 = sbr.rel (%p2796) target = $region76
      $region75: #{residual_block_forward.1} parent=51 // pred_region
        %v2799 = vld [vmem:[#allocation5] sm:$0xff]
        %v2800 = vld [vmem:[#allocation5 + $0x8] sm:$0xff]
        %v2801 = vld [vmem:[#allocation5 + $0x10] sm:$0xff]
        %v2802 = vld [vmem:[#allocation5 + $0x18] sm:$0xff]
        %v2803 = vmul.f32 %v2799, 0.001953125
        %v2804 = vmul.f32 %v2800, 0.001953125
        %v2805 = vmul.f32 %v2801, 0.001953125
        %v2806 = vmul.f32 %v2802, 0.001953125
        %s2807 = scalar_lea.vmem [#allocation5], 32
        %v2808 = vld [vmem:[%s2807] sm:$0xff]
        %v2809 = vld [vmem:[%s2807 + $0x8] sm:$0xff]
        %v2810 = vld [vmem:[%s2807 + $0x10] sm:$0xff]
        %v2811 = vld [vmem:[%s2807 + $0x18] sm:$0xff]
        %v2812 = vmul.f32 %v2808, 0.001953125
        %v2813 = vmul.f32 %v2809, 0.001953125
        %v2814 = vmul.f32 %v2810, 0.001953125
        %v2815 = vmul.f32 %v2811, 0.001953125
        %v2816 = vmul.f32 %v2803, %v2803
        %v2817 = vmul.f32 %v2804, %v2804
        %v2818 = vmul.f32 %v2805, %v2805
        %v2819 = vmul.f32 %v2806, %v2806
        %v2820 = vsub.f32 %v2812, %v2816
        %v2821 = vsub.f32 %v2813, %v2817
        %v2822 = vsub.f32 %v2814, %v2818
        %v2823 = vsub.f32 %v2815, %v2819
        %v2824 = vld [vmem:[%s5] sm:$0xff]
        %v2825 = vld [vmem:[%s5 + $0x8] sm:$0xff]
        %v2826 = vld [vmem:[%s5 + $0x10] sm:$0xff]
        %v2827 = vld [vmem:[%s5 + $0x18] sm:$0xff]
        %v2828 = vadd.f32 %v2820, 1e-05
        %v2829 = vadd.f32 %v2821, 1e-05
        %v2830 = vadd.f32 %v2822, 1e-05
        %v2831 = vadd.f32 %v2823, 1e-05
        %v2832 = vrsqrt.pop %v2828
        %v2833 = vrsqrt.pop %v2829
        %v2834 = vrsqrt.pop %v2830
        %v2835 = vrsqrt.pop %v2831
        %v2836 = vmul.f32 %v2824, %v2832
        %v2837 = vmul.f32 %v2825, %v2833
        %v2838 = vmul.f32 %v2826, %v2834
        %v2839 = vmul.f32 %v2827, %v2835
        %v2840 = vld [vmem:[%s6] sm:$0xff]
        %v2841 = vld [vmem:[%s6 + $0x8] sm:$0xff]
        %v2842 = vld [vmem:[%s6 + $0x10] sm:$0xff]
        %v2843 = vld [vmem:[%s6 + $0x18] sm:$0xff]
        %v2844 = vmul.f32 %v2803, %v2836
        %v2845 = vmul.f32 %v2804, %v2837
        %v2846 = vmul.f32 %v2805, %v2838
        %v2847 = vmul.f32 %v2806, %v2839
        %v2848 = vsub.f32 %v2840, %v2844
        %v2849 = vsub.f32 %v2841, %v2845
        %v2850 = vsub.f32 %v2842, %v2846
        %v2851 = vsub.f32 %v2843, %v2847
        %s2852 = smul.u32 %s24, 8
        %s2853 = smul.addr %s2852, 8
        %s2854 = scalar_lea.vmem [#allocation3], %s2853
        %v2855 = vld [vmem:[%s2854] sm:$0xff]
        %v2856 = vld [vmem:[%s2854 + $0x8] sm:$0xff]
        %v2857 = vld [vmem:[%s2854 + $0x10] sm:$0xff]
        %v2858 = vld [vmem:[%s2854 + $0x18] sm:$0xff]
        %v2859 = vld [vmem:[%s2854 + $0x20] sm:$0xff]
        %v2860 = vld [vmem:[%s2854 + $0x28] sm:$0xff]
        %v2861 = vld [vmem:[%s2854 + $0x30] sm:$0xff]
        %v2862 = vld [vmem:[%s2854 + $0x38] sm:$0xff]
        %2864 = vset.pattern.permute.xlu0 0
        %2865 = vperm.xlu0 %2864, %v2836
        %v2866 = vpop.permute.xlu0 %2865
        %2869 = vset.pattern.permute.xlu0 0
        %2870 = vperm.xlu0 %2869, %v2837
        %v2871 = vpop.permute.xlu0 %2870
        %2874 = vset.pattern.permute.xlu0 0
        %2875 = vperm.xlu0 %2874, %v2838
        %v2876 = vpop.permute.xlu0 %2875
        %2879 = vset.pattern.permute.xlu0 0
        %2880 = vperm.xlu0 %2879, %v2839
        %v2881 = vpop.permute.xlu0 %2880
        %v2883 = vmul.f32 %v2855, %v2866
        %v2884 = vmul.f32 %v2856, %v2866
        %v2885 = vmul.f32 %v2857, %v2871
        %v2886 = vmul.f32 %v2858, %v2871
        %v2887 = vmul.f32 %v2859, %v2876
        %v2888 = vmul.f32 %v2860, %v2876
        %v2889 = vmul.f32 %v2861, %v2881
        %v2890 = vmul.f32 %v2862, %v2881
        %2892 = vset.pattern.permute.xlu0 0
        %2893 = vperm.xlu0 %2892, %v2848
        %v2894 = vpop.permute.xlu0 %2893
        %2897 = vset.pattern.permute.xlu0 0
        %2898 = vperm.xlu0 %2897, %v2849
        %v2899 = vpop.permute.xlu0 %2898
        %2902 = vset.pattern.permute.xlu0 0
        %2903 = vperm.xlu0 %2902, %v2850
        %v2904 = vpop.permute.xlu0 %2903
        %2907 = vset.pattern.permute.xlu0 0
        %2908 = vperm.xlu0 %2907, %v2851
        %v2909 = vpop.permute.xlu0 %2908
        %v2911 = vadd.f32 %v2883, %v2894
        %v2912 = vadd.f32 %v2884, %v2894
        %v2913 = vadd.f32 %v2885, %v2899
        %v2914 = vadd.f32 %v2886, %v2899
        %v2915 = vadd.f32 %v2887, %v2904
        %v2916 = vadd.f32 %v2888, %v2904
        %v2917 = vadd.f32 %v2889, %v2909
        %v2918 = vadd.f32 %v2890, %v2909
        %2919 = vst [vmem:[%s317] sm:$0xff] %v2911
        %2920 = vst [vmem:[%s317 + $0x8] sm:$0xff] %v2912
        %2921 = vst [vmem:[%s317 + $0x10] sm:$0xff] %v2913
        %2922 = vst [vmem:[%s317 + $0x18] sm:$0xff] %v2914
        %2923 = vst [vmem:[%s317 + $0x20] sm:$0xff] %v2915
        %2924 = vst [vmem:[%s317 + $0x28] sm:$0xff] %v2916
        %2925 = vst [vmem:[%s317 + $0x30] sm:$0xff] %v2917
        %2926 = vst [vmem:[%s317 + $0x38] sm:$0xff] %v2918
      $region76: #{residual_block_forward.1} parent=51 // pred_fallthru
        _
      %p2927 = scmp.lt.s32.totalorder %s24, 1
      %s2928 = scalar_select %p2927, %s24, 1
      %s2929 = smul.addr %s2928, 8
      %s2930 = smul.addr %s2929, 8
      %s2931 = scalar_lea.vmem %s8, %s2930
      // Predicated region
      $region77: #{residual_block_forward.1} parent=51 // pred_check
        %p2932 = pneg %p222
      $region78: #{residual_block_forward.1} parent=51 // pred_check_branch
        %2934 = sbr.rel (%p2932) target = $region80
      $region79: #{residual_block_forward.1} parent=51 // pred_region
        _
      $region80: #{residual_block_forward.1} parent=51 // pred_fallthru
        _
    $region52: #{residual_block_forward.1} parent=5 // pred_fallthru
      _
    %p2935 = scmp.le.s32.totalorder 2, %s14
    // Predicated region
    $region81: #{residual_block_forward.1} parent=5 // pred_check
      %p2936 = pneg %p2935
    $region82: #{residual_block_forward.1} parent=5 // pred_check_branch
      %2938 = sbr.rel (%p2936) target = $region84
    $region83: #{residual_block_forward.1} parent=5 // pred_region
      %s2939 = ssub.s32 %s14, 2
      // Predicated region
      $region85: #{residual_block_forward.1} parent=83 // pred_check
        %p2940 = pneg %p228
      $region86: #{residual_block_forward.1} parent=83 // pred_check_branch
        %2942 = sbr.rel (%p2940) target = $region88
      $region87: #{residual_block_forward.1} parent=83 // pred_region
        %p2943 = scmp.lt.s32.totalorder %s26, 1
        %s2944 = scalar_select %p2943, %s26, 1
        %s2945 = smul.addr %s2944, 8
        %s2946 = smul.addr %s2945, 8
        %s2947 = scalar_lea.vmem %s8, %s2946
      $region88: #{residual_block_forward.1} parent=83 // pred_fallthru
        _
    $region84: #{residual_block_forward.1} parent=5 // pred_fallthru
      _
  $region6: #{residual_block_forward.1} parent=0 // loop_footer
    %s18 = sadd.s32 1, %s14
  $region7: #{residual_block_forward.1} parent=0 // loop_footer_branch
    %13 = sbr.rel target = $region3
  $region8: #{residual_block_forward.1} parent=0 // loop_exit
    _

</llo_original>
